<compile_context>
chip_gen: v5e
topology: v5e:2x2
jax: 0.10.0
libtpu: 0.0.40
codegen_flags: <defaults>
</compile_context>

<pallas_src>
import functools
import math

import jax
import jax.numpy as jnp
from jax import lax
from jax.experimental import pallas as pl
from jax.experimental.pallas import tpu as pltpu

LN_EPS = 1e-5                      # PyTorch nn.LayerNorm default eps
VMEM_LIMIT = 32 * 1024 * 1024      # safe on v5e/v6e/v7x
_LOG_2PI = math.log(2.0 * math.pi)


# ------------------------------------------------------------------
# helpers
# ------------------------------------------------------------------
def _round_up(v, m):
    return ((v + m - 1) // m) * m


def _divisor_chunk(n, cap):
    """Largest multiple of 8 that divides n and is <= cap (n is a multiple of 8)."""
    c = min(n, max(cap, 8))
    c -= c % 8
    c = max(c, 8)
    while n % c:
        c -= 8
    return c


def _pick_time_chunk(T, Bp):
    """GRU time chunk: multiple of 8, bounded so (tt*Bp) stays VMEM-friendly."""
    cap = max(8, min(32, ((2048 // max(Bp, 1)) // 8) * 8))
    t8 = _round_up(T, 8)
    if t8 <= cap:
        return t8
    allowed = max(8, T // 8)           # accept <=~12.5% time padding for a bigger chunk
    best, best_pad = 8, (-T) % 8
    for c in range(cap, 8, -8):
        pad = (-T) % c
        if pad <= allowed:
            return c
        if pad < best_pad:
            best, best_pad = c, pad
    return best


# ------------------------------------------------------------------
# Kernel A:  gx = relu(LN(x @ Win + bin)) @ Wih + bih     (row-tiled, time-major rows)
# ------------------------------------------------------------------
def _input_proj_kernel(x_ref, win_ref, bin_ref, g1_ref, b1_ref,
                       wih_ref, bih_ref, gx_ref, *, ln_width):
    xb = x_ref[...].astype(jnp.bfloat16)
    y = jnp.dot(xb, win_ref[...], preferred_element_type=jnp.float32) + bin_ref[...]
    # LN over the true (unpadded) width; padded lanes are exactly zero.
    inv_w = 1.0 / ln_width
    s1 = jnp.sum(y, axis=-1, keepdims=True)
    s2 = jnp.sum(y * y, axis=-1, keepdims=True)
    mean = s1 * inv_w
    var = jnp.maximum(s2 * inv_w - mean * mean, 0.0)
    r = jnp.maximum((y - mean) * lax.rsqrt(var + LN_EPS) * g1_ref[...] + b1_ref[...], 0.0)
    gx_ref[...] = jnp.dot(r.astype(jnp.bfloat16), wih_ref[...],
                          preferred_element_type=jnp.float32) + bih_ref[...]


def input_gate_projection(x2d, win_b, bin_p, g1_p, beta1_p, wih_b, bih, *, tm, ln_width):
    n, d = x2d.shape
    g3 = wih_b.shape[1]
    w = lambda a: pl.BlockSpec(a.shape, lambda i: (0,) * a.ndim)
    kern = functools.partial(_input_proj_kernel, ln_width=float(ln_width))
    return pl.pallas_call(
        kern,
        out_shape=jax.ShapeDtypeStruct((n, g3), jnp.float32),
        grid_spec=pltpu.PrefetchScalarGridSpec(
            num_scalar_prefetch=0,
            grid=(n // tm,),
            in_specs=[pl.BlockSpec((tm, d), lambda i: (i, 0)),
                      w(win_b), w(bin_p), w(g1_p), w(beta1_p), w(wih_b), w(bih)],
            out_specs=pl.BlockSpec((tm, g3), lambda i: (i, 0))),
        compiler_params=pltpu.CompilerParams(
            dimension_semantics=("parallel",),
            vmem_limit_bytes=VMEM_LIMIT),
    )(x2d, win_b, bin_p, g1_p, beta1_p, wih_b, bih)


# ------------------------------------------------------------------
# Kernel B: GRU recurrence (PyTorch gate order r,z,n), time-major, time-chunk
#           streamed, only h @ Whh inside the loop, fori_loop(unroll=True).
# ------------------------------------------------------------------
def _gru_kernel(gx_ref, h0_ref, whh_ref, bhh_ref, o_ref, h_scr):
    # gx_ref: (tt, bblk, 3H) f32   h0: (bblk, H) f32   whh: (H, 3H) bf16
    # bhh: (1, 3H) f32             o_ref: (tt, bblk, H) bf16   h_scr: (bblk, H) f32
    @pl.when(pl.program_id(1) == 0)
    def _():
        h_scr[...] = h0_ref[...]

    hdim = h0_ref.shape[1]
    tt = gx_ref.shape[0]
    whh = whh_ref[...]
    bhh = bhh_ref[...]

    def step(t, h):
        gx = gx_ref[t]                                        # full (bblk, 3H) tile load
        gh = jnp.dot(h.astype(jnp.bfloat16), whh,
                     preferred_element_type=jnp.float32) + bhh
        r_g = jax.nn.sigmoid(gx[:, :hdim] + gh[:, :hdim])
        z_g = jax.nn.sigmoid(gx[:, hdim:2 * hdim] + gh[:, hdim:2 * hdim])
        n_g = jnp.tanh(gx[:, 2 * hdim:] + r_g * gh[:, 2 * hdim:])
        h = (1.0 - z_g) * n_g + z_g * h
        o_ref[t] = h.astype(o_ref.dtype)                      # full-tile store
        return h

    h_scr[...] = lax.fori_loop(0, tt, step, h_scr[...], unroll=True)


def gru_forward(gx, h0, whh_b, bhh, *, tt, gb):
    Tp, Bp, g3 = gx.shape
    hdim = h0.shape[1]
    bblk = Bp // gb
    return pl.pallas_call(
        _gru_kernel,
        out_shape=jax.ShapeDtypeStruct((Tp, Bp, hdim), jnp.bfloat16),
        grid_spec=pltpu.PrefetchScalarGridSpec(
            num_scalar_prefetch=0,
            grid=(gb, Tp // tt),
            in_specs=[pl.BlockSpec((tt, bblk, g3), lambda b, c: (c, b, 0)),
                      pl.BlockSpec((bblk, hdim), lambda b, c: (b, 0)),
                      pl.BlockSpec(whh_b.shape, lambda b, c: (0, 0)),
                      pl.BlockSpec(bhh.shape, lambda b, c: (0, 0))],
            out_specs=pl.BlockSpec((tt, bblk, hdim), lambda b, c: (c, b, 0)),
            scratch_shapes=[pltpu.VMEM((bblk, hdim), jnp.float32)]),
        compiler_params=pltpu.CompilerParams(
            dimension_semantics=("parallel", "arbitrary"),
            vmem_limit_bytes=VMEM_LIMIT),
    )(gx, h0, whh_b, bhh)


# ------------------------------------------------------------------
# Kernel C: emission head + diag-Gaussian log-prob + length-masked reduce
#           grid = (batch blocks "parallel", time blocks "arbitrary"),
#           accumulates directly into the resident output block.
# ------------------------------------------------------------------
def _emission_kernel(x_ref, h_ref, len_ref, w1_ref, b1_ref, g2_ref, beta2_ref,
                     wms_ref, bms_ref, out_ref):
    j = pl.program_id(1)
    tt, bb, d = x_ref.shape
    hdim = h_ref.shape[2]
    rr = tt * bb

    x2 = x_ref[...].reshape(rr, d)                  # (rr, D) f32
    h2 = h_ref[...].reshape(rr, hdim)               # (rr, H) bf16

    # h -> Linear -> LayerNorm -> ReLU  (variance via E[y^2] - mean^2)
    y = jnp.dot(h2, w1_ref[...], preferred_element_type=jnp.float32) + b1_ref[...]
    inv_w = 1.0 / y.shape[-1]
    s1 = jnp.sum(y, axis=-1, keepdims=True)
    s2 = jnp.sum(y * y, axis=-1, keepdims=True)
    mean = s1 * inv_w
    var = jnp.maximum(s2 * inv_w - mean * mean, 0.0)
    z = jnp.maximum((y - mean) * lax.rsqrt(var + LN_EPS) * g2_ref[...] + beta2_ref[...], 0.0)

    # fused (mu | logsig) head: one matmul instead of two
    ms = jnp.dot(z.astype(jnp.bfloat16), wms_ref[...],
                 preferred_element_type=jnp.float32) + bms_ref[...]
    mu = ms[:, :d]
    logsig = ms[:, d:]

    # log N(x; mu, diag(exp(logsig)))
    diff = x2 - mu
    quad = jnp.sum(diff * diff * jnp.exp(-logsig), axis=-1, keepdims=True)   # (rr,1)
    logdet = jnp.sum(logsig, axis=-1, keepdims=True)                          # (rr,1)
    logp = -0.5 * (quad + logdet + d * _LOG_2PI)                              # (rr,1)

    # mask: only timesteps k in [1, lengths[b]); select before any cross-row reduce
    logp3 = logp.reshape(tt, bb, 1)
    t_glob = j * tt + lax.broadcasted_iota(jnp.int32, (tt, bb, 1), 0)
    lens = len_ref[...].reshape(1, bb, 1)
    mask = (t_glob >= 1) & (t_glob < lens)
    contrib = jnp.sum(jnp.where(mask, logp3, 0.0), axis=0)                    # (bb,1)

    @pl.when(j == 0)
    def _():
        out_ref[...] = jnp.zeros_like(out_ref)

    out_ref[...] += contrib

    @pl.when(j == pl.num_programs(1) - 1)
    def _():
        lenf = jnp.maximum(len_ref[...].astype(jnp.float32), 1.0)
        out_ref[...] = out_ref[...] / lenf


def emission_logprob(x_tm, o_tm, len2, w1_b, b1, g2, beta2, wms_b, bms, *, bb, ttc):
    Tp, Bp, d = x_tm.shape
    hdim = o_tm.shape[2]
    w = lambda a: pl.BlockSpec(a.shape, lambda i, j: (0,) * a.ndim)
    return pl.pallas_call(
        _emission_kernel,
        out_shape=jax.ShapeDtypeStruct((Bp, 1), jnp.float32),
        grid_spec=pltpu.PrefetchScalarGridSpec(
            num_scalar_prefetch=0,
            grid=(Bp // bb, Tp // ttc),
            in_specs=[pl.BlockSpec((ttc, bb, d), lambda i, j: (j, i, 0)),
                      pl.BlockSpec((ttc, bb, hdim), lambda i, j: (j, i, 0)),
                      pl.BlockSpec((bb, 1), lambda i, j: (i, 0)),
                      w(w1_b), w(b1), w(g2), w(beta2), w(wms_b), w(bms)],
            out_specs=pl.BlockSpec((bb, 1), lambda i, j: (i, 0))),
        compiler_params=pltpu.CompilerParams(
            dimension_semantics=("parallel", "arbitrary"),
            vmem_limit_bytes=VMEM_LIMIT),
    )(x_tm, o_tm, len2, w1_b, b1, g2, beta2, wms_b, bms)


# ------------------------------------------------------------------
# Wrapper: full forward pass
# ------------------------------------------------------------------
def rnn_forward(x, lengths, p, h0_noise):
    B, T, D = x.shape
    H = p["whh"].shape[0]
    width = p["win"].shape[1]                      # 400 in the module

    # pad batch to a multiple of 8 and time to a multiple of the GRU chunk
    Bp = max(8, _round_up(B, 8))
    tt = _pick_time_chunk(T, Bp)
    Tp = _round_up(T, tt)
    x = jnp.pad(x, ((0, Bp - B), (0, Tp - T), (0, 0)))
    lengths = jnp.pad(lengths, (0, Bp - B), constant_values=1)
    h0_noise = jnp.pad(h0_noise, ((0, Bp - B), (0, 0)))

    # bf16 copies of matmul weights (accumulation stays f32); pad the 400-wide
    # input head to a multiple of 128 lanes (gamma/beta pad = 0, wih pad rows = 0).
    bf = lambda a: a.astype(jnp.bfloat16)
    Wp = _round_up(width, 128)
    pc = Wp - width
    win_b = bf(jnp.pad(p["win"], ((0, 0), (0, pc))))
    bin_p = jnp.pad(p["bin"], ((0, 0), (0, pc)))
    g1_p = jnp.pad(p["g1"], ((0, 0), (0, pc)))
    beta1_p = jnp.pad(p["beta1"], ((0, 0), (0, pc)))
    wih_b = bf(jnp.pad(p["wih"], ((0, pc), (0, 0))))
    whh_b = bf(p["whh"])
    w1_b = bf(p["w1"])
    wms_b = jnp.concatenate([bf(p["wmu"]), bf(p["wsig"])], axis=1)   # fused mu/sig head
    bms = jnp.concatenate([p["bmu"], p["bsig"]], axis=1)

    # initial_state: tanh(Linear(100 -> H)(N(0, 0.2)))  (tiny, XLA glue)
    h0 = jnp.tanh(h0_noise @ p["winit"] + p["binit"])                # (Bp, H) f32

    # time-major layout for the whole A -> B -> C chain (single XLA transpose of x)
    x_tm = jnp.swapaxes(x, 0, 1)                                     # (Tp, Bp, D)

    # 1) fused Linear -> LN -> ReLU -> GRU input-gate projection (kernel A)
    N = Tp * Bp
    tm = _divisor_chunk(N, 1024)
    gx = input_gate_projection(x_tm.reshape(N, D), win_b, bin_p, g1_p, beta1_p,
                               wih_b, p["bih"], tm=tm, ln_width=width)
    gx = gx.reshape(Tp, Bp, 3 * H)                                   # free reshape

    # 2) GRU recurrence streamed over time chunks (kernel B); batch blocks go
    #    "parallel" for megacore when the padded batch is large enough.
    gb = 2 if (Bp >= 32 and Bp % 32 == 0) else 1
    o = gru_forward(gx, h0, whh_b, p["bhh"], tt=tt, gb=gb)           # (Tp, Bp, H) bf16

    # 3) emission head + Gaussian log-prob + length-masked reduce (kernel C)
    len2 = lengths.astype(jnp.int32).reshape(Bp, 1)
    bb = 16 if (Bp > 16 and Bp % 16 == 0) else Bp
    ttc = _divisor_chunk(Tp, max(8, min(128, ((1024 // bb) // 8) * 8)))
    logprob = emission_logprob(x_tm, o, len2, w1_b, p["b1"], p["g2"], p["beta2"],
                               wms_b, bms, bb=bb, ttc=ttc)           # (Bp, 1)
    return logprob[:B, 0]


# ------------------------------------------------------------------
# Parameter init (deterministic, PyTorch-like uniform(-1/sqrt(fan_in), .))
# ------------------------------------------------------------------
def linear_params(key, fan_in, fan_out):
    kw, kb = jax.random.split(key)
    bound = 1.0 / float(fan_in) ** 0.5
    w = jax.random.uniform(kw, (fan_in, fan_out), jnp.float32, -bound, bound)
    b = jax.random.uniform(kb, (1, fan_out), jnp.float32, -bound, bound)
    return w, b


def gru_params(key, din, h):
    k1, k2, k3, k4 = jax.random.split(key, 4)
    bound = 1.0 / float(h) ** 0.5
    wih = jax.random.uniform(k1, (din, 3 * h), jnp.float32, -bound, bound)
    whh = jax.random.uniform(k2, (h, 3 * h), jnp.float32, -bound, bound)
    bih = jax.random.uniform(k3, (1, 3 * h), jnp.float32, -bound, bound)
    bhh = jax.random.uniform(k4, (1, 3 * h), jnp.float32, -bound, bound)
    return wih, whh, bih, bhh


# ------------------------------------------------------------------
# Pure-JAX reference (same bf16-operand / f32-accumulate matmul recipe)
# ------------------------------------------------------------------
def reference_forward(x, lengths, h0_noise, p):
    B, T, D = x.shape
    H = p["whh"].shape[0]
    bf = lambda a: a.astype(jnp.bfloat16)

    def mm(a, w):
        return jnp.dot(bf(a), bf(w), preferred_element_type=jnp.float32)

    def lin_ln_relu(v, w, b, g, bt):
        y = mm(v, w) + b
        mu = y.mean(-1, keepdims=True)
        var = ((y - mu) ** 2).mean(-1, keepdims=True)
        return jnp.maximum((y - mu) / jnp.sqrt(var + LN_EPS) * g + bt, 0.0)

    h0 = jnp.tanh(h0_noise @ p["winit"] + p["binit"])

    r = lin_ln_relu(x.reshape(B * T, D), p["win"], p["bin"], p["g1"], p["beta1"])
    gx = (mm(r, p["wih"]) + p["bih"]).reshape(B, T, 3 * H)

    def step(h, gx_t):
        gh = mm(h, p["whh"]) + p["bhh"]
        rg = jax.nn.sigmoid(gx_t[:, :H] + gh[:, :H])
        zg = jax.nn.sigmoid(gx_t[:, H:2 * H] + gh[:, H:2 * H])
        ng = jnp.tanh(gx_t[:, 2 * H:] + rg * gh[:, 2 * H:])
        hn = (1.0 - zg) * ng + zg * h
        return hn, hn

    _, o_t = lax.scan(step, h0, jnp.swapaxes(gx, 0, 1))
    o = jnp.swapaxes(o_t, 0, 1)

    z = lin_ln_relu(o.reshape(B * T, H), p["w1"], p["b1"], p["g2"], p["beta2"])
    mu = mm(z, p["wmu"]) + p["bmu"]
    logsig = mm(z, p["wsig"]) + p["bsig"]
    diff = x.reshape(B * T, D) - mu
    quad = jnp.sum(diff * diff * jnp.exp(-logsig), -1)
    logdet = jnp.sum(logsig, -1)
    logp = (-0.5 * (quad + logdet + D * _LOG_2PI)).reshape(B, T)
    t_idx = jnp.arange(T)[None, :]
    mask = (t_idx >= 1) & (t_idx < lengths[:, None])
    return jnp.sum(jnp.where(mask, logp, 0.0), axis=1) / jnp.maximum(
        lengths.astype(jnp.float32), 1.0)


if __name__ == "__main__":
    # Small shapes consistent with the module (padded batch of sequences).
    B, T = 2, 8
    NINPUT, NHIDDEN, NLIN1 = 256, 128, 256

    root = jax.random.PRNGKey(0)
    ks = jax.random.split(root, 8)

    win, bin_ = linear_params(ks[0], NINPUT, 400)             # lin_in
    wih, whh, bih, bhh = gru_params(ks[1], 400, NHIDDEN)      # gru
    w1, b1 = linear_params(ks[2], NHIDDEN, NLIN1)             # lin1
    wmu, bmu = linear_params(ks[3], NLIN1, NINPUT)            # lin2_mu
    wsig, bsig = linear_params(ks[4], NLIN1, NINPUT)          # lin2_sig
    winit, binit = linear_params(ks[5], 100, NHIDDEN)         # init_lin
    params = dict(
        win=win, bin=bin_, g1=jnp.ones((1, 400)), beta1=jnp.zeros((1, 400)),
        wih=wih, whh=whh, bih=bih, bhh=bhh,
        w1=w1, b1=b1, g2=jnp.ones((1, NLIN1)), beta2=jnp.zeros((1, NLIN1)),
        wmu=wmu, bmu=bmu, wsig=wsig, bsig=bsig,
        winit=winit, binit=binit,
    )

    x = jax.random.normal(ks[6], (B, T, NINPUT), jnp.float32)
    # TODO(synk): torch.FloatTensor(...).normal_(0, 0.2) RNG is supplied as an
    # explicit input (no in-kernel random sampling for the initial state).
    h0_noise = 0.2 * jax.random.normal(ks[7], (B, 100), jnp.float32)
    lengths = jnp.array([8, 5], dtype=jnp.int32)              # maxlen == T

    fwd = jax.jit(rnn_forward)
    logprob = jax.block_until_ready(fwd(x, lengths, params, h0_noise))

    # sanity check against a pure-JAX reference
    ref = reference_forward(x, lengths, h0_noise, params)
    assert logprob.shape == (B,)
    assert bool(jnp.all(jnp.isfinite(logprob)))
    assert bool(jnp.allclose(logprob, ref, rtol=3e-2, atol=2.0)), (logprob, ref)

    print("KERNEL_OK")
</pallas_src>

<mosaic_0001>
module attributes {stable_mosaic.version = 11 : i64} {
  func.func @_input_proj_kernel(%arg0: i32, %arg1: memref<64x256xf32, #tpu.memory_space<vmem>>, %arg2: memref<256x512xbf16, #tpu.memory_space<vmem>>, %arg3: memref<1x512xf32, #tpu.memory_space<vmem>>, %arg4: memref<1x512xf32, #tpu.memory_space<vmem>>, %arg5: memref<1x512xf32, #tpu.memory_space<vmem>>, %arg6: memref<512x384xbf16, #tpu.memory_space<vmem>>, %arg7: memref<1x384xf32, #tpu.memory_space<vmem>>, %arg8: memref<64x384xf32, #tpu.memory_space<vmem>>) attributes {dimension_semantics = [#tpu.dimension_semantics<parallel>], iteration_bounds = array<i64: 1>, scalar_prefetch = 0 : i64, scratch_operands = 0 : i64, tpu.core_type = #tpu.core_type<tc>, window_params = [{transform_indices = @transform_0, window_bounds = array<i64: 64, 256>}, {pipeline_mode = #tpu.pipeline_mode<synchronous>, transform_indices = @transform_1, window_bounds = array<i64: 256, 512>}, {pipeline_mode = #tpu.pipeline_mode<synchronous>, transform_indices = @transform_2, window_bounds = array<i64: 1, 512>}, {pipeline_mode = #tpu.pipeline_mode<synchronous>, transform_indices = @transform_3, window_bounds = array<i64: 1, 512>}, {pipeline_mode = #tpu.pipeline_mode<synchronous>, transform_indices = @transform_4, window_bounds = array<i64: 1, 512>}, {pipeline_mode = #tpu.pipeline_mode<synchronous>, transform_indices = @transform_5, window_bounds = array<i64: 512, 384>}, {pipeline_mode = #tpu.pipeline_mode<synchronous>, transform_indices = @transform_6, window_bounds = array<i64: 1, 384>}, {transform_indices = @transform_7, window_bounds = array<i64: 64, 384>}]} {
    %c0 = arith.constant 0 : index
    %c0_0 = arith.constant 0 : index
    %0 = vector.load %arg1[%c0, %c0_0] : memref<64x256xf32, #tpu.memory_space<vmem>>, vector<64x256xf32>
    %1 = arith.truncf %0 : vector<64x256xf32> to vector<64x256xbf16>
    %c0_1 = arith.constant 0 : index
    %c0_2 = arith.constant 0 : index
    %2 = vector.load %arg2[%c0_1, %c0_2] : memref<256x512xbf16, #tpu.memory_space<vmem>>, vector<256x512xbf16>
    %cst = arith.constant dense<0.000000e+00> : vector<64x512xf32>
    %3 = tpu.matmul %1, %2, %cst {dimension_numbers = #tpu.dot_dimension_numbers<[1], [0], [0], [1], [0, 0, 1, 1], [], []>} : vector<64x256xbf16>, vector<256x512xbf16>, vector<64x512xf32> -> vector<64x512xf32>
    %c0_3 = arith.constant 0 : index
    %c0_4 = arith.constant 0 : index
    %4 = vector.load %arg3[%c0_3, %c0_4] : memref<1x512xf32, #tpu.memory_space<vmem>>, vector<1x512xf32>
    %5 = vector.broadcast %4 : vector<1x512xf32> to vector<64x512xf32>
    %6 = arith.addf %3, %5 : vector<64x512xf32>
    %cst_5 = arith.constant dense<0.000000e+00> : vector<64xf32>
    %7 = vector.multi_reduction <add>, %6, %cst_5 [1] : vector<64x512xf32> to vector<64xf32>
    %8 = vector.shape_cast %7 : vector<64xf32> to vector<64x1xf32>
    %9 = arith.mulf %6, %6 : vector<64x512xf32>
    %cst_6 = arith.constant dense<0.000000e+00> : vector<64xf32>
    %10 = vector.multi_reduction <add>, %9, %cst_6 [1] : vector<64x512xf32> to vector<64xf32>
    %11 = vector.shape_cast %10 : vector<64xf32> to vector<64x1xf32>
    %cst_7 = arith.constant 2.500000e-03 : f32
    %12 = vector.broadcast %cst_7 : f32 to vector<64x1xf32>
    %13 = arith.mulf %8, %12 : vector<64x1xf32>
    %cst_8 = arith.constant 2.500000e-03 : f32
    %14 = vector.broadcast %cst_8 : f32 to vector<64x1xf32>
    %15 = arith.mulf %11, %14 : vector<64x1xf32>
    %16 = arith.mulf %13, %13 : vector<64x1xf32>
    %17 = arith.subf %15, %16 : vector<64x1xf32>
    %cst_9 = arith.constant 0.000000e+00 : f32
    %18 = vector.broadcast %cst_9 : f32 to vector<64x1xf32>
    %19 = arith.maximumf %17, %18 : vector<64x1xf32>
    %20 = vector.broadcast %13 : vector<64x1xf32> to vector<64x512xf32>
    %21 = arith.subf %6, %20 : vector<64x512xf32>
    %cst_10 = arith.constant 9.99999974E-6 : f32
    %22 = vector.broadcast %cst_10 : f32 to vector<64x1xf32>
    %23 = arith.addf %19, %22 : vector<64x1xf32>
    %24 = math.rsqrt %23 : vector<64x1xf32>
    %25 = vector.broadcast %24 : vector<64x1xf32> to vector<64x512xf32>
    %26 = arith.mulf %21, %25 : vector<64x512xf32>
    %c0_11 = arith.constant 0 : index
    %c0_12 = arith.constant 0 : index
    %27 = vector.load %arg4[%c0_11, %c0_12] : memref<1x512xf32, #tpu.memory_space<vmem>>, vector<1x512xf32>
    %28 = vector.broadcast %27 : vector<1x512xf32> to vector<64x512xf32>
    %29 = arith.mulf %26, %28 : vector<64x512xf32>
    %c0_13 = arith.constant 0 : index
    %c0_14 = arith.constant 0 : index
    %30 = vector.load %arg5[%c0_13, %c0_14] : memref<1x512xf32, #tpu.memory_space<vmem>>, vector<1x512xf32>
    %31 = vector.broadcast %30 : vector<1x512xf32> to vector<64x512xf32>
    %32 = arith.addf %29, %31 : vector<64x512xf32>
    %cst_15 = arith.constant 0.000000e+00 : f32
    %33 = vector.broadcast %cst_15 : f32 to vector<64x512xf32>
    %34 = arith.maximumf %32, %33 : vector<64x512xf32>
    %35 = arith.truncf %34 : vector<64x512xf32> to vector<64x512xbf16>
    %c0_16 = arith.constant 0 : index
    %c0_17 = arith.constant 0 : index
    %36 = vector.load %arg6[%c0_16, %c0_17] : memref<512x384xbf16, #tpu.memory_space<vmem>>, vector<512x384xbf16>
    %cst_18 = arith.constant dense<0.000000e+00> : vector<64x384xf32>
    %37 = tpu.matmul %35, %36, %cst_18 {dimension_numbers = #tpu.dot_dimension_numbers<[1], [0], [0], [1], [0, 0, 1, 1], [], []>} : vector<64x512xbf16>, vector<512x384xbf16>, vector<64x384xf32> -> vector<64x384xf32>
    %c0_19 = arith.constant 0 : index
    %c0_20 = arith.constant 0 : index
    %38 = vector.load %arg7[%c0_19, %c0_20] : memref<1x384xf32, #tpu.memory_space<vmem>>, vector<1x384xf32>
    %39 = vector.broadcast %38 : vector<1x384xf32> to vector<64x384xf32>
    %40 = arith.addf %37, %39 : vector<64x384xf32>
    %c0_21 = arith.constant 0 : index
    %c0_22 = arith.constant 0 : index
    %41 = vector.load %arg8[%c0_21, %c0_22] : memref<64x384xf32, #tpu.memory_space<vmem>>, vector<64x384xf32>
    tpu.vector_store %arg8[%c0_21, %c0_22], %40 {strides = array<i32>} : memref<64x384xf32, #tpu.memory_space<vmem>>, vector<64x384xf32>,
    return
  }
  func.func @transform_0(%arg0: i32) -> (i32, i32) {
    %c0_i32 = arith.constant 0 : i32
    %c0_i32_0 = arith.constant 0 : i32
    return %arg0, %c0_i32 : i32, i32
  }
  func.func @transform_1(%arg0: i32) -> (i32, i32) {
    %c0_i32 = arith.constant 0 : i32
    %c0_i32_0 = arith.constant 0 : i32
    %c0_i32_1 = arith.constant 0 : i32
    return %c0_i32, %c0_i32_0 : i32, i32
  }
  func.func @transform_2(%arg0: i32) -> (i32, i32) {
    %c0_i32 = arith.constant 0 : i32
    %c0_i32_0 = arith.constant 0 : i32
    %c0_i32_1 = arith.constant 0 : i32
    return %c0_i32, %c0_i32_0 : i32, i32
  }
  func.func @transform_3(%arg0: i32) -> (i32, i32) {
    %c0_i32 = arith.constant 0 : i32
    %c0_i32_0 = arith.constant 0 : i32
    %c0_i32_1 = arith.constant 0 : i32
    return %c0_i32, %c0_i32_0 : i32, i32
  }
  func.func @transform_4(%arg0: i32) -> (i32, i32) {
    %c0_i32 = arith.constant 0 : i32
    %c0_i32_0 = arith.constant 0 : i32
    %c0_i32_1 = arith.constant 0 : i32
    return %c0_i32, %c0_i32_0 : i32, i32
  }
  func.func @transform_5(%arg0: i32) -> (i32, i32) {
    %c0_i32 = arith.constant 0 : i32
    %c0_i32_0 = arith.constant 0 : i32
    %c0_i32_1 = arith.constant 0 : i32
    return %c0_i32, %c0_i32_0 : i32, i32
  }
  func.func @transform_6(%arg0: i32) -> (i32, i32) {
    %c0_i32 = arith.constant 0 : i32
    %c0_i32_0 = arith.constant 0 : i32
    %c0_i32_1 = arith.constant 0 : i32
    return %c0_i32, %c0_i32_0 : i32, i32
  }
  func.func @transform_7(%arg0: i32) -> (i32, i32) {
    %c0_i32 = arith.constant 0 : i32
    %c0_i32_0 = arith.constant 0 : i32
    return %arg0, %c0_i32 : i32, i32
  }
}

module attributes {stable_mosaic.version = 11 : i64} {
  func.func @_gru_kernel(%arg0: i32, %arg1: i32, %arg2: memref<8x8x384xf32, #tpu.memory_space<vmem>>, %arg3: memref<8x128xf32, #tpu.memory_space<vmem>>, %arg4: memref<128x384xbf16, #tpu.memory_space<vmem>>, %arg5: memref<1x384xf32, #tpu.memory_space<vmem>>, %arg6: memref<8x8x128xbf16, #tpu.memory_space<vmem>>, %arg7: memref<8x128xf32, #tpu.memory_space<vmem>>) attributes {dimension_semantics = [#tpu.dimension_semantics<parallel>, #tpu.dimension_semantics<arbitrary>], iteration_bounds = array<i64: 1, 1>, scalar_prefetch = 0 : i64, scratch_operands = 1 : i64, tpu.core_type = #tpu.core_type<tc>, window_params = [{transform_indices = @transform_0, window_bounds = array<i64: 8, 8, 384>}, {transform_indices = @transform_1, window_bounds = array<i64: 8, 128>}, {pipeline_mode = #tpu.pipeline_mode<synchronous>, transform_indices = @transform_2, window_bounds = array<i64: 128, 384>}, {pipeline_mode = #tpu.pipeline_mode<synchronous>, transform_indices = @transform_3, window_bounds = array<i64: 1, 384>}, {transform_indices = @transform_4, window_bounds = array<i64: 8, 8, 128>}]} {
    %c0_i32 = arith.constant 0 : i32
    %0 = arith.cmpi eq, %arg1, %c0_i32 : i32
    %1 = arith.extui %0 : i1 to i32
    %c0_i32_0 = arith.constant 0 : i32
    %2 = arith.cmpi ne, %1, %c0_i32_0 : i32
    scf.if %2 {
      %c0_72 = arith.constant 0 : index
      %c0_73 = arith.constant 0 : index
      %311 = vector.load %arg3[%c0_72, %c0_73] : memref<8x128xf32, #tpu.memory_space<vmem>>, vector<8x128xf32>
      %c0_74 = arith.constant 0 : index
      %c0_75 = arith.constant 0 : index
      %312 = vector.load %arg7[%c0_74, %c0_75] : memref<8x128xf32, #tpu.memory_space<vmem>>, vector<8x128xf32>
      tpu.vector_store %arg7[%c0_74, %c0_75], %311 {strides = array<i32>} : memref<8x128xf32, #tpu.memory_space<vmem>>, vector<8x128xf32>,
    } else {
    }
    %c0 = arith.constant 0 : index
    %c0_1 = arith.constant 0 : index
    %3 = vector.load %arg4[%c0, %c0_1] : memref<128x384xbf16, #tpu.memory_space<vmem>>, vector<128x384xbf16>
    %c0_2 = arith.constant 0 : index
    %c0_3 = arith.constant 0 : index
    %4 = vector.load %arg5[%c0_2, %c0_3] : memref<1x384xf32, #tpu.memory_space<vmem>>, vector<1x384xf32>
    %c0_4 = arith.constant 0 : index
    %c0_5 = arith.constant 0 : index
    %5 = vector.load %arg7[%c0_4, %c0_5] : memref<8x128xf32, #tpu.memory_space<vmem>>, vector<8x128xf32>
    %c0_i32_6 = arith.constant 0 : i32
    %6 = arith.index_cast %c0_i32_6 : i32 to index
    %c0_7 = arith.constant 0 : index
    %c0_8 = arith.constant 0 : index
    %7 = vector.load %arg2[%6, %c0_7, %c0_8] : memref<8x8x384xf32, #tpu.memory_space<vmem>>, vector<1x8x384xf32>
    %8 = vector.shape_cast %7 : vector<1x8x384xf32> to vector<8x384xf32>
    %9 = arith.truncf %5 : vector<8x128xf32> to vector<8x128xbf16>
    %cst = arith.constant dense<0.000000e+00> : vector<8x384xf32>
    %10 = tpu.matmul %9, %3, %cst {dimension_numbers = #tpu.dot_dimension_numbers<[1], [0], [0], [1], [0, 0, 1, 1], [], []>} : vector<8x128xbf16>, vector<128x384xbf16>, vector<8x384xf32> -> vector<8x384xf32>
    %11 = vector.broadcast %4 : vector<1x384xf32> to vector<8x384xf32>
    %12 = arith.addf %10, %11 : vector<8x384xf32>
    %13 = vector.extract_strided_slice %8 {offsets = [0, 0], sizes = [8, 128], strides = [1, 1]} : vector<8x384xf32> to vector<8x128xf32>
    %14 = vector.extract_strided_slice %12 {offsets = [0, 0], sizes = [8, 128], strides = [1, 1]} : vector<8x384xf32> to vector<8x128xf32>
    %15 = arith.addf %13, %14 : vector<8x128xf32>
    %16 = arith.negf %15 : vector<8x128xf32>
    %17 = math.exp %16 : vector<8x128xf32>
    %cst_9 = arith.constant 1.000000e+00 : f32
    %18 = vector.broadcast %cst_9 : f32 to vector<8x128xf32>
    %19 = arith.addf %18, %17 : vector<8x128xf32>
    %20 = arith.divf %18, %19 : vector<8x128xf32>
    %21 = vector.extract_strided_slice %8 {offsets = [0, 128], sizes = [8, 128], strides = [1, 1]} : vector<8x384xf32> to vector<8x128xf32>
    %22 = vector.extract_strided_slice %12 {offsets = [0, 128], sizes = [8, 128], strides = [1, 1]} : vector<8x384xf32> to vector<8x128xf32>
    %23 = arith.addf %21, %22 : vector<8x128xf32>
    %24 = arith.negf %23 : vector<8x128xf32>
    %25 = math.exp %24 : vector<8x128xf32>
    %cst_10 = arith.constant 1.000000e+00 : f32
    %26 = vector.broadcast %cst_10 : f32 to vector<8x128xf32>
    %27 = arith.addf %26, %25 : vector<8x128xf32>
    %28 = arith.divf %26, %27 : vector<8x128xf32>
    %29 = vector.extract_strided_slice %8 {offsets = [0, 256], sizes = [8, 128], strides = [1, 1]} : vector<8x384xf32> to vector<8x128xf32>
    %30 = vector.extract_strided_slice %12 {offsets = [0, 256], sizes = [8, 128], strides = [1, 1]} : vector<8x384xf32> to vector<8x128xf32>
    %31 = arith.mulf %20, %30 : vector<8x128xf32>
    %32 = arith.addf %29, %31 : vector<8x128xf32>
    %33 = math.tanh %32 : vector<8x128xf32>
    %cst_11 = arith.constant 1.000000e+00 : f32
    %34 = vector.broadcast %cst_11 : f32 to vector<8x128xf32>
    %35 = arith.subf %34, %28 : vector<8x128xf32>
    %36 = arith.mulf %35, %33 : vector<8x128xf32>
    %37 = arith.mulf %28, %5 : vector<8x128xf32>
    %38 = arith.addf %36, %37 : vector<8x128xf32>
    %39 = arith.truncf %38 : vector<8x128xf32> to vector<8x128xbf16>
    %40 = arith.index_cast %c0_i32_6 : i32 to index
    %c0_12 = arith.constant 0 : index
    %c0_13 = arith.constant 0 : index
    %41 = vector.load %arg6[%40, %c0_12, %c0_13] : memref<8x8x128xbf16, #tpu.memory_space<vmem>>, vector<1x8x128xbf16>
    %42 = vector.shape_cast %41 : vector<1x8x128xbf16> to vector<8x128xbf16>
    %43 = vector.shape_cast %39 : vector<8x128xbf16> to vector<1x8x128xbf16>
    tpu.vector_store %arg6[%40, %c0_12, %c0_13], %43 {strides = array<i32>} : memref<8x8x128xbf16, #tpu.memory_space<vmem>>, vector<1x8x128xbf16>,
    %c1_i32 = arith.constant 1 : i32
    %44 = arith.index_cast %c1_i32 : i32 to index
    %c0_14 = arith.constant 0 : index
    %c0_15 = arith.constant 0 : index
    %45 = vector.load %arg2[%44, %c0_14, %c0_15] : memref<8x8x384xf32, #tpu.memory_space<vmem>>, vector<1x8x384xf32>
    %46 = vector.shape_cast %45 : vector<1x8x384xf32> to vector<8x384xf32>
    %47 = arith.truncf %38 : vector<8x128xf32> to vector<8x128xbf16>
    %cst_16 = arith.constant dense<0.000000e+00> : vector<8x384xf32>
    %48 = tpu.matmul %47, %3, %cst_16 {dimension_numbers = #tpu.dot_dimension_numbers<[1], [0], [0], [1], [0, 0, 1, 1], [], []>} : vector<8x128xbf16>, vector<128x384xbf16>, vector<8x384xf32> -> vector<8x384xf32>
    %49 = vector.broadcast %4 : vector<1x384xf32> to vector<8x384xf32>
    %50 = arith.addf %48, %49 : vector<8x384xf32>
    %51 = vector.extract_strided_slice %46 {offsets = [0, 0], sizes = [8, 128], strides = [1, 1]} : vector<8x384xf32> to vector<8x128xf32>
    %52 = vector.extract_strided_slice %50 {offsets = [0, 0], sizes = [8, 128], strides = [1, 1]} : vector<8x384xf32> to vector<8x128xf32>
    %53 = arith.addf %51, %52 : vector<8x128xf32>
    %54 = arith.negf %53 : vector<8x128xf32>
    %55 = math.exp %54 : vector<8x128xf32>
    %cst_17 = arith.constant 1.000000e+00 : f32
    %56 = vector.broadcast %cst_17 : f32 to vector<8x128xf32>
    %57 = arith.addf %56, %55 : vector<8x128xf32>
    %58 = arith.divf %56, %57 : vector<8x128xf32>
    %59 = vector.extract_strided_slice %46 {offsets = [0, 128], sizes = [8, 128], strides = [1, 1]} : vector<8x384xf32> to vector<8x128xf32>
    %60 = vector.extract_strided_slice %50 {offsets = [0, 128], sizes = [8, 128], strides = [1, 1]} : vector<8x384xf32> to vector<8x128xf32>
    %61 = arith.addf %59, %60 : vector<8x128xf32>
    %62 = arith.negf %61 : vector<8x128xf32>
    %63 = math.exp %62 : vector<8x128xf32>
    %cst_18 = arith.constant 1.000000e+00 : f32
    %64 = vector.broadcast %cst_18 : f32 to vector<8x128xf32>
    %65 = arith.addf %64, %63 : vector<8x128xf32>
    %66 = arith.divf %64, %65 : vector<8x128xf32>
    %67 = vector.extract_strided_slice %46 {offsets = [0, 256], sizes = [8, 128], strides = [1, 1]} : vector<8x384xf32> to vector<8x128xf32>
    %68 = vector.extract_strided_slice %50 {offsets = [0, 256], sizes = [8, 128], strides = [1, 1]} : vector<8x384xf32> to vector<8x128xf32>
    %69 = arith.mulf %58, %68 : vector<8x128xf32>
    %70 = arith.addf %67, %69 : vector<8x128xf32>
    %71 = math.tanh %70 : vector<8x128xf32>
    %cst_19 = arith.constant 1.000000e+00 : f32
    %72 = vector.broadcast %cst_19 : f32 to vector<8x128xf32>
    %73 = arith.subf %72, %66 : vector<8x128xf32>
    %74 = arith.mulf %73, %71 : vector<8x128xf32>
    %75 = arith.mulf %66, %38 : vector<8x128xf32>
    %76 = arith.addf %74, %75 : vector<8x128xf32>
    %77 = arith.truncf %76 : vector<8x128xf32> to vector<8x128xbf16>
    %78 = arith.index_cast %c1_i32 : i32 to index
    %c0_20 = arith.constant 0 : index
    %c0_21 = arith.constant 0 : index
    %79 = vector.load %arg6[%78, %c0_20, %c0_21] : memref<8x8x128xbf16, #tpu.memory_space<vmem>>, vector<1x8x128xbf16>
    %80 = vector.shape_cast %79 : vector<1x8x128xbf16> to vector<8x128xbf16>
    %81 = vector.shape_cast %77 : vector<8x128xbf16> to vector<1x8x128xbf16>
    tpu.vector_store %arg6[%78, %c0_20, %c0_21], %81 {strides = array<i32>} : memref<8x8x128xbf16, #tpu.memory_space<vmem>>, vector<1x8x128xbf16>,
    %c2_i32 = arith.constant 2 : i32
    %82 = arith.index_cast %c2_i32 : i32 to index
    %c0_22 = arith.constant 0 : index
    %c0_23 = arith.constant 0 : index
    %83 = vector.load %arg2[%82, %c0_22, %c0_23] : memref<8x8x384xf32, #tpu.memory_space<vmem>>, vector<1x8x384xf32>
    %84 = vector.shape_cast %83 : vector<1x8x384xf32> to vector<8x384xf32>
    %85 = arith.truncf %76 : vector<8x128xf32> to vector<8x128xbf16>
    %cst_24 = arith.constant dense<0.000000e+00> : vector<8x384xf32>
    %86 = tpu.matmul %85, %3, %cst_24 {dimension_numbers = #tpu.dot_dimension_numbers<[1], [0], [0], [1], [0, 0, 1, 1], [], []>} : vector<8x128xbf16>, vector<128x384xbf16>, vector<8x384xf32> -> vector<8x384xf32>
    %87 = vector.broadcast %4 : vector<1x384xf32> to vector<8x384xf32>
    %88 = arith.addf %86, %87 : vector<8x384xf32>
    %89 = vector.extract_strided_slice %84 {offsets = [0, 0], sizes = [8, 128], strides = [1, 1]} : vector<8x384xf32> to vector<8x128xf32>
    %90 = vector.extract_strided_slice %88 {offsets = [0, 0], sizes = [8, 128], strides = [1, 1]} : vector<8x384xf32> to vector<8x128xf32>
    %91 = arith.addf %89, %90 : vector<8x128xf32>
    %92 = arith.negf %91 : vector<8x128xf32>
    %93 = math.exp %92 : vector<8x128xf32>
    %cst_25 = arith.constant 1.000000e+00 : f32
    %94 = vector.broadcast %cst_25 : f32 to vector<8x128xf32>
    %95 = arith.addf %94, %93 : vector<8x128xf32>
    %96 = arith.divf %94, %95 : vector<8x128xf32>
    %97 = vector.extract_strided_slice %84 {offsets = [0, 128], sizes = [8, 128], strides = [1, 1]} : vector<8x384xf32> to vector<8x128xf32>
    %98 = vector.extract_strided_slice %88 {offsets = [0, 128], sizes = [8, 128], strides = [1, 1]} : vector<8x384xf32> to vector<8x128xf32>
    %99 = arith.addf %97, %98 : vector<8x128xf32>
    %100 = arith.negf %99 : vector<8x128xf32>
    %101 = math.exp %100 : vector<8x128xf32>
    %cst_26 = arith.constant 1.000000e+00 : f32
    %102 = vector.broadcast %cst_26 : f32 to vector<8x128xf32>
    %103 = arith.addf %102, %101 : vector<8x128xf32>
    %104 = arith.divf %102, %103 : vector<8x128xf32>
    %105 = vector.extract_strided_slice %84 {offsets = [0, 256], sizes = [8, 128], strides = [1, 1]} : vector<8x384xf32> to vector<8x128xf32>
    %106 = vector.extract_strided_slice %88 {offsets = [0, 256], sizes = [8, 128], strides = [1, 1]} : vector<8x384xf32> to vector<8x128xf32>
    %107 = arith.mulf %96, %106 : vector<8x128xf32>
    %108 = arith.addf %105, %107 : vector<8x128xf32>
    %109 = math.tanh %108 : vector<8x128xf32>
    %cst_27 = arith.constant 1.000000e+00 : f32
    %110 = vector.broadcast %cst_27 : f32 to vector<8x128xf32>
    %111 = arith.subf %110, %104 : vector<8x128xf32>
    %112 = arith.mulf %111, %109 : vector<8x128xf32>
    %113 = arith.mulf %104, %76 : vector<8x128xf32>
    %114 = arith.addf %112, %113 : vector<8x128xf32>
    %115 = arith.truncf %114 : vector<8x128xf32> to vector<8x128xbf16>
    %116 = arith.index_cast %c2_i32 : i32 to index
    %c0_28 = arith.constant 0 : index
    %c0_29 = arith.constant 0 : index
    %117 = vector.load %arg6[%116, %c0_28, %c0_29] : memref<8x8x128xbf16, #tpu.memory_space<vmem>>, vector<1x8x128xbf16>
    %118 = vector.shape_cast %117 : vector<1x8x128xbf16> to vector<8x128xbf16>
    %119 = vector.shape_cast %115 : vector<8x128xbf16> to vector<1x8x128xbf16>
    tpu.vector_store %arg6[%116, %c0_28, %c0_29], %119 {strides = array<i32>} : memref<8x8x128xbf16, #tpu.memory_space<vmem>>, vector<1x8x128xbf16>,
    %c3_i32 = arith.constant 3 : i32
    %120 = arith.index_cast %c3_i32 : i32 to index
    %c0_30 = arith.constant 0 : index
    %c0_31 = arith.constant 0 : index
    %121 = vector.load %arg2[%120, %c0_30, %c0_31] : memref<8x8x384xf32, #tpu.memory_space<vmem>>, vector<1x8x384xf32>
    %122 = vector.shape_cast %121 : vector<1x8x384xf32> to vector<8x384xf32>
    %123 = arith.truncf %114 : vector<8x128xf32> to vector<8x128xbf16>
    %cst_32 = arith.constant dense<0.000000e+00> : vector<8x384xf32>
    %124 = tpu.matmul %123, %3, %cst_32 {dimension_numbers = #tpu.dot_dimension_numbers<[1], [0], [0], [1], [0, 0, 1, 1], [], []>} : vector<8x128xbf16>, vector<128x384xbf16>, vector<8x384xf32> -> vector<8x384xf32>
    %125 = vector.broadcast %4 : vector<1x384xf32> to vector<8x384xf32>
    %126 = arith.addf %124, %125 : vector<8x384xf32>
    %127 = vector.extract_strided_slice %122 {offsets = [0, 0], sizes = [8, 128], strides = [1, 1]} : vector<8x384xf32> to vector<8x128xf32>
    %128 = vector.extract_strided_slice %126 {offsets = [0, 0], sizes = [8, 128], strides = [1, 1]} : vector<8x384xf32> to vector<8x128xf32>
    %129 = arith.addf %127, %128 : vector<8x128xf32>
    %130 = arith.negf %129 : vector<8x128xf32>
    %131 = math.exp %130 : vector<8x128xf32>
    %cst_33 = arith.constant 1.000000e+00 : f32
    %132 = vector.broadcast %cst_33 : f32 to vector<8x128xf32>
    %133 = arith.addf %132, %131 : vector<8x128xf32>
    %134 = arith.divf %132, %133 : vector<8x128xf32>
    %135 = vector.extract_strided_slice %122 {offsets = [0, 128], sizes = [8, 128], strides = [1, 1]} : vector<8x384xf32> to vector<8x128xf32>
    %136 = vector.extract_strided_slice %126 {offsets = [0, 128], sizes = [8, 128], strides = [1, 1]} : vector<8x384xf32> to vector<8x128xf32>
    %137 = arith.addf %135, %136 : vector<8x128xf32>
    %138 = arith.negf %137 : vector<8x128xf32>
    %139 = math.exp %138 : vector<8x128xf32>
    %cst_34 = arith.constant 1.000000e+00 : f32
    %140 = vector.broadcast %cst_34 : f32 to vector<8x128xf32>
    %141 = arith.addf %140, %139 : vector<8x128xf32>
    %142 = arith.divf %140, %141 : vector<8x128xf32>
    %143 = vector.extract_strided_slice %122 {offsets = [0, 256], sizes = [8, 128], strides = [1, 1]} : vector<8x384xf32> to vector<8x128xf32>
    %144 = vector.extract_strided_slice %126 {offsets = [0, 256], sizes = [8, 128], strides = [1, 1]} : vector<8x384xf32> to vector<8x128xf32>
    %145 = arith.mulf %134, %144 : vector<8x128xf32>
    %146 = arith.addf %143, %145 : vector<8x128xf32>
    %147 = math.tanh %146 : vector<8x128xf32>
    %cst_35 = arith.constant 1.000000e+00 : f32
    %148 = vector.broadcast %cst_35 : f32 to vector<8x128xf32>
    %149 = arith.subf %148, %142 : vector<8x128xf32>
    %150 = arith.mulf %149, %147 : vector<8x128xf32>
    %151 = arith.mulf %142, %114 : vector<8x128xf32>
    %152 = arith.addf %150, %151 : vector<8x128xf32>
    %153 = arith.truncf %152 : vector<8x128xf32> to vector<8x128xbf16>
    %154 = arith.index_cast %c3_i32 : i32 to index
    %c0_36 = arith.constant 0 : index
    %c0_37 = arith.constant 0 : index
    %155 = vector.load %arg6[%154, %c0_36, %c0_37] : memref<8x8x128xbf16, #tpu.memory_space<vmem>>, vector<1x8x128xbf16>
    %156 = vector.shape_cast %155 : vector<1x8x128xbf16> to vector<8x128xbf16>
    %157 = vector.shape_cast %153 : vector<8x128xbf16> to vector<1x8x128xbf16>
    tpu.vector_store %arg6[%154, %c0_36, %c0_37], %157 {strides = array<i32>} : memref<8x8x128xbf16, #tpu.memory_space<vmem>>, vector<1x8x128xbf16>,
    %c4_i32 = arith.constant 4 : i32
    %158 = arith.index_cast %c4_i32 : i32 to index
    %c0_38 = arith.constant 0 : index
    %c0_39 = arith.constant 0 : index
    %159 = vector.load %arg2[%158, %c0_38, %c0_39] : memref<8x8x384xf32, #tpu.memory_space<vmem>>, vector<1x8x384xf32>
    %160 = vector.shape_cast %159 : vector<1x8x384xf32> to vector<8x384xf32>
    %161 = arith.truncf %152 : vector<8x128xf32> to vector<8x128xbf16>
    %cst_40 = arith.constant dense<0.000000e+00> : vector<8x384xf32>
    %162 = tpu.matmul %161, %3, %cst_40 {dimension_numbers = #tpu.dot_dimension_numbers<[1], [0], [0], [1], [0, 0, 1, 1], [], []>} : vector<8x128xbf16>, vector<128x384xbf16>, vector<8x384xf32> -> vector<8x384xf32>
    %163 = vector.broadcast %4 : vector<1x384xf32> to vector<8x384xf32>
    %164 = arith.addf %162, %163 : vector<8x384xf32>
    %165 = vector.extract_strided_slice %160 {offsets = [0, 0], sizes = [8, 128], strides = [1, 1]} : vector<8x384xf32> to vector<8x128xf32>
    %166 = vector.extract_strided_slice %164 {offsets = [0, 0], sizes = [8, 128], strides = [1, 1]} : vector<8x384xf32> to vector<8x128xf32>
    %167 = arith.addf %165, %166 : vector<8x128xf32>
    %168 = arith.negf %167 : vector<8x128xf32>
    %169 = math.exp %168 : vector<8x128xf32>
    %cst_41 = arith.constant 1.000000e+00 : f32
    %170 = vector.broadcast %cst_41 : f32 to vector<8x128xf32>
    %171 = arith.addf %170, %169 : vector<8x128xf32>
    %172 = arith.divf %170, %171 : vector<8x128xf32>
    %173 = vector.extract_strided_slice %160 {offsets = [0, 128], sizes = [8, 128], strides = [1, 1]} : vector<8x384xf32> to vector<8x128xf32>
    %174 = vector.extract_strided_slice %164 {offsets = [0, 128], sizes = [8, 128], strides = [1, 1]} : vector<8x384xf32> to vector<8x128xf32>
    %175 = arith.addf %173, %174 : vector<8x128xf32>
    %176 = arith.negf %175 : vector<8x128xf32>
    %177 = math.exp %176 : vector<8x128xf32>
    %cst_42 = arith.constant 1.000000e+00 : f32
    %178 = vector.broadcast %cst_42 : f32 to vector<8x128xf32>
    %179 = arith.addf %178, %177 : vector<8x128xf32>
    %180 = arith.divf %178, %179 : vector<8x128xf32>
    %181 = vector.extract_strided_slice %160 {offsets = [0, 256], sizes = [8, 128], strides = [1, 1]} : vector<8x384xf32> to vector<8x128xf32>
    %182 = vector.extract_strided_slice %164 {offsets = [0, 256], sizes = [8, 128], strides = [1, 1]} : vector<8x384xf32> to vector<8x128xf32>
    %183 = arith.mulf %172, %182 : vector<8x128xf32>
    %184 = arith.addf %181, %183 : vector<8x128xf32>
    %185 = math.tanh %184 : vector<8x128xf32>
    %cst_43 = arith.constant 1.000000e+00 : f32
    %186 = vector.broadcast %cst_43 : f32 to vector<8x128xf32>
    %187 = arith.subf %186, %180 : vector<8x128xf32>
    %188 = arith.mulf %187, %185 : vector<8x128xf32>
    %189 = arith.mulf %180, %152 : vector<8x128xf32>
    %190 = arith.addf %188, %189 : vector<8x128xf32>
    %191 = arith.truncf %190 : vector<8x128xf32> to vector<8x128xbf16>
    %192 = arith.index_cast %c4_i32 : i32 to index
    %c0_44 = arith.constant 0 : index
    %c0_45 = arith.constant 0 : index
    %193 = vector.load %arg6[%192, %c0_44, %c0_45] : memref<8x8x128xbf16, #tpu.memory_space<vmem>>, vector<1x8x128xbf16>
    %194 = vector.shape_cast %193 : vector<1x8x128xbf16> to vector<8x128xbf16>
    %195 = vector.shape_cast %191 : vector<8x128xbf16> to vector<1x8x128xbf16>
    tpu.vector_store %arg6[%192, %c0_44, %c0_45], %195 {strides = array<i32>} : memref<8x8x128xbf16, #tpu.memory_space<vmem>>, vector<1x8x128xbf16>,
    %c5_i32 = arith.constant 5 : i32
    %196 = arith.index_cast %c5_i32 : i32 to index
    %c0_46 = arith.constant 0 : index
    %c0_47 = arith.constant 0 : index
    %197 = vector.load %arg2[%196, %c0_46, %c0_47] : memref<8x8x384xf32, #tpu.memory_space<vmem>>, vector<1x8x384xf32>
    %198 = vector.shape_cast %197 : vector<1x8x384xf32> to vector<8x384xf32>
    %199 = arith.truncf %190 : vector<8x128xf32> to vector<8x128xbf16>
    %cst_48 = arith.constant dense<0.000000e+00> : vector<8x384xf32>
    %200 = tpu.matmul %199, %3, %cst_48 {dimension_numbers = #tpu.dot_dimension_numbers<[1], [0], [0], [1], [0, 0, 1, 1], [], []>} : vector<8x128xbf16>, vector<128x384xbf16>, vector<8x384xf32> -> vector<8x384xf32>
    %201 = vector.broadcast %4 : vector<1x384xf32> to vector<8x384xf32>
    %202 = arith.addf %200, %201 : vector<8x384xf32>
    %203 = vector.extract_strided_slice %198 {offsets = [0, 0], sizes = [8, 128], strides = [1, 1]} : vector<8x384xf32> to vector<8x128xf32>
    %204 = vector.extract_strided_slice %202 {offsets = [0, 0], sizes = [8, 128], strides = [1, 1]} : vector<8x384xf32> to vector<8x128xf32>
    %205 = arith.addf %203, %204 : vector<8x128xf32>
    %206 = arith.negf %205 : vector<8x128xf32>
    %207 = math.exp %206 : vector<8x128xf32>
    %cst_49 = arith.constant 1.000000e+00 : f32
    %208 = vector.broadcast %cst_49 : f32 to vector<8x128xf32>
    %209 = arith.addf %208, %207 : vector<8x128xf32>
    %210 = arith.divf %208, %209 : vector<8x128xf32>
    %211 = vector.extract_strided_slice %198 {offsets = [0, 128], sizes = [8, 128], strides = [1, 1]} : vector<8x384xf32> to vector<8x128xf32>
    %212 = vector.extract_strided_slice %202 {offsets = [0, 128], sizes = [8, 128], strides = [1, 1]} : vector<8x384xf32> to vector<8x128xf32>
    %213 = arith.addf %211, %212 : vector<8x128xf32>
    %214 = arith.negf %213 : vector<8x128xf32>
    %215 = math.exp %214 : vector<8x128xf32>
    %cst_50 = arith.constant 1.000000e+00 : f32
    %216 = vector.broadcast %cst_50 : f32 to vector<8x128xf32>
    %217 = arith.addf %216, %215 : vector<8x128xf32>
    %218 = arith.divf %216, %217 : vector<8x128xf32>
    %219 = vector.extract_strided_slice %198 {offsets = [0, 256], sizes = [8, 128], strides = [1, 1]} : vector<8x384xf32> to vector<8x128xf32>
    %220 = vector.extract_strided_slice %202 {offsets = [0, 256], sizes = [8, 128], strides = [1, 1]} : vector<8x384xf32> to vector<8x128xf32>
    %221 = arith.mulf %210, %220 : vector<8x128xf32>
    %222 = arith.addf %219, %221 : vector<8x128xf32>
    %223 = math.tanh %222 : vector<8x128xf32>
    %cst_51 = arith.constant 1.000000e+00 : f32
    %224 = vector.broadcast %cst_51 : f32 to vector<8x128xf32>
    %225 = arith.subf %224, %218 : vector<8x128xf32>
    %226 = arith.mulf %225, %223 : vector<8x128xf32>
    %227 = arith.mulf %218, %190 : vector<8x128xf32>
    %228 = arith.addf %226, %227 : vector<8x128xf32>
    %229 = arith.truncf %228 : vector<8x128xf32> to vector<8x128xbf16>
    %230 = arith.index_cast %c5_i32 : i32 to index
    %c0_52 = arith.constant 0 : index
    %c0_53 = arith.constant 0 : index
    %231 = vector.load %arg6[%230, %c0_52, %c0_53] : memref<8x8x128xbf16, #tpu.memory_space<vmem>>, vector<1x8x128xbf16>
    %232 = vector.shape_cast %231 : vector<1x8x128xbf16> to vector<8x128xbf16>
    %233 = vector.shape_cast %229 : vector<8x128xbf16> to vector<1x8x128xbf16>
    tpu.vector_store %arg6[%230, %c0_52, %c0_53], %233 {strides = array<i32>} : memref<8x8x128xbf16, #tpu.memory_space<vmem>>, vector<1x8x128xbf16>,
    %c6_i32 = arith.constant 6 : i32
    %234 = arith.index_cast %c6_i32 : i32 to index
    %c0_54 = arith.constant 0 : index
    %c0_55 = arith.constant 0 : index
    %235 = vector.load %arg2[%234, %c0_54, %c0_55] : memref<8x8x384xf32, #tpu.memory_space<vmem>>, vector<1x8x384xf32>
    %236 = vector.shape_cast %235 : vector<1x8x384xf32> to vector<8x384xf32>
    %237 = arith.truncf %228 : vector<8x128xf32> to vector<8x128xbf16>
    %cst_56 = arith.constant dense<0.000000e+00> : vector<8x384xf32>
    %238 = tpu.matmul %237, %3, %cst_56 {dimension_numbers = #tpu.dot_dimension_numbers<[1], [0], [0], [1], [0, 0, 1, 1], [], []>} : vector<8x128xbf16>, vector<128x384xbf16>, vector<8x384xf32> -> vector<8x384xf32>
    %239 = vector.broadcast %4 : vector<1x384xf32> to vector<8x384xf32>
    %240 = arith.addf %238, %239 : vector<8x384xf32>
    %241 = vector.extract_strided_slice %236 {offsets = [0, 0], sizes = [8, 128], strides = [1, 1]} : vector<8x384xf32> to vector<8x128xf32>
    %242 = vector.extract_strided_slice %240 {offsets = [0, 0], sizes = [8, 128], strides = [1, 1]} : vector<8x384xf32> to vector<8x128xf32>
    %243 = arith.addf %241, %242 : vector<8x128xf32>
    %244 = arith.negf %243 : vector<8x128xf32>
    %245 = math.exp %244 : vector<8x128xf32>
    %cst_57 = arith.constant 1.000000e+00 : f32
    %246 = vector.broadcast %cst_57 : f32 to vector<8x128xf32>
    %247 = arith.addf %246, %245 : vector<8x128xf32>
    %248 = arith.divf %246, %247 : vector<8x128xf32>
    %249 = vector.extract_strided_slice %236 {offsets = [0, 128], sizes = [8, 128], strides = [1, 1]} : vector<8x384xf32> to vector<8x128xf32>
    %250 = vector.extract_strided_slice %240 {offsets = [0, 128], sizes = [8, 128], strides = [1, 1]} : vector<8x384xf32> to vector<8x128xf32>
    %251 = arith.addf %249, %250 : vector<8x128xf32>
    %252 = arith.negf %251 : vector<8x128xf32>
    %253 = math.exp %252 : vector<8x128xf32>
    %cst_58 = arith.constant 1.000000e+00 : f32
    %254 = vector.broadcast %cst_58 : f32 to vector<8x128xf32>
    %255 = arith.addf %254, %253 : vector<8x128xf32>
    %256 = arith.divf %254, %255 : vector<8x128xf32>
    %257 = vector.extract_strided_slice %236 {offsets = [0, 256], sizes = [8, 128], strides = [1, 1]} : vector<8x384xf32> to vector<8x128xf32>
    %258 = vector.extract_strided_slice %240 {offsets = [0, 256], sizes = [8, 128], strides = [1, 1]} : vector<8x384xf32> to vector<8x128xf32>
    %259 = arith.mulf %248, %258 : vector<8x128xf32>
    %260 = arith.addf %257, %259 : vector<8x128xf32>
    %261 = math.tanh %260 : vector<8x128xf32>
    %cst_59 = arith.constant 1.000000e+00 : f32
    %262 = vector.broadcast %cst_59 : f32 to vector<8x128xf32>
    %263 = arith.subf %262, %256 : vector<8x128xf32>
    %264 = arith.mulf %263, %261 : vector<8x128xf32>
    %265 = arith.mulf %256, %228 : vector<8x128xf32>
    %266 = arith.addf %264, %265 : vector<8x128xf32>
    %267 = arith.truncf %266 : vector<8x128xf32> to vector<8x128xbf16>
    %268 = arith.index_cast %c6_i32 : i32 to index
    %c0_60 = arith.constant 0 : index
    %c0_61 = arith.constant 0 : index
    %269 = vector.load %arg6[%268, %c0_60, %c0_61] : memref<8x8x128xbf16, #tpu.memory_space<vmem>>, vector<1x8x128xbf16>
    %270 = vector.shape_cast %269 : vector<1x8x128xbf16> to vector<8x128xbf16>
    %271 = vector.shape_cast %267 : vector<8x128xbf16> to vector<1x8x128xbf16>
    tpu.vector_store %arg6[%268, %c0_60, %c0_61], %271 {strides = array<i32>} : memref<8x8x128xbf16, #tpu.memory_space<vmem>>, vector<1x8x128xbf16>,
    %c7_i32 = arith.constant 7 : i32
    %272 = arith.index_cast %c7_i32 : i32 to index
    %c0_62 = arith.constant 0 : index
    %c0_63 = arith.constant 0 : index
    %273 = vector.load %arg2[%272, %c0_62, %c0_63] : memref<8x8x384xf32, #tpu.memory_space<vmem>>, vector<1x8x384xf32>
    %274 = vector.shape_cast %273 : vector<1x8x384xf32> to vector<8x384xf32>
    %275 = arith.truncf %266 : vector<8x128xf32> to vector<8x128xbf16>
    %cst_64 = arith.constant dense<0.000000e+00> : vector<8x384xf32>
    %276 = tpu.matmul %275, %3, %cst_64 {dimension_numbers = #tpu.dot_dimension_numbers<[1], [0], [0], [1], [0, 0, 1, 1], [], []>} : vector<8x128xbf16>, vector<128x384xbf16>, vector<8x384xf32> -> vector<8x384xf32>
    %277 = vector.broadcast %4 : vector<1x384xf32> to vector<8x384xf32>
    %278 = arith.addf %276, %277 : vector<8x384xf32>
    %279 = vector.extract_strided_slice %274 {offsets = [0, 0], sizes = [8, 128], strides = [1, 1]} : vector<8x384xf32> to vector<8x128xf32>
    %280 = vector.extract_strided_slice %278 {offsets = [0, 0], sizes = [8, 128], strides = [1, 1]} : vector<8x384xf32> to vector<8x128xf32>
    %281 = arith.addf %279, %280 : vector<8x128xf32>
    %282 = arith.negf %281 : vector<8x128xf32>
    %283 = math.exp %282 : vector<8x128xf32>
    %cst_65 = arith.constant 1.000000e+00 : f32
    %284 = vector.broadcast %cst_65 : f32 to vector<8x128xf32>
    %285 = arith.addf %284, %283 : vector<8x128xf32>
    %286 = arith.divf %284, %285 : vector<8x128xf32>
    %287 = vector.extract_strided_slice %274 {offsets = [0, 128], sizes = [8, 128], strides = [1, 1]} : vector<8x384xf32> to vector<8x128xf32>
    %288 = vector.extract_strided_slice %278 {offsets = [0, 128], sizes = [8, 128], strides = [1, 1]} : vector<8x384xf32> to vector<8x128xf32>
    %289 = arith.addf %287, %288 : vector<8x128xf32>
    %290 = arith.negf %289 : vector<8x128xf32>
    %291 = math.exp %290 : vector<8x128xf32>
    %cst_66 = arith.constant 1.000000e+00 : f32
    %292 = vector.broadcast %cst_66 : f32 to vector<8x128xf32>
    %293 = arith.addf %292, %291 : vector<8x128xf32>
    %294 = arith.divf %292, %293 : vector<8x128xf32>
    %295 = vector.extract_strided_slice %274 {offsets = [0, 256], sizes = [8, 128], strides = [1, 1]} : vector<8x384xf32> to vector<8x128xf32>
    %296 = vector.extract_strided_slice %278 {offsets = [0, 256], sizes = [8, 128], strides = [1, 1]} : vector<8x384xf32> to vector<8x128xf32>
    %297 = arith.mulf %286, %296 : vector<8x128xf32>
    %298 = arith.addf %295, %297 : vector<8x128xf32>
    %299 = math.tanh %298 : vector<8x128xf32>
    %cst_67 = arith.constant 1.000000e+00 : f32
    %300 = vector.broadcast %cst_67 : f32 to vector<8x128xf32>
    %301 = arith.subf %300, %294 : vector<8x128xf32>
    %302 = arith.mulf %301, %299 : vector<8x128xf32>
    %303 = arith.mulf %294, %266 : vector<8x128xf32>
    %304 = arith.addf %302, %303 : vector<8x128xf32>
    %305 = arith.truncf %304 : vector<8x128xf32> to vector<8x128xbf16>
    %306 = arith.index_cast %c7_i32 : i32 to index
    %c0_68 = arith.constant 0 : index
    %c0_69 = arith.constant 0 : index
    %307 = vector.load %arg6[%306, %c0_68, %c0_69] : memref<8x8x128xbf16, #tpu.memory_space<vmem>>, vector<1x8x128xbf16>
    %308 = vector.shape_cast %307 : vector<1x8x128xbf16> to vector<8x128xbf16>
    %309 = vector.shape_cast %305 : vector<8x128xbf16> to vector<1x8x128xbf16>
    tpu.vector_store %arg6[%306, %c0_68, %c0_69], %309 {strides = array<i32>} : memref<8x8x128xbf16, #tpu.memory_space<vmem>>, vector<1x8x128xbf16>,
    %c8_i32 = arith.constant 8 : i32
    %c0_70 = arith.constant 0 : index
    %c0_71 = arith.constant 0 : index
    %310 = vector.load %arg7[%c0_70, %c0_71] : memref<8x128xf32, #tpu.memory_space<vmem>>, vector<8x128xf32>
    tpu.vector_store %arg7[%c0_70, %c0_71], %304 {strides = array<i32>} : memref<8x128xf32, #tpu.memory_space<vmem>>, vector<8x128xf32>,
    return
  }
  func.func @transform_0(%arg0: i32, %arg1: i32) -> (i32, i32, i32) {
    %c0_i32 = arith.constant 0 : i32
    %c0_i32_0 = arith.constant 0 : i32
    return %arg1, %arg0, %c0_i32 : i32, i32, i32
  }
  func.func @transform_1(%arg0: i32, %arg1: i32) -> (i32, i32) {
    %c0_i32 = arith.constant 0 : i32
    %c0_i32_0 = arith.constant 0 : i32
    return %arg0, %c0_i32 : i32, i32
  }
  func.func @transform_2(%arg0: i32, %arg1: i32) -> (i32, i32) {
    %c0_i32 = arith.constant 0 : i32
    %c0_i32_0 = arith.constant 0 : i32
    %c0_i32_1 = arith.constant 0 : i32
    return %c0_i32, %c0_i32_0 : i32, i32
  }
  func.func @transform_3(%arg0: i32, %arg1: i32) -> (i32, i32) {
    %c0_i32 = arith.constant 0 : i32
    %c0_i32_0 = arith.constant 0 : i32
    %c0_i32_1 = arith.constant 0 : i32
    return %c0_i32, %c0_i32_0 : i32, i32
  }
  func.func @transform_4(%arg0: i32, %arg1: i32) -> (i32, i32, i32) {
    %c0_i32 = arith.constant 0 : i32
    %c0_i32_0 = arith.constant 0 : i32
    return %arg1, %arg0, %c0_i32 : i32, i32, i32
  }
}

module attributes {stable_mosaic.version = 11 : i64} {
  func.func @_emission_kernel(%arg0: i32, %arg1: i32, %arg2: memref<8x8x256xf32, #tpu.memory_space<vmem>>, %arg3: memref<8x8x128xbf16, #tpu.memory_space<vmem>>, %arg4: memref<8x1xi32, #tpu.memory_space<vmem>>, %arg5: memref<128x256xbf16, #tpu.memory_space<vmem>>, %arg6: memref<1x256xf32, #tpu.memory_space<vmem>>, %arg7: memref<1x256xf32, #tpu.memory_space<vmem>>, %arg8: memref<1x256xf32, #tpu.memory_space<vmem>>, %arg9: memref<256x512xbf16, #tpu.memory_space<vmem>>, %arg10: memref<1x512xf32, #tpu.memory_space<vmem>>, %arg11: memref<8x1xf32, #tpu.memory_space<vmem>>) attributes {dimension_semantics = [#tpu.dimension_semantics<parallel>, #tpu.dimension_semantics<arbitrary>], iteration_bounds = array<i64: 1, 1>, scalar_prefetch = 0 : i64, scratch_operands = 0 : i64, tpu.core_type = #tpu.core_type<tc>, window_params = [{transform_indices = @transform_0, window_bounds = array<i64: 8, 8, 256>}, {transform_indices = @transform_1, window_bounds = array<i64: 8, 8, 128>}, {transform_indices = @transform_2, window_bounds = array<i64: 8, 1>}, {pipeline_mode = #tpu.pipeline_mode<synchronous>, transform_indices = @transform_3, window_bounds = array<i64: 128, 256>}, {pipeline_mode = #tpu.pipeline_mode<synchronous>, transform_indices = @transform_4, window_bounds = array<i64: 1, 256>}, {pipeline_mode = #tpu.pipeline_mode<synchronous>, transform_indices = @transform_5, window_bounds = array<i64: 1, 256>}, {pipeline_mode = #tpu.pipeline_mode<synchronous>, transform_indices = @transform_6, window_bounds = array<i64: 1, 256>}, {pipeline_mode = #tpu.pipeline_mode<synchronous>, transform_indices = @transform_7, window_bounds = array<i64: 256, 512>}, {pipeline_mode = #tpu.pipeline_mode<synchronous>, transform_indices = @transform_8, window_bounds = array<i64: 1, 512>}, {transform_indices = @transform_9, window_bounds = array<i64: 8, 1>}]} {
    %c0 = arith.constant 0 : index
    %c0_0 = arith.constant 0 : index
    %c0_1 = arith.constant 0 : index
    %0 = vector.load %arg2[%c0, %c0_0, %c0_1] : memref<8x8x256xf32, #tpu.memory_space<vmem>>, vector<8x8x256xf32>
    %1 = vector.shape_cast %0 : vector<8x8x256xf32> to vector<64x256xf32>
    %c0_2 = arith.constant 0 : index
    %c0_3 = arith.constant 0 : index
    %c0_4 = arith.constant 0 : index
    %2 = vector.load %arg3[%c0_2, %c0_3, %c0_4] : memref<8x8x128xbf16, #tpu.memory_space<vmem>>, vector<8x8x128xbf16>
    %3 = vector.shape_cast %2 : vector<8x8x128xbf16> to vector<64x128xbf16>
    %c0_5 = arith.constant 0 : index
    %c0_6 = arith.constant 0 : index
    %4 = vector.load %arg5[%c0_5, %c0_6] : memref<128x256xbf16, #tpu.memory_space<vmem>>, vector<128x256xbf16>
    %cst = arith.constant dense<0.000000e+00> : vector<64x256xf32>
    %5 = tpu.matmul %3, %4, %cst {dimension_numbers = #tpu.dot_dimension_numbers<[1], [0], [0], [1], [0, 0, 1, 1], [], []>} : vector<64x128xbf16>, vector<128x256xbf16>, vector<64x256xf32> -> vector<64x256xf32>
    %c0_7 = arith.constant 0 : index
    %c0_8 = arith.constant 0 : index
    %6 = vector.load %arg6[%c0_7, %c0_8] : memref<1x256xf32, #tpu.memory_space<vmem>>, vector<1x256xf32>
    %7 = vector.broadcast %6 : vector<1x256xf32> to vector<64x256xf32>
    %8 = arith.addf %5, %7 : vector<64x256xf32>
    %cst_9 = arith.constant dense<0.000000e+00> : vector<64xf32>
    %9 = vector.multi_reduction <add>, %8, %cst_9 [1] : vector<64x256xf32> to vector<64xf32>
    %10 = vector.shape_cast %9 : vector<64xf32> to vector<64x1xf32>
    %11 = arith.mulf %8, %8 : vector<64x256xf32>
    %cst_10 = arith.constant dense<0.000000e+00> : vector<64xf32>
    %12 = vector.multi_reduction <add>, %11, %cst_10 [1] : vector<64x256xf32> to vector<64xf32>
    %13 = vector.shape_cast %12 : vector<64xf32> to vector<64x1xf32>
    %cst_11 = arith.constant 3.906250e-03 : f32
    %14 = vector.broadcast %cst_11 : f32 to vector<64x1xf32>
    %15 = arith.mulf %10, %14 : vector<64x1xf32>
    %cst_12 = arith.constant 3.906250e-03 : f32
    %16 = vector.broadcast %cst_12 : f32 to vector<64x1xf32>
    %17 = arith.mulf %13, %16 : vector<64x1xf32>
    %18 = arith.mulf %15, %15 : vector<64x1xf32>
    %19 = arith.subf %17, %18 : vector<64x1xf32>
    %cst_13 = arith.constant 0.000000e+00 : f32
    %20 = vector.broadcast %cst_13 : f32 to vector<64x1xf32>
    %21 = arith.maximumf %19, %20 : vector<64x1xf32>
    %22 = vector.broadcast %15 : vector<64x1xf32> to vector<64x256xf32>
    %23 = arith.subf %8, %22 : vector<64x256xf32>
    %cst_14 = arith.constant 9.99999974E-6 : f32
    %24 = vector.broadcast %cst_14 : f32 to vector<64x1xf32>
    %25 = arith.addf %21, %24 : vector<64x1xf32>
    %26 = math.rsqrt %25 : vector<64x1xf32>
    %27 = vector.broadcast %26 : vector<64x1xf32> to vector<64x256xf32>
    %28 = arith.mulf %23, %27 : vector<64x256xf32>
    %c0_15 = arith.constant 0 : index
    %c0_16 = arith.constant 0 : index
    %29 = vector.load %arg7[%c0_15, %c0_16] : memref<1x256xf32, #tpu.memory_space<vmem>>, vector<1x256xf32>
    %30 = vector.broadcast %29 : vector<1x256xf32> to vector<64x256xf32>
    %31 = arith.mulf %28, %30 : vector<64x256xf32>
    %c0_17 = arith.constant 0 : index
    %c0_18 = arith.constant 0 : index
    %32 = vector.load %arg8[%c0_17, %c0_18] : memref<1x256xf32, #tpu.memory_space<vmem>>, vector<1x256xf32>
    %33 = vector.broadcast %32 : vector<1x256xf32> to vector<64x256xf32>
    %34 = arith.addf %31, %33 : vector<64x256xf32>
    %cst_19 = arith.constant 0.000000e+00 : f32
    %35 = vector.broadcast %cst_19 : f32 to vector<64x256xf32>
    %36 = arith.maximumf %34, %35 : vector<64x256xf32>
    %37 = arith.truncf %36 : vector<64x256xf32> to vector<64x256xbf16>
    %c0_20 = arith.constant 0 : index
    %c0_21 = arith.constant 0 : index
    %38 = vector.load %arg9[%c0_20, %c0_21] : memref<256x512xbf16, #tpu.memory_space<vmem>>, vector<256x512xbf16>
    %cst_22 = arith.constant dense<0.000000e+00> : vector<64x512xf32>
    %39 = tpu.matmul %37, %38, %cst_22 {dimension_numbers = #tpu.dot_dimension_numbers<[1], [0], [0], [1], [0, 0, 1, 1], [], []>} : vector<64x256xbf16>, vector<256x512xbf16>, vector<64x512xf32> -> vector<64x512xf32>
    %c0_23 = arith.constant 0 : index
    %c0_24 = arith.constant 0 : index
    %40 = vector.load %arg10[%c0_23, %c0_24] : memref<1x512xf32, #tpu.memory_space<vmem>>, vector<1x512xf32>
    %41 = vector.broadcast %40 : vector<1x512xf32> to vector<64x512xf32>
    %42 = arith.addf %39, %41 : vector<64x512xf32>
    %43 = vector.extract_strided_slice %42 {offsets = [0, 0], sizes = [64, 256], strides = [1, 1]} : vector<64x512xf32> to vector<64x256xf32>
    %44 = vector.extract_strided_slice %42 {offsets = [0, 256], sizes = [64, 256], strides = [1, 1]} : vector<64x512xf32> to vector<64x256xf32>
    %45 = arith.subf %1, %43 : vector<64x256xf32>
    %46 = arith.mulf %45, %45 : vector<64x256xf32>
    %cst_25 = arith.constant 0.000000e+00 : f32
    %47 = vector.broadcast %cst_25 : f32 to vector<64x256xf32>
    %48 = arith.subf %47, %44 : vector<64x256xf32>
    %49 = math.exp %48 : vector<64x256xf32>
    %50 = arith.mulf %46, %49 : vector<64x256xf32>
    %cst_26 = arith.constant dense<0.000000e+00> : vector<64xf32>
    %51 = vector.multi_reduction <add>, %50, %cst_26 [1] : vector<64x256xf32> to vector<64xf32>
    %52 = vector.shape_cast %51 : vector<64xf32> to vector<64x1xf32>
    %cst_27 = arith.constant dense<0.000000e+00> : vector<64xf32>
    %53 = vector.multi_reduction <add>, %44, %cst_27 [1] : vector<64x256xf32> to vector<64xf32>
    %54 = vector.shape_cast %53 : vector<64xf32> to vector<64x1xf32>
    %55 = arith.addf %52, %54 : vector<64x1xf32>
    %cst_28 = arith.constant 470.496521 : f32
    %56 = vector.broadcast %cst_28 : f32 to vector<64x1xf32>
    %57 = arith.addf %55, %56 : vector<64x1xf32>
    %cst_29 = arith.constant -5.000000e-01 : f32
    %58 = vector.broadcast %cst_29 : f32 to vector<64x1xf32>
    %59 = arith.mulf %58, %57 : vector<64x1xf32>
    %60 = vector.shape_cast %59 : vector<64x1xf32> to vector<8x8x1xf32>
    %c8_i32 = arith.constant 8 : i32
    %61 = arith.muli %arg1, %c8_i32 : i32
    %62 = tpu.iota {dimensions = array<i32: 0>} : vector<8x8x1xi32>
    %63 = vector.broadcast %61 : i32 to vector<8x8x1xi32>
    %64 = arith.addi %63, %62 : vector<8x8x1xi32>
    %c0_30 = arith.constant 0 : index
    %c0_31 = arith.constant 0 : index
    %65 = vector.load %arg4[%c0_30, %c0_31] : memref<8x1xi32, #tpu.memory_space<vmem>>, vector<8x1xi32>
    %66 = vector.shape_cast %65 : vector<8x1xi32> to vector<1x8x1xi32>
    %c1_i32 = arith.constant 1 : i32
    %67 = vector.broadcast %c1_i32 : i32 to vector<8x8x1xi32>
    %68 = arith.cmpi sge, %64, %67 : vector<8x8x1xi32>
    %69 = vector.broadcast %66 : vector<1x8x1xi32> to vector<8x8x1xi32>
    %70 = arith.cmpi slt, %64, %69 : vector<8x8x1xi32>
    %71 = arith.andi %68, %70 : vector<8x8x1xi1>
    %cst_32 = arith.constant 0.000000e+00 : f32
    %72 = vector.broadcast %cst_32 : f32 to vector<8x8x1xf32>
    %73 = arith.select %71, %60, %72 : vector<8x8x1xi1>, vector<8x8x1xf32>
    %cst_33 = arith.constant dense<0.000000e+00> : vector<8x1xf32>
    %74 = vector.multi_reduction <add>, %73, %cst_33 [0] : vector<8x8x1xf32> to vector<8x1xf32>
    %c0_i32 = arith.constant 0 : i32
    %75 = arith.cmpi eq, %arg1, %c0_i32 : i32
    %76 = arith.extui %75 : i1 to i32
    %c0_i32_34 = arith.constant 0 : i32
    %77 = arith.cmpi ne, %76, %c0_i32_34 : i32
    scf.if %77 {
      %cst_41 = arith.constant 0.000000e+00 : f32
      %84 = vector.broadcast %cst_41 : f32 to vector<8x1xf32>
      %c0_42 = arith.constant 0 : index
      %c0_43 = arith.constant 0 : index
      %85 = vector.load %arg11[%c0_42, %c0_43] : memref<8x1xf32, #tpu.memory_space<vmem>>, vector<8x1xf32>
      tpu.vector_store %arg11[%c0_42, %c0_43], %84 {strides = array<i32>} : memref<8x1xf32, #tpu.memory_space<vmem>>, vector<8x1xf32>,
    } else {
    }
    %c0_35 = arith.constant 0 : index
    %c0_36 = arith.constant 0 : index
    %78 = vector.load %arg11[%c0_35, %c0_36] : memref<8x1xf32, #tpu.memory_space<vmem>>, vector<8x1xf32>
    %79 = arith.addf %78, %74 : vector<8x1xf32>
    %c0_37 = arith.constant 0 : index
    %c0_38 = arith.constant 0 : index
    %80 = vector.load %arg11[%c0_37, %c0_38] : memref<8x1xf32, #tpu.memory_space<vmem>>, vector<8x1xf32>
    tpu.vector_store %arg11[%c0_37, %c0_38], %79 {strides = array<i32>} : memref<8x1xf32, #tpu.memory_space<vmem>>, vector<8x1xf32>,
    %c0_i32_39 = arith.constant 0 : i32
    %81 = arith.cmpi eq, %arg1, %c0_i32_39 : i32
    %82 = arith.extui %81 : i1 to i32
    %c0_i32_40 = arith.constant 0 : i32
    %83 = arith.cmpi ne, %82, %c0_i32_40 : i32
    scf.if %83 {
      %c0_41 = arith.constant 0 : index
      %c0_42 = arith.constant 0 : index
      %84 = vector.load %arg4[%c0_41, %c0_42] : memref<8x1xi32, #tpu.memory_space<vmem>>, vector<8x1xi32>
      %85 = arith.sitofp %84 : vector<8x1xi32> to vector<8x1xf32>
      %cst_43 = arith.constant 1.000000e+00 : f32
      %86 = vector.broadcast %cst_43 : f32 to vector<8x1xf32>
      %87 = arith.maximumf %85, %86 : vector<8x1xf32>
      %c0_44 = arith.constant 0 : index
      %c0_45 = arith.constant 0 : index
      %88 = vector.load %arg11[%c0_44, %c0_45] : memref<8x1xf32, #tpu.memory_space<vmem>>, vector<8x1xf32>
      %89 = arith.divf %88, %87 : vector<8x1xf32>
      %c0_46 = arith.constant 0 : index
      %c0_47 = arith.constant 0 : index
      %90 = vector.load %arg11[%c0_46, %c0_47] : memref<8x1xf32, #tpu.memory_space<vmem>>, vector<8x1xf32>
      tpu.vector_store %arg11[%c0_46, %c0_47], %89 {strides = array<i32>} : memref<8x1xf32, #tpu.memory_space<vmem>>, vector<8x1xf32>,
    } else {
    }
    return
  }
  func.func @transform_0(%arg0: i32, %arg1: i32) -> (i32, i32, i32) {
    %c0_i32 = arith.constant 0 : i32
    %c0_i32_0 = arith.constant 0 : i32
    return %arg1, %arg0, %c0_i32 : i32, i32, i32
  }
  func.func @transform_1(%arg0: i32, %arg1: i32) -> (i32, i32, i32) {
    %c0_i32 = arith.constant 0 : i32
    %c0_i32_0 = arith.constant 0 : i32
    return %arg1, %arg0, %c0_i32 : i32, i32, i32
  }
  func.func @transform_2(%arg0: i32, %arg1: i32) -> (i32, i32) {
    %c0_i32 = arith.constant 0 : i32
    %c0_i32_0 = arith.constant 0 : i32
    return %arg0, %c0_i32 : i32, i32
  }
  func.func @transform_3(%arg0: i32, %arg1: i32) -> (i32, i32) {
    %c0_i32 = arith.constant 0 : i32
    %c0_i32_0 = arith.constant 0 : i32
    %c0_i32_1 = arith.constant 0 : i32
    return %c0_i32, %c0_i32_0 : i32, i32
  }
  func.func @transform_4(%arg0: i32, %arg1: i32) -> (i32, i32) {
    %c0_i32 = arith.constant 0 : i32
    %c0_i32_0 = arith.constant 0 : i32
    %c0_i32_1 = arith.constant 0 : i32
    return %c0_i32, %c0_i32_0 : i32, i32
  }
  func.func @transform_5(%arg0: i32, %arg1: i32) -> (i32, i32) {
    %c0_i32 = arith.constant 0 : i32
    %c0_i32_0 = arith.constant 0 : i32
    %c0_i32_1 = arith.constant 0 : i32
    return %c0_i32, %c0_i32_0 : i32, i32
  }
  func.func @transform_6(%arg0: i32, %arg1: i32) -> (i32, i32) {
    %c0_i32 = arith.constant 0 : i32
    %c0_i32_0 = arith.constant 0 : i32
    %c0_i32_1 = arith.constant 0 : i32
    return %c0_i32, %c0_i32_0 : i32, i32
  }
  func.func @transform_7(%arg0: i32, %arg1: i32) -> (i32, i32) {
    %c0_i32 = arith.constant 0 : i32
    %c0_i32_0 = arith.constant 0 : i32
    %c0_i32_1 = arith.constant 0 : i32
    return %c0_i32, %c0_i32_0 : i32, i32
  }
  func.func @transform_8(%arg0: i32, %arg1: i32) -> (i32, i32) {
    %c0_i32 = arith.constant 0 : i32
    %c0_i32_0 = arith.constant 0 : i32
    %c0_i32_1 = arith.constant 0 : i32
    return %c0_i32, %c0_i32_0 : i32, i32
  }
  func.func @transform_9(%arg0: i32, %arg1: i32) -> (i32, i32) {
    %c0_i32 = arith.constant 0 : i32
    %c0_i32_0 = arith.constant 0 : i32
    return %arg0, %c0_i32 : i32, i32
  }
}

</mosaic_0001>

<llo_original>
// kernel: rnn_forward.4
$region0: #{rnn_forward.4}
  #allocation0 [shape = 'u32[]', space=smem, size = 0x4, offset = 0x4, fixed_abs, tag = 'smem constant byte address 0x4 - core index']
  #allocation1 [shape = 'u32[72,128]{1,0:T(1,128)}', space=vmem, size = 0x9000, scoped, tag = 'internal scratch']
  #allocation2 [shape = 'f32[8,128]{1,0:T(8,128)}', space=vmem, size = 0x1000, scoped, tag = 'scratch operand']
  %s0 = inlined_call_operand.vmem [shape: f32[8,8,384], index: 0, kind: input, shape index: {}]
  %s1 = inlined_call_operand.vmem [shape: f32[8,128], index: 1, kind: input, shape index: {}]
  %s2 = inlined_call_operand.vmem [shape: bf16[128,384], index: 2, kind: input, shape index: {}]
  %s3 = inlined_call_operand.vmem [shape: f32[1,384], index: 3, kind: input, shape index: {}]
  %s4 = inlined_call_operand.vmem [shape: bf16[8,8,128], index: 4, kind: output, shape index: {}]
  %s5 = sld [smem:[#allocation0]]
  $region30: #{rnn_forward.4} parent=0
    _
  %s7 = ssub.s32 1, %s5
  %s8 = scalar_select 0, %s7, %s5
  // Predicated region
  $region2: #{rnn_forward.4} parent=0 // pred_check
    _
  $region3: #{rnn_forward.4} parent=0 // pred_check_branch
    %10 = sbr.rel (0) target = $region5
  $region4: #{rnn_forward.4} parent=0 // pred_region
    _
  $region5: #{rnn_forward.4} parent=0 // pred_fallthru
    _
  // Predicated region
  $region6: #{rnn_forward.4} parent=0 // pred_check
    _
  $region7: #{rnn_forward.4} parent=0 // pred_check_branch
    %12 = sbr.rel (0) target = $region9
  $region8: #{rnn_forward.4} parent=0 // pred_region
    _
  $region9: #{rnn_forward.4} parent=0 // pred_fallthru
    _
  // Predicated region
  $region10: #{rnn_forward.4} parent=0 // pred_check
    _
  $region11: #{rnn_forward.4} parent=0 // pred_check_branch
    %14 = sbr.rel (0) target = $region13
  $region12: #{rnn_forward.4} parent=0 // pred_region
    _
  $region13: #{rnn_forward.4} parent=0 // pred_fallthru
    _
  // Predicated region
  $region14: #{rnn_forward.4} parent=0 // pred_check
    _
  $region15: #{rnn_forward.4} parent=0 // pred_check_branch
    %16 = sbr.rel (0) target = $region17
  $region16: #{rnn_forward.4} parent=0 // pred_region
    _
  $region17: #{rnn_forward.4} parent=0 // pred_fallthru
    _
  %p17 = scmp.eq.s32.totalorder 0, 0
  // Predicated region
  $region18: #{rnn_forward.4} parent=0 // pred_check
    %p18 = pneg %p17
  $region19: #{rnn_forward.4} parent=0 // pred_check_branch
    %20 = sbr.rel (%p18) target = $region21
  $region20: #{rnn_forward.4} parent=0 // pred_region
    %v21 = vld [vmem:[%s1] sm:$0xff]
    %22 = vst [vmem:[#allocation2] sm:$0xff] %v21
  $region21: #{rnn_forward.4} parent=0 // pred_fallthru
    _
  %v23 = vld [vmem:[%s2] sm:$0xff]
  %v24 = vld [vmem:[%s2 + $0x8] sm:$0xf]
  %v25 = vld [vmem:[%s2 + $0xc] sm:$0xff]
  %v26 = vld [vmem:[%s2 + $0x14] sm:$0xf]
  %v27 = vld [vmem:[%s2 + $0x18] sm:$0xff]
  %v28 = vld [vmem:[%s2 + $0x20] sm:$0xf]
  %v29 = vld [vmem:[%s2 + $0x24] sm:$0xff]
  %v30 = vld [vmem:[%s2 + $0x2c] sm:$0xf]
  %v31 = vld [vmem:[%s2 + $0x30] sm:$0xff]
  %v32 = vld [vmem:[%s2 + $0x38] sm:$0xf]
  %v33 = vld [vmem:[%s2 + $0x3c] sm:$0xff]
  %v34 = vld [vmem:[%s2 + $0x44] sm:$0xf]
  %v35 = vld [vmem:[%s2 + $0x48] sm:$0xff]
  %v36 = vld [vmem:[%s2 + $0x50] sm:$0xf]
  %v37 = vld [vmem:[%s2 + $0x54] sm:$0xff]
  %v38 = vld [vmem:[%s2 + $0x5c] sm:$0xf]
  %v39 = vld [vmem:[%s2 + $0x60] sm:$0xff]
  %v40 = vld [vmem:[%s2 + $0x68] sm:$0xf]
  %v41 = vld [vmem:[%s2 + $0x6c] sm:$0xff]
  %v42 = vld [vmem:[%s2 + $0x74] sm:$0xf]
  %v43 = vld [vmem:[%s2 + $0x78] sm:$0xff]
  %v44 = vld [vmem:[%s2 + $0x80] sm:$0xf]
  %v45 = vld [vmem:[%s2 + $0x84] sm:$0xff]
  %v46 = vld [vmem:[%s2 + $0x8c] sm:$0xf]
  %v47 = vld [vmem:[%s2 + $0x90] sm:$0xff]
  %v48 = vld [vmem:[%s2 + $0x98] sm:$0xf]
  %v49 = vld [vmem:[%s2 + $0x9c] sm:$0xff]
  %v50 = vld [vmem:[%s2 + $0xa4] sm:$0xf]
  %v51 = vld [vmem:[%s2 + $0xa8] sm:$0xff]
  %v52 = vld [vmem:[%s2 + $0xb0] sm:$0xf]
  %v53 = vld [vmem:[%s2 + $0xb4] sm:$0xff]
  %v54 = vld [vmem:[%s2 + $0xbc] sm:$0xf]
  %v55 = vld [vmem:[%s3] sm:$0x7]
  %v56 = vld [vmem:[#allocation2] sm:$0xff]
  %v57 = vld [vmem:[%s0] sm:$0xff]
  %v58 = vld [vmem:[%s0 + $0x8] sm:$0xff]
  %v59 = vld [vmem:[%s0 + $0x10] sm:$0xff]
  %v60 = vpack.c.bf16 %v56, %v56
  %v62 = vperm.slane %v55, 0
  %v63 = vperm.slane %v55, 1
  %v64 = vperm.slane %v55, 2
  %v100 = vunpack.c.l.b16 %v23
  %v101 = vunpack.c.h.b16 %v23
  %v102 = vunpack.c.l.b16 %v24
  %v103 = vunpack.c.l.b16 %v25
  %v104 = vunpack.c.h.b16 %v25
  %v105 = vunpack.c.l.b16 %v26
  %v106 = vunpack.c.l.b16 %v27
  %v107 = vunpack.c.h.b16 %v27
  %v108 = vunpack.c.l.b16 %v28
  %v109 = vunpack.c.l.b16 %v29
  %v110 = vunpack.c.h.b16 %v29
  %v111 = vunpack.c.l.b16 %v30
  %v112 = vunpack.c.l.b16 %v31
  %v113 = vunpack.c.h.b16 %v31
  %v114 = vunpack.c.l.b16 %v32
  %v115 = vunpack.c.l.b16 %v33
  %v116 = vunpack.c.h.b16 %v33
  %v117 = vunpack.c.l.b16 %v34
  %v118 = vunpack.c.l.b16 %v35
  %v119 = vunpack.c.h.b16 %v35
  %v120 = vunpack.c.l.b16 %v36
  %v121 = vunpack.c.l.b16 %v37
  %v122 = vunpack.c.h.b16 %v37
  %v123 = vunpack.c.l.b16 %v38
  %v124 = vunpack.c.l.b16 %v39
  %v125 = vunpack.c.h.b16 %v39
  %v126 = vunpack.c.l.b16 %v40
  %v127 = vunpack.c.l.b16 %v41
  %v128 = vunpack.c.h.b16 %v41
  %v129 = vunpack.c.l.b16 %v42
  %v130 = vunpack.c.l.b16 %v43
  %v131 = vunpack.c.h.b16 %v43
  %v132 = vunpack.c.l.b16 %v44
  %v133 = vunpack.c.l.b16 %v45
  %v134 = vunpack.c.h.b16 %v45
  %v135 = vunpack.c.l.b16 %v46
  %v136 = vunpack.c.l.b16 %v47
  %v137 = vunpack.c.h.b16 %v47
  %v138 = vunpack.c.l.b16 %v48
  %v139 = vunpack.c.l.b16 %v49
  %v140 = vunpack.c.h.b16 %v49
  %v141 = vunpack.c.l.b16 %v50
  %v142 = vunpack.c.l.b16 %v51
  %v143 = vunpack.c.h.b16 %v51
  %v144 = vunpack.c.l.b16 %v52
  %v145 = vunpack.c.l.b16 %v53
  %v146 = vunpack.c.h.b16 %v53
  %v147 = vunpack.c.l.b16 %v54
  %v148 = vpack.c.b16 %v103, %v100
  %v149 = vpack.c.b16 %v104, %v101
  %v150 = vpack.c.b16 %v105, %v102
  %v151 = vpack.c.b16 %v109, %v106
  %v152 = vpack.c.b16 %v110, %v107
  %v153 = vpack.c.b16 %v111, %v108
  %v154 = vpack.c.b16 %v115, %v112
  %v155 = vpack.c.b16 %v116, %v113
  %v156 = vpack.c.b16 %v117, %v114
  %v157 = vpack.c.b16 %v121, %v118
  %v158 = vpack.c.b16 %v122, %v119
  %v159 = vpack.c.b16 %v123, %v120
  %v160 = vpack.c.b16 %v127, %v124
  %v161 = vpack.c.b16 %v128, %v125
  %v162 = vpack.c.b16 %v129, %v126
  %v163 = vpack.c.b16 %v133, %v130
  %v164 = vpack.c.b16 %v134, %v131
  %v165 = vpack.c.b16 %v135, %v132
  %v166 = vpack.c.b16 %v139, %v136
  %v167 = vpack.c.b16 %v140, %v137
  %v168 = vpack.c.b16 %v141, %v138
  %v169 = vpack.c.b16 %v145, %v142
  %v170 = vpack.c.b16 %v146, %v143
  %v171 = vpack.c.b16 %v147, %v144
  %196 = vmatpush.bf16.msra.mxu0 %v169
  %197 = vmatpush.bf16.msra.mxu0 %v166
  %198 = vmatpush.bf16.msra.mxu0 %v163
  %199 = vmatpush.bf16.msra.mxu0 %v160
  %200 = vmatpush.bf16.msra.mxu0 %v157
  %201 = vmatpush.bf16.msra.mxu0 %v154
  %202 = vmatpush.bf16.msra.mxu0 %v151
  %203 = vmatpush.bf16.msra.mxu0 %v148
  %204 = vmatmul.bf16.gmra.mxu0 %v60
  %v205 = vpop.f32.mrf.mxu0
  %v206 = vadd.f32 %v62, %v205
  %v207 = vpop.f32.mrf.mxu0
  %208 = vdwg.mxu0
  %209 = vmatpush.bf16.msra.mxu0 %v170
  %210 = vmatpush.bf16.msra.mxu0 %v167
  %211 = vmatpush.bf16.msra.mxu0 %v164
  %212 = vmatpush.bf16.msra.mxu0 %v161
  %213 = vmatpush.bf16.msra.mxu0 %v158
  %214 = vmatpush.bf16.msra.mxu0 %v155
  %215 = vmatpush.bf16.msra.mxu0 %v152
  %216 = vmatpush.bf16.msra.mxu0 %v149
  %217 = vmatmul.bf16.gmra.mxu0 %v60
  %v218 = vpop.f32.mrf.mxu0
  %v219 = vadd.f32 %v63, %v218
  %v220 = vpop.f32.mrf.mxu0
  %221 = vdwg.mxu0
  %222 = vmatpush.bf16.msra.mxu0 %v171
  %223 = vmatpush.bf16.msra.mxu0 %v168
  %224 = vmatpush.bf16.msra.mxu0 %v165
  %225 = vmatpush.bf16.msra.mxu0 %v162
  %226 = vmatpush.bf16.msra.mxu0 %v159
  %227 = vmatpush.bf16.msra.mxu0 %v156
  %228 = vmatpush.bf16.msra.mxu0 %v153
  %229 = vmatpush.bf16.msra.mxu0 %v150
  %230 = vmatmul.bf16.gmra.mxu0 %v60
  %v231 = vpop.f32.mrf.mxu0
  %v232 = vadd.f32 %v64, %v231
  %v233 = vpop.f32.mrf.mxu0
  %234 = vdwg.mxu0
  %v235 = vadd.f32 %v57, %v206
  %v236 = vxor.u32 %v235, 2147483648
  %v237 = vmul.f32 %v236, 1.442695
  %v238 = vpow.pop %v237
  %v239 = vadd.f32 %v238, 1.0
  %v240 = vrcp.pop %v239
  %v241 = vmul.f32 %v239, %v240
  %v242 = vsub.f32 1.0, %v241
  %v243 = vmul.f32 %v240, %v242
  %v244 = vadd.f32 %v240, %v243
  %vm245 = vweird.f32 %v239
  %vm246 = vweird.f32 %v240
  %vm247 = vmor %vm245, %vm246
  %v248 = vsel %vm247, %v240, %v244
  %v249 = vand.u32 2147483647, %v239
  %vm250 = vcmp.eq.f32.partialorder %v249, 8.507059e+37
  %v251 = vand.u32 %v239, 2147483648
  %v252 = vor.u32 1.1754944e-38, %v251
  %v253 = vsel %vm250, %v252, %v248
  %v254 = vmul.f32 1.0, %v253
  %v255 = vadd.f32 %v58, %v219
  %v256 = vxor.u32 %v255, 2147483648
  %v257 = vmul.f32 %v256, 1.442695
  %v258 = vpow.pop %v257
  %v259 = vadd.f32 %v258, 1.0
  %v260 = vrcp.pop %v259
  %v261 = vmul.f32 %v259, %v260
  %v262 = vsub.f32 1.0, %v261
  %v263 = vmul.f32 %v260, %v262
  %v264 = vadd.f32 %v260, %v263
  %vm265 = vweird.f32 %v259
  %vm266 = vweird.f32 %v260
  %vm267 = vmor %vm265, %vm266
  %v268 = vsel %vm267, %v260, %v264
  %v269 = vand.u32 2147483647, %v259
  %vm270 = vcmp.eq.f32.partialorder %v269, 8.507059e+37
  %v271 = vand.u32 %v259, 2147483648
  %v272 = vor.u32 1.1754944e-38, %v271
  %v273 = vsel %vm270, %v272, %v268
  %v274 = vmul.f32 1.0, %v273
  %v275 = vmul.f32 %v254, %v232
  %v276 = vadd.f32 %v59, %v275
  %v277 = vtanh.pop %v276
  %v278 = vsub.f32 1.0, %v274
  %v279 = vmul.f32 %v278, %v277
  %v280 = vmul.f32 %v274, %v56
  %v281 = vadd.f32 %v279, %v280
  %v282 = vpack.c.bf16 %v281, %v281
  %283 = vst [vmem:[%s4] sm:$0xf] %v282
  %s284 = scalar_lea.vmem %s0, 24
  %v285 = vld [vmem:[%s284] sm:$0xff]
  %v286 = vld [vmem:[%s284 + $0x8] sm:$0xff]
  %v287 = vld [vmem:[%s284 + $0x10] sm:$0xff]
  %288 = vmatpush.bf16.msra.mxu0 %v169
  %289 = vmatpush.bf16.msra.mxu0 %v166
  %290 = vmatpush.bf16.msra.mxu0 %v163
  %291 = vmatpush.bf16.msra.mxu0 %v160
  %292 = vmatpush.bf16.msra.mxu0 %v157
  %293 = vmatpush.bf16.msra.mxu0 %v154
  %294 = vmatpush.bf16.msra.mxu0 %v151
  %295 = vmatpush.bf16.msra.mxu0 %v148
  %296 = vmatmul.bf16.gmra.mxu0 %v282
  %v297 = vpop.f32.mrf.mxu0
  %v298 = vadd.f32 %v62, %v297
  %v299 = vpop.f32.mrf.mxu0
  %300 = vdwg.mxu0
  %301 = vmatpush.bf16.msra.mxu0 %v170
  %302 = vmatpush.bf16.msra.mxu0 %v167
  %303 = vmatpush.bf16.msra.mxu0 %v164
  %304 = vmatpush.bf16.msra.mxu0 %v161
  %305 = vmatpush.bf16.msra.mxu0 %v158
  %306 = vmatpush.bf16.msra.mxu0 %v155
  %307 = vmatpush.bf16.msra.mxu0 %v152
  %308 = vmatpush.bf16.msra.mxu0 %v149
  %309 = vmatmul.bf16.gmra.mxu0 %v282
  %v310 = vpop.f32.mrf.mxu0
  %v311 = vadd.f32 %v63, %v310
  %v312 = vpop.f32.mrf.mxu0
  %313 = vdwg.mxu0
  %314 = vmatpush.bf16.msra.mxu0 %v171
  %315 = vmatpush.bf16.msra.mxu0 %v168
  %316 = vmatpush.bf16.msra.mxu0 %v165
  %317 = vmatpush.bf16.msra.mxu0 %v162
  %318 = vmatpush.bf16.msra.mxu0 %v159
  %319 = vmatpush.bf16.msra.mxu0 %v156
  %320 = vmatpush.bf16.msra.mxu0 %v153
  %321 = vmatpush.bf16.msra.mxu0 %v150
  %322 = vmatmul.bf16.gmra.mxu0 %v282
  %v323 = vpop.f32.mrf.mxu0
  %v324 = vadd.f32 %v64, %v323
  %v325 = vpop.f32.mrf.mxu0
  %326 = vdwg.mxu0
  %v327 = vadd.f32 %v285, %v298
  %v328 = vxor.u32 %v327, 2147483648
  %v329 = vmul.f32 %v328, 1.442695
  %v330 = vpow.pop %v329
  %v331 = vadd.f32 %v330, 1.0
  %v332 = vrcp.pop %v331
  %v333 = vmul.f32 %v331, %v332
  %v334 = vsub.f32 1.0, %v333
  %v335 = vmul.f32 %v332, %v334
  %v336 = vadd.f32 %v332, %v335
  %vm337 = vweird.f32 %v331
  %vm338 = vweird.f32 %v332
  %vm339 = vmor %vm337, %vm338
  %v340 = vsel %vm339, %v332, %v336
  %v341 = vand.u32 2147483647, %v331
  %vm342 = vcmp.eq.f32.partialorder %v341, 8.507059e+37
  %v343 = vand.u32 %v331, 2147483648
  %v344 = vor.u32 1.1754944e-38, %v343
  %v345 = vsel %vm342, %v344, %v340
  %v346 = vmul.f32 1.0, %v345
  %v347 = vadd.f32 %v286, %v311
  %v348 = vxor.u32 %v347, 2147483648
  %v349 = vmul.f32 %v348, 1.442695
  %v350 = vpow.pop %v349
  %v351 = vadd.f32 %v350, 1.0
  %v352 = vrcp.pop %v351
  %v353 = vmul.f32 %v351, %v352
  %v354 = vsub.f32 1.0, %v353
  %v355 = vmul.f32 %v352, %v354
  %v356 = vadd.f32 %v352, %v355
  %vm357 = vweird.f32 %v351
  %vm358 = vweird.f32 %v352
  %vm359 = vmor %vm357, %vm358
  %v360 = vsel %vm359, %v352, %v356
  %v361 = vand.u32 2147483647, %v351
  %vm362 = vcmp.eq.f32.partialorder %v361, 8.507059e+37
  %v363 = vand.u32 %v351, 2147483648
  %v364 = vor.u32 1.1754944e-38, %v363
  %v365 = vsel %vm362, %v364, %v360
  %v366 = vmul.f32 1.0, %v365
  %v367 = vmul.f32 %v346, %v324
  %v368 = vadd.f32 %v287, %v367
  %v369 = vtanh.pop %v368
  %v370 = vsub.f32 1.0, %v366
  %v371 = vmul.f32 %v370, %v369
  %v372 = vmul.f32 %v366, %v281
  %v373 = vadd.f32 %v371, %v372
  %v374 = vpack.c.bf16 %v373, %v373
  %s375 = scalar_lea.vmem %s4, 4
  %376 = vst [vmem:[%s375] sm:$0xf] %v374
  %s377 = scalar_lea.vmem %s0, 48
  %v378 = vld [vmem:[%s377] sm:$0xff]
  %v379 = vld [vmem:[%s377 + $0x8] sm:$0xff]
  %v380 = vld [vmem:[%s377 + $0x10] sm:$0xff]
  %381 = vmatpush.bf16.msra.mxu0 %v169
  %382 = vmatpush.bf16.msra.mxu0 %v166
  %383 = vmatpush.bf16.msra.mxu0 %v163
  %384 = vmatpush.bf16.msra.mxu0 %v160
  %385 = vmatpush.bf16.msra.mxu0 %v157
  %386 = vmatpush.bf16.msra.mxu0 %v154
  %387 = vmatpush.bf16.msra.mxu0 %v151
  %388 = vmatpush.bf16.msra.mxu0 %v148
  %389 = vmatmul.bf16.gmra.mxu0 %v374
  %v390 = vpop.f32.mrf.mxu0
  %v391 = vadd.f32 %v62, %v390
  %v392 = vpop.f32.mrf.mxu0
  %393 = vdwg.mxu0
  %394 = vmatpush.bf16.msra.mxu0 %v170
  %395 = vmatpush.bf16.msra.mxu0 %v167
  %396 = vmatpush.bf16.msra.mxu0 %v164
  %397 = vmatpush.bf16.msra.mxu0 %v161
  %398 = vmatpush.bf16.msra.mxu0 %v158
  %399 = vmatpush.bf16.msra.mxu0 %v155
  %400 = vmatpush.bf16.msra.mxu0 %v152
  %401 = vmatpush.bf16.msra.mxu0 %v149
  %402 = vmatmul.bf16.gmra.mxu0 %v374
  %v403 = vpop.f32.mrf.mxu0
  %v404 = vadd.f32 %v63, %v403
  %v405 = vpop.f32.mrf.mxu0
  %406 = vdwg.mxu0
  %407 = vmatpush.bf16.msra.mxu0 %v171
  %408 = vmatpush.bf16.msra.mxu0 %v168
  %409 = vmatpush.bf16.msra.mxu0 %v165
  %410 = vmatpush.bf16.msra.mxu0 %v162
  %411 = vmatpush.bf16.msra.mxu0 %v159
  %412 = vmatpush.bf16.msra.mxu0 %v156
  %413 = vmatpush.bf16.msra.mxu0 %v153
  %414 = vmatpush.bf16.msra.mxu0 %v150
  %415 = vmatmul.bf16.gmra.mxu0 %v374
  %v416 = vpop.f32.mrf.mxu0
  %v417 = vadd.f32 %v64, %v416
  %v418 = vpop.f32.mrf.mxu0
  %419 = vdwg.mxu0
  %v420 = vadd.f32 %v378, %v391
  %v421 = vxor.u32 %v420, 2147483648
  %v422 = vmul.f32 %v421, 1.442695
  %v423 = vpow.pop %v422
  %v424 = vadd.f32 %v423, 1.0
  %v425 = vrcp.pop %v424
  %v426 = vmul.f32 %v424, %v425
  %v427 = vsub.f32 1.0, %v426
  %v428 = vmul.f32 %v425, %v427
  %v429 = vadd.f32 %v425, %v428
  %vm430 = vweird.f32 %v424
  %vm431 = vweird.f32 %v425
  %vm432 = vmor %vm430, %vm431
  %v433 = vsel %vm432, %v425, %v429
  %v434 = vand.u32 2147483647, %v424
  %vm435 = vcmp.eq.f32.partialorder %v434, 8.507059e+37
  %v436 = vand.u32 %v424, 2147483648
  %v437 = vor.u32 1.1754944e-38, %v436
  %v438 = vsel %vm435, %v437, %v433
  %v439 = vmul.f32 1.0, %v438
  %v440 = vadd.f32 %v379, %v404
  %v441 = vxor.u32 %v440, 2147483648
  %v442 = vmul.f32 %v441, 1.442695
  %v443 = vpow.pop %v442
  %v444 = vadd.f32 %v443, 1.0
  %v445 = vrcp.pop %v444
  %v446 = vmul.f32 %v444, %v445
  %v447 = vsub.f32 1.0, %v446
  %v448 = vmul.f32 %v445, %v447
  %v449 = vadd.f32 %v445, %v448
  %vm450 = vweird.f32 %v444
  %vm451 = vweird.f32 %v445
  %vm452 = vmor %vm450, %vm451
  %v453 = vsel %vm452, %v445, %v449
  %v454 = vand.u32 2147483647, %v444
  %vm455 = vcmp.eq.f32.partialorder %v454, 8.507059e+37
  %v456 = vand.u32 %v444, 2147483648
  %v457 = vor.u32 1.1754944e-38, %v456
  %v458 = vsel %vm455, %v457, %v453
  %v459 = vmul.f32 1.0, %v458
  %v460 = vmul.f32 %v439, %v417
  %v461 = vadd.f32 %v380, %v460
  %v462 = vtanh.pop %v461
  %v463 = vsub.f32 1.0, %v459
  %v464 = vmul.f32 %v463, %v462
  %v465 = vmul.f32 %v459, %v373
  %v466 = vadd.f32 %v464, %v465
  %v467 = vpack.c.bf16 %v466, %v466
  %s468 = scalar_lea.vmem %s4, 8
  %469 = vst [vmem:[%s468] sm:$0xf] %v467
  %s470 = scalar_lea.vmem %s0, 72
  %v471 = vld [vmem:[%s470] sm:$0xff]
  %v472 = vld [vmem:[%s470 + $0x8] sm:$0xff]
  %v473 = vld [vmem:[%s470 + $0x10] sm:$0xff]
  %474 = vmatpush.bf16.msra.mxu0 %v169
  %475 = vmatpush.bf16.msra.mxu0 %v166
  %476 = vmatpush.bf16.msra.mxu0 %v163
  %477 = vmatpush.bf16.msra.mxu0 %v160
  %478 = vmatpush.bf16.msra.mxu0 %v157
  %479 = vmatpush.bf16.msra.mxu0 %v154
  %480 = vmatpush.bf16.msra.mxu0 %v151
  %481 = vmatpush.bf16.msra.mxu0 %v148
  %482 = vmatmul.bf16.gmra.mxu0 %v467
  %v483 = vpop.f32.mrf.mxu0
  %v484 = vadd.f32 %v62, %v483
  %v485 = vpop.f32.mrf.mxu0
  %486 = vdwg.mxu0
  %487 = vmatpush.bf16.msra.mxu0 %v170
  %488 = vmatpush.bf16.msra.mxu0 %v167
  %489 = vmatpush.bf16.msra.mxu0 %v164
  %490 = vmatpush.bf16.msra.mxu0 %v161
  %491 = vmatpush.bf16.msra.mxu0 %v158
  %492 = vmatpush.bf16.msra.mxu0 %v155
  %493 = vmatpush.bf16.msra.mxu0 %v152
  %494 = vmatpush.bf16.msra.mxu0 %v149
  %495 = vmatmul.bf16.gmra.mxu0 %v467
  %v496 = vpop.f32.mrf.mxu0
  %v497 = vadd.f32 %v63, %v496
  %v498 = vpop.f32.mrf.mxu0
  %499 = vdwg.mxu0
  %500 = vmatpush.bf16.msra.mxu0 %v171
  %501 = vmatpush.bf16.msra.mxu0 %v168
  %502 = vmatpush.bf16.msra.mxu0 %v165
  %503 = vmatpush.bf16.msra.mxu0 %v162
  %504 = vmatpush.bf16.msra.mxu0 %v159
  %505 = vmatpush.bf16.msra.mxu0 %v156
  %506 = vmatpush.bf16.msra.mxu0 %v153
  %507 = vmatpush.bf16.msra.mxu0 %v150
  %508 = vmatmul.bf16.gmra.mxu0 %v467
  %v509 = vpop.f32.mrf.mxu0
  %v510 = vadd.f32 %v64, %v509
  %v511 = vpop.f32.mrf.mxu0
  %512 = vdwg.mxu0
  %v513 = vadd.f32 %v471, %v484
  %v514 = vxor.u32 %v513, 2147483648
  %v515 = vmul.f32 %v514, 1.442695
  %v516 = vpow.pop %v515
  %v517 = vadd.f32 %v516, 1.0
  %v518 = vrcp.pop %v517
  %v519 = vmul.f32 %v517, %v518
  %v520 = vsub.f32 1.0, %v519
  %v521 = vmul.f32 %v518, %v520
  %v522 = vadd.f32 %v518, %v521
  %vm523 = vweird.f32 %v517
  %vm524 = vweird.f32 %v518
  %vm525 = vmor %vm523, %vm524
  %v526 = vsel %vm525, %v518, %v522
  %v527 = vand.u32 2147483647, %v517
  %vm528 = vcmp.eq.f32.partialorder %v527, 8.507059e+37
  %v529 = vand.u32 %v517, 2147483648
  %v530 = vor.u32 1.1754944e-38, %v529
  %v531 = vsel %vm528, %v530, %v526
  %v532 = vmul.f32 1.0, %v531
  %v533 = vadd.f32 %v472, %v497
  %v534 = vxor.u32 %v533, 2147483648
  %v535 = vmul.f32 %v534, 1.442695
  %v536 = vpow.pop %v535
  %v537 = vadd.f32 %v536, 1.0
  %v538 = vrcp.pop %v537
  %v539 = vmul.f32 %v537, %v538
  %v540 = vsub.f32 1.0, %v539
  %v541 = vmul.f32 %v538, %v540
  %v542 = vadd.f32 %v538, %v541
  %vm543 = vweird.f32 %v537
  %vm544 = vweird.f32 %v538
  %vm545 = vmor %vm543, %vm544
  %v546 = vsel %vm545, %v538, %v542
  %v547 = vand.u32 2147483647, %v537
  %vm548 = vcmp.eq.f32.partialorder %v547, 8.507059e+37
  %v549 = vand.u32 %v537, 2147483648
  %v550 = vor.u32 1.1754944e-38, %v549
  %v551 = vsel %vm548, %v550, %v546
  %v552 = vmul.f32 1.0, %v551
  %v553 = vmul.f32 %v532, %v510
  %v554 = vadd.f32 %v473, %v553
  %v555 = vtanh.pop %v554
  %v556 = vsub.f32 1.0, %v552
  %v557 = vmul.f32 %v556, %v555
  %v558 = vmul.f32 %v552, %v466
  %v559 = vadd.f32 %v557, %v558
  %v560 = vpack.c.bf16 %v559, %v559
  %s561 = scalar_lea.vmem %s4, 12
  %562 = vst [vmem:[%s561] sm:$0xf] %v560
  %s563 = scalar_lea.vmem %s0, 96
  %v564 = vld [vmem:[%s563] sm:$0xff]
  %v565 = vld [vmem:[%s563 + $0x8] sm:$0xff]
  %v566 = vld [vmem:[%s563 + $0x10] sm:$0xff]
  %567 = vmatpush.bf16.msra.mxu0 %v169
  %568 = vmatpush.bf16.msra.mxu0 %v166
  %569 = vmatpush.bf16.msra.mxu0 %v163
  %570 = vmatpush.bf16.msra.mxu0 %v160
  %571 = vmatpush.bf16.msra.mxu0 %v157
  %572 = vmatpush.bf16.msra.mxu0 %v154
  %573 = vmatpush.bf16.msra.mxu0 %v151
  %574 = vmatpush.bf16.msra.mxu0 %v148
  %575 = vmatmul.bf16.gmra.mxu0 %v560
  %v576 = vpop.f32.mrf.mxu0
  %v577 = vadd.f32 %v62, %v576
  %v578 = vpop.f32.mrf.mxu0
  %579 = vdwg.mxu0
  %580 = vmatpush.bf16.msra.mxu0 %v170
  %581 = vmatpush.bf16.msra.mxu0 %v167
  %582 = vmatpush.bf16.msra.mxu0 %v164
  %583 = vmatpush.bf16.msra.mxu0 %v161
  %584 = vmatpush.bf16.msra.mxu0 %v158
  %585 = vmatpush.bf16.msra.mxu0 %v155
  %586 = vmatpush.bf16.msra.mxu0 %v152
  %587 = vmatpush.bf16.msra.mxu0 %v149
  %588 = vmatmul.bf16.gmra.mxu0 %v560
  %v589 = vpop.f32.mrf.mxu0
  %v590 = vadd.f32 %v63, %v589
  %v591 = vpop.f32.mrf.mxu0
  %592 = vdwg.mxu0
  %593 = vmatpush.bf16.msra.mxu0 %v171
  %594 = vmatpush.bf16.msra.mxu0 %v168
  %595 = vmatpush.bf16.msra.mxu0 %v165
  %596 = vmatpush.bf16.msra.mxu0 %v162
  %597 = vmatpush.bf16.msra.mxu0 %v159
  %598 = vmatpush.bf16.msra.mxu0 %v156
  %599 = vmatpush.bf16.msra.mxu0 %v153
  %600 = vmatpush.bf16.msra.mxu0 %v150
  %601 = vmatmul.bf16.gmra.mxu0 %v560
  %v602 = vpop.f32.mrf.mxu0
  %v603 = vadd.f32 %v64, %v602
  %v604 = vpop.f32.mrf.mxu0
  %605 = vdwg.mxu0
  %v606 = vadd.f32 %v564, %v577
  %v607 = vxor.u32 %v606, 2147483648
  %v608 = vmul.f32 %v607, 1.442695
  %v609 = vpow.pop %v608
  %v610 = vadd.f32 %v609, 1.0
  %v611 = vrcp.pop %v610
  %v612 = vmul.f32 %v610, %v611
  %v613 = vsub.f32 1.0, %v612
  %v614 = vmul.f32 %v611, %v613
  %v615 = vadd.f32 %v611, %v614
  %vm616 = vweird.f32 %v610
  %vm617 = vweird.f32 %v611
  %vm618 = vmor %vm616, %vm617
  %v619 = vsel %vm618, %v611, %v615
  %v620 = vand.u32 2147483647, %v610
  %vm621 = vcmp.eq.f32.partialorder %v620, 8.507059e+37
  %v622 = vand.u32 %v610, 2147483648
  %v623 = vor.u32 1.1754944e-38, %v622
  %v624 = vsel %vm621, %v623, %v619
  %v625 = vmul.f32 1.0, %v624
  %v626 = vadd.f32 %v565, %v590
  %v627 = vxor.u32 %v626, 2147483648
  %v628 = vmul.f32 %v627, 1.442695
  %v629 = vpow.pop %v628
  %v630 = vadd.f32 %v629, 1.0
  %v631 = vrcp.pop %v630
  %v632 = vmul.f32 %v630, %v631
  %v633 = vsub.f32 1.0, %v632
  %v634 = vmul.f32 %v631, %v633
  %v635 = vadd.f32 %v631, %v634
  %vm636 = vweird.f32 %v630
  %vm637 = vweird.f32 %v631
  %vm638 = vmor %vm636, %vm637
  %v639 = vsel %vm638, %v631, %v635
  %v640 = vand.u32 2147483647, %v630
  %vm641 = vcmp.eq.f32.partialorder %v640, 8.507059e+37
  %v642 = vand.u32 %v630, 2147483648
  %v643 = vor.u32 1.1754944e-38, %v642
  %v644 = vsel %vm641, %v643, %v639
  %v645 = vmul.f32 1.0, %v644
  %v646 = vmul.f32 %v625, %v603
  %v647 = vadd.f32 %v566, %v646
  %v648 = vtanh.pop %v647
  %v649 = vsub.f32 1.0, %v645
  %v650 = vmul.f32 %v649, %v648
  %v651 = vmul.f32 %v645, %v559
  %v652 = vadd.f32 %v650, %v651
  %v653 = vpack.c.bf16 %v652, %v652
  %s654 = scalar_lea.vmem %s4, 16
  %655 = vst [vmem:[%s654] sm:$0xf] %v653
  %s656 = scalar_lea.vmem %s0, 120
  %v657 = vld [vmem:[%s656] sm:$0xff]
  %v658 = vld [vmem:[%s656 + $0x8] sm:$0xff]
  %v659 = vld [vmem:[%s656 + $0x10] sm:$0xff]
  %660 = vmatpush.bf16.msra.mxu0 %v169
  %661 = vmatpush.bf16.msra.mxu0 %v166
  %662 = vmatpush.bf16.msra.mxu0 %v163
  %663 = vmatpush.bf16.msra.mxu0 %v160
  %664 = vmatpush.bf16.msra.mxu0 %v157
  %665 = vmatpush.bf16.msra.mxu0 %v154
  %666 = vmatpush.bf16.msra.mxu0 %v151
  %667 = vmatpush.bf16.msra.mxu0 %v148
  %668 = vmatmul.bf16.gmra.mxu0 %v653
  %v669 = vpop.f32.mrf.mxu0
  %v670 = vadd.f32 %v62, %v669
  %v671 = vpop.f32.mrf.mxu0
  %672 = vdwg.mxu0
  %673 = vmatpush.bf16.msra.mxu0 %v170
  %674 = vmatpush.bf16.msra.mxu0 %v167
  %675 = vmatpush.bf16.msra.mxu0 %v164
  %676 = vmatpush.bf16.msra.mxu0 %v161
  %677 = vmatpush.bf16.msra.mxu0 %v158
  %678 = vmatpush.bf16.msra.mxu0 %v155
  %679 = vmatpush.bf16.msra.mxu0 %v152
  %680 = vmatpush.bf16.msra.mxu0 %v149
  %681 = vmatmul.bf16.gmra.mxu0 %v653
  %v682 = vpop.f32.mrf.mxu0
  %v683 = vadd.f32 %v63, %v682
  %v684 = vpop.f32.mrf.mxu0
  %685 = vdwg.mxu0
  %686 = vmatpush.bf16.msra.mxu0 %v171
  %687 = vmatpush.bf16.msra.mxu0 %v168
  %688 = vmatpush.bf16.msra.mxu0 %v165
  %689 = vmatpush.bf16.msra.mxu0 %v162
  %690 = vmatpush.bf16.msra.mxu0 %v159
  %691 = vmatpush.bf16.msra.mxu0 %v156
  %692 = vmatpush.bf16.msra.mxu0 %v153
  %693 = vmatpush.bf16.msra.mxu0 %v150
  %694 = vmatmul.bf16.gmra.mxu0 %v653
  %v695 = vpop.f32.mrf.mxu0
  %v696 = vadd.f32 %v64, %v695
  %v697 = vpop.f32.mrf.mxu0
  %698 = vdwg.mxu0
  %v699 = vadd.f32 %v657, %v670
  %v700 = vxor.u32 %v699, 2147483648
  %v701 = vmul.f32 %v700, 1.442695
  %v702 = vpow.pop %v701
  %v703 = vadd.f32 %v702, 1.0
  %v704 = vrcp.pop %v703
  %v705 = vmul.f32 %v703, %v704
  %v706 = vsub.f32 1.0, %v705
  %v707 = vmul.f32 %v704, %v706
  %v708 = vadd.f32 %v704, %v707
  %vm709 = vweird.f32 %v703
  %vm710 = vweird.f32 %v704
  %vm711 = vmor %vm709, %vm710
  %v712 = vsel %vm711, %v704, %v708
  %v713 = vand.u32 2147483647, %v703
  %vm714 = vcmp.eq.f32.partialorder %v713, 8.507059e+37
  %v715 = vand.u32 %v703, 2147483648
  %v716 = vor.u32 1.1754944e-38, %v715
  %v717 = vsel %vm714, %v716, %v712
  %v718 = vmul.f32 1.0, %v717
  %v719 = vadd.f32 %v658, %v683
  %v720 = vxor.u32 %v719, 2147483648
  %v721 = vmul.f32 %v720, 1.442695
  %v722 = vpow.pop %v721
  %v723 = vadd.f32 %v722, 1.0
  %v724 = vrcp.pop %v723
  %v725 = vmul.f32 %v723, %v724
  %v726 = vsub.f32 1.0, %v725
  %v727 = vmul.f32 %v724, %v726
  %v728 = vadd.f32 %v724, %v727
  %vm729 = vweird.f32 %v723
  %vm730 = vweird.f32 %v724
  %vm731 = vmor %vm729, %vm730
  %v732 = vsel %vm731, %v724, %v728
  %v733 = vand.u32 2147483647, %v723
  %vm734 = vcmp.eq.f32.partialorder %v733, 8.507059e+37
  %v735 = vand.u32 %v723, 2147483648
  %v736 = vor.u32 1.1754944e-38, %v735
  %v737 = vsel %vm734, %v736, %v732
  %v738 = vmul.f32 1.0, %v737
  %v739 = vmul.f32 %v718, %v696
  %v740 = vadd.f32 %v659, %v739
  %v741 = vtanh.pop %v740
  %v742 = vsub.f32 1.0, %v738
  %v743 = vmul.f32 %v742, %v741
  %v744 = vmul.f32 %v738, %v652
  %v745 = vadd.f32 %v743, %v744
  %v746 = vpack.c.bf16 %v745, %v745
  %s747 = scalar_lea.vmem %s4, 20
  %748 = vst [vmem:[%s747] sm:$0xf] %v746
  %s749 = scalar_lea.vmem %s0, 144
  %v750 = vld [vmem:[%s749] sm:$0xff]
  %v751 = vld [vmem:[%s749 + $0x8] sm:$0xff]
  %v752 = vld [vmem:[%s749 + $0x10] sm:$0xff]
  %753 = vmatpush.bf16.msra.mxu0 %v169
  %754 = vmatpush.bf16.msra.mxu0 %v166
  %755 = vmatpush.bf16.msra.mxu0 %v163
  %756 = vmatpush.bf16.msra.mxu0 %v160
  %757 = vmatpush.bf16.msra.mxu0 %v157
  %758 = vmatpush.bf16.msra.mxu0 %v154
  %759 = vmatpush.bf16.msra.mxu0 %v151
  %760 = vmatpush.bf16.msra.mxu0 %v148
  %761 = vmatmul.bf16.gmra.mxu0 %v746
  %v762 = vpop.f32.mrf.mxu0
  %v763 = vadd.f32 %v62, %v762
  %v764 = vpop.f32.mrf.mxu0
  %765 = vdwg.mxu0
  %766 = vmatpush.bf16.msra.mxu0 %v170
  %767 = vmatpush.bf16.msra.mxu0 %v167
  %768 = vmatpush.bf16.msra.mxu0 %v164
  %769 = vmatpush.bf16.msra.mxu0 %v161
  %770 = vmatpush.bf16.msra.mxu0 %v158
  %771 = vmatpush.bf16.msra.mxu0 %v155
  %772 = vmatpush.bf16.msra.mxu0 %v152
  %773 = vmatpush.bf16.msra.mxu0 %v149
  %774 = vmatmul.bf16.gmra.mxu0 %v746
  %v775 = vpop.f32.mrf.mxu0
  %v776 = vadd.f32 %v63, %v775
  %v777 = vpop.f32.mrf.mxu0
  %778 = vdwg.mxu0
  %779 = vmatpush.bf16.msra.mxu0 %v171
  %780 = vmatpush.bf16.msra.mxu0 %v168
  %781 = vmatpush.bf16.msra.mxu0 %v165
  %782 = vmatpush.bf16.msra.mxu0 %v162
  %783 = vmatpush.bf16.msra.mxu0 %v159
  %784 = vmatpush.bf16.msra.mxu0 %v156
  %785 = vmatpush.bf16.msra.mxu0 %v153
  %786 = vmatpush.bf16.msra.mxu0 %v150
  %787 = vmatmul.bf16.gmra.mxu0 %v746
  %v788 = vpop.f32.mrf.mxu0
  %v789 = vadd.f32 %v64, %v788
  %v790 = vpop.f32.mrf.mxu0
  %791 = vdwg.mxu0
  %v792 = vadd.f32 %v750, %v763
  %v793 = vxor.u32 %v792, 2147483648
  %v794 = vmul.f32 %v793, 1.442695
  %v795 = vpow.pop %v794
  %v796 = vadd.f32 %v795, 1.0
  %v797 = vrcp.pop %v796
  %v798 = vmul.f32 %v796, %v797
  %v799 = vsub.f32 1.0, %v798
  %v800 = vmul.f32 %v797, %v799
  %v801 = vadd.f32 %v797, %v800
  %vm802 = vweird.f32 %v796
  %vm803 = vweird.f32 %v797
  %vm804 = vmor %vm802, %vm803
  %v805 = vsel %vm804, %v797, %v801
  %v806 = vand.u32 2147483647, %v796
  %vm807 = vcmp.eq.f32.partialorder %v806, 8.507059e+37
  %v808 = vand.u32 %v796, 2147483648
  %v809 = vor.u32 1.1754944e-38, %v808
  %v810 = vsel %vm807, %v809, %v805
  %v811 = vmul.f32 1.0, %v810
  %v812 = vadd.f32 %v751, %v776
  %v813 = vxor.u32 %v812, 2147483648
  %v814 = vmul.f32 %v813, 1.442695
  %v815 = vpow.pop %v814
  %v816 = vadd.f32 %v815, 1.0
  %v817 = vrcp.pop %v816
  %v818 = vmul.f32 %v816, %v817
  %v819 = vsub.f32 1.0, %v818
  %v820 = vmul.f32 %v817, %v819
  %v821 = vadd.f32 %v817, %v820
  %vm822 = vweird.f32 %v816
  %vm823 = vweird.f32 %v817
  %vm824 = vmor %vm822, %vm823
  %v825 = vsel %vm824, %v817, %v821
  %v826 = vand.u32 2147483647, %v816
  %vm827 = vcmp.eq.f32.partialorder %v826, 8.507059e+37
  %v828 = vand.u32 %v816, 2147483648
  %v829 = vor.u32 1.1754944e-38, %v828
  %v830 = vsel %vm827, %v829, %v825
  %v831 = vmul.f32 1.0, %v830
  %v832 = vmul.f32 %v811, %v789
  %v833 = vadd.f32 %v752, %v832
  %v834 = vtanh.pop %v833
  %v835 = vsub.f32 1.0, %v831
  %v836 = vmul.f32 %v835, %v834
  %v837 = vmul.f32 %v831, %v745
  %v838 = vadd.f32 %v836, %v837
  %v839 = vpack.c.bf16 %v838, %v838
  %s840 = scalar_lea.vmem %s4, 24
  %841 = vst [vmem:[%s840] sm:$0xf] %v839
  %s842 = scalar_lea.vmem %s0, 168
  %v843 = vld [vmem:[%s842] sm:$0xff]
  %v844 = vld [vmem:[%s842 + $0x8] sm:$0xff]
  %v845 = vld [vmem:[%s842 + $0x10] sm:$0xff]
  %846 = vmatpush.bf16.msra.mxu0 %v169
  %847 = vmatpush.bf16.msra.mxu0 %v166
  %848 = vmatpush.bf16.msra.mxu0 %v163
  %849 = vmatpush.bf16.msra.mxu0 %v160
  %850 = vmatpush.bf16.msra.mxu0 %v157
  %851 = vmatpush.bf16.msra.mxu0 %v154
  %852 = vmatpush.bf16.msra.mxu0 %v151
  %853 = vmatpush.bf16.msra.mxu0 %v148
  %854 = vmatmul.bf16.gmra.mxu0 %v839
  %v855 = vpop.f32.mrf.mxu0
  %v856 = vadd.f32 %v62, %v855
  %v857 = vpop.f32.mrf.mxu0
  %858 = vdwg.mxu0
  %859 = vmatpush.bf16.msra.mxu0 %v170
  %860 = vmatpush.bf16.msra.mxu0 %v167
  %861 = vmatpush.bf16.msra.mxu0 %v164
  %862 = vmatpush.bf16.msra.mxu0 %v161
  %863 = vmatpush.bf16.msra.mxu0 %v158
  %864 = vmatpush.bf16.msra.mxu0 %v155
  %865 = vmatpush.bf16.msra.mxu0 %v152
  %866 = vmatpush.bf16.msra.mxu0 %v149
  %867 = vmatmul.bf16.gmra.mxu0 %v839
  %v868 = vpop.f32.mrf.mxu0
  %v869 = vadd.f32 %v63, %v868
  %v870 = vpop.f32.mrf.mxu0
  %871 = vdwg.mxu0
  %872 = vmatpush.bf16.msra.mxu0 %v171
  %873 = vmatpush.bf16.msra.mxu0 %v168
  %874 = vmatpush.bf16.msra.mxu0 %v165
  %875 = vmatpush.bf16.msra.mxu0 %v162
  %876 = vmatpush.bf16.msra.mxu0 %v159
  %877 = vmatpush.bf16.msra.mxu0 %v156
  %878 = vmatpush.bf16.msra.mxu0 %v153
  %879 = vmatpush.bf16.msra.mxu0 %v150
  %880 = vmatmul.bf16.gmra.mxu0 %v839
  %v881 = vpop.f32.mrf.mxu0
  %v882 = vadd.f32 %v64, %v881
  %v883 = vpop.f32.mrf.mxu0
  %884 = vdwg.mxu0
  %v885 = vadd.f32 %v843, %v856
  %v886 = vxor.u32 %v885, 2147483648
  %v887 = vmul.f32 %v886, 1.442695
  %v888 = vpow.pop %v887
  %v889 = vadd.f32 %v888, 1.0
  %v890 = vrcp.pop %v889
  %v891 = vmul.f32 %v889, %v890
  %v892 = vsub.f32 1.0, %v891
  %v893 = vmul.f32 %v890, %v892
  %v894 = vadd.f32 %v890, %v893
  %vm895 = vweird.f32 %v889
  %vm896 = vweird.f32 %v890
  %vm897 = vmor %vm895, %vm896
  %v898 = vsel %vm897, %v890, %v894
  %v899 = vand.u32 2147483647, %v889
  %vm900 = vcmp.eq.f32.partialorder %v899, 8.507059e+37
  %v901 = vand.u32 %v889, 2147483648
  %v902 = vor.u32 1.1754944e-38, %v901
  %v903 = vsel %vm900, %v902, %v898
  %v904 = vmul.f32 1.0, %v903
  %v905 = vadd.f32 %v844, %v869
  %v906 = vxor.u32 %v905, 2147483648
  %v907 = vmul.f32 %v906, 1.442695
  %v908 = vpow.pop %v907
  %v909 = vadd.f32 %v908, 1.0
  %v910 = vrcp.pop %v909
  %v911 = vmul.f32 %v909, %v910
  %v912 = vsub.f32 1.0, %v911
  %v913 = vmul.f32 %v910, %v912
  %v914 = vadd.f32 %v910, %v913
  %vm915 = vweird.f32 %v909
  %vm916 = vweird.f32 %v910
  %vm917 = vmor %vm915, %vm916
  %v918 = vsel %vm917, %v910, %v914
  %v919 = vand.u32 2147483647, %v909
  %vm920 = vcmp.eq.f32.partialorder %v919, 8.507059e+37
  %v921 = vand.u32 %v909, 2147483648
  %v922 = vor.u32 1.1754944e-38, %v921
  %v923 = vsel %vm920, %v922, %v918
  %v924 = vmul.f32 1.0, %v923
  %v925 = vmul.f32 %v904, %v882
  %v926 = vadd.f32 %v845, %v925
  %v927 = vtanh.pop %v926
  %v928 = vsub.f32 1.0, %v924
  %v929 = vmul.f32 %v928, %v927
  %v930 = vmul.f32 %v924, %v838
  %v931 = vadd.f32 %v929, %v930
  %v932 = vpack.c.bf16 %v931, %v931
  %s933 = scalar_lea.vmem %s4, 28
  %934 = vst [vmem:[%s933] sm:$0xf] %v932
  %935 = vst [vmem:[#allocation2] sm:$0xff] %v931
  // Predicated region
  $region22: #{rnn_forward.4} parent=0 // pred_check
    _
  $region23: #{rnn_forward.4} parent=0 // pred_check_branch
    %937 = sbr.rel (0) target = $region25
  $region24: #{rnn_forward.4} parent=0 // pred_region
    _
  $region25: #{rnn_forward.4} parent=0 // pred_fallthru
    _
  // Predicated region
  $region26: #{rnn_forward.4} parent=0 // pred_check
    _
  $region27: #{rnn_forward.4} parent=0 // pred_check_branch
    %939 = sbr.rel (0) target = $region29
  $region28: #{rnn_forward.4} parent=0 // pred_region
    _
  $region29: #{rnn_forward.4} parent=0 // pred_fallthru
    _

// kernel: rnn_forward.3
$region0: #{rnn_forward.3}
  #allocation0 [shape = 'u32[]', space=smem, size = 0x4, offset = 0x4, fixed_abs, tag = 'smem constant byte address 0x4 - core index']
  #allocation1 [shape = 'u32[72,128]{1,0:T(1,128)}', space=vmem, size = 0x9000, scoped, tag = 'internal scratch']
  %s0 = inlined_call_operand.vmem [shape: f32[64,256], index: 0, kind: input, shape index: {}]
  %s1 = inlined_call_operand.vmem [shape: bf16[256,512], index: 1, kind: input, shape index: {}]
  %s2 = inlined_call_operand.vmem [shape: f32[1,512], index: 2, kind: input, shape index: {}]
  %s3 = inlined_call_operand.vmem [shape: f32[1,512], index: 3, kind: input, shape index: {}]
  %s4 = inlined_call_operand.vmem [shape: f32[1,512], index: 4, kind: input, shape index: {}]
  %s5 = inlined_call_operand.vmem [shape: bf16[512,384], index: 5, kind: input, shape index: {}]
  %s6 = inlined_call_operand.vmem [shape: f32[1,384], index: 6, kind: input, shape index: {}]
  %s7 = inlined_call_operand.vmem [shape: f32[64,384], index: 7, kind: output, shape index: {}]
  %s8 = sld [smem:[#allocation0]]
  $region38: #{rnn_forward.3} parent=0
    _
  %s10 = ssub.s32 1, %s8
  %s11 = scalar_select 0, %s10, %s8
  // Predicated region
  $region2: #{rnn_forward.3} parent=0 // pred_check
    _
  $region3: #{rnn_forward.3} parent=0 // pred_check_branch
    %13 = sbr.rel (0) target = $region5
  $region4: #{rnn_forward.3} parent=0 // pred_region
    _
  $region5: #{rnn_forward.3} parent=0 // pred_fallthru
    _
  // Predicated region
  $region6: #{rnn_forward.3} parent=0 // pred_check
    _
  $region7: #{rnn_forward.3} parent=0 // pred_check_branch
    %15 = sbr.rel (0) target = $region9
  $region8: #{rnn_forward.3} parent=0 // pred_region
    _
  $region9: #{rnn_forward.3} parent=0 // pred_fallthru
    _
  // Predicated region
  $region10: #{rnn_forward.3} parent=0 // pred_check
    _
  $region11: #{rnn_forward.3} parent=0 // pred_check_branch
    %17 = sbr.rel (0) target = $region13
  $region12: #{rnn_forward.3} parent=0 // pred_region
    _
  $region13: #{rnn_forward.3} parent=0 // pred_fallthru
    _
  // Predicated region
  $region14: #{rnn_forward.3} parent=0 // pred_check
    _
  $region15: #{rnn_forward.3} parent=0 // pred_check_branch
    %19 = sbr.rel (0) target = $region17
  $region16: #{rnn_forward.3} parent=0 // pred_region
    _
  $region17: #{rnn_forward.3} parent=0 // pred_fallthru
    _
  // Predicated region
  $region18: #{rnn_forward.3} parent=0 // pred_check
    _
  $region19: #{rnn_forward.3} parent=0 // pred_check_branch
    %21 = sbr.rel (0) target = $region21
  $region20: #{rnn_forward.3} parent=0 // pred_region
    _
  $region21: #{rnn_forward.3} parent=0 // pred_fallthru
    _
  // Predicated region
  $region22: #{rnn_forward.3} parent=0 // pred_check
    _
  $region23: #{rnn_forward.3} parent=0 // pred_check_branch
    %23 = sbr.rel (0) target = $region25
  $region24: #{rnn_forward.3} parent=0 // pred_region
    _
  $region25: #{rnn_forward.3} parent=0 // pred_fallthru
    _
  // Predicated region
  $region26: #{rnn_forward.3} parent=0 // pred_check
    _
  $region27: #{rnn_forward.3} parent=0 // pred_check_branch
    %25 = sbr.rel (0) target = $region29
  $region28: #{rnn_forward.3} parent=0 // pred_region
    _
  $region29: #{rnn_forward.3} parent=0 // pred_fallthru
    _
  %v26 = vld [vmem:[%s0] sm:$0xff]
  %v27 = vld [vmem:[%s0 + $0x8] sm:$0xff]
  %v28 = vld [vmem:[%s0 + $0x10] sm:$0xff]
  %v29 = vld [vmem:[%s0 + $0x18] sm:$0xff]
  %v30 = vld [vmem:[%s0 + $0x20] sm:$0xff]
  %v31 = vld [vmem:[%s0 + $0x28] sm:$0xff]
  %v32 = vld [vmem:[%s0 + $0x30] sm:$0xff]
  %v33 = vld [vmem:[%s0 + $0x38] sm:$0xff]
  %v34 = vld [vmem:[%s0 + $0x40] sm:$0xff]
  %v35 = vld [vmem:[%s0 + $0x48] sm:$0xff]
  %v36 = vld [vmem:[%s0 + $0x50] sm:$0xff]
  %v37 = vld [vmem:[%s0 + $0x58] sm:$0xff]
  %v38 = vld [vmem:[%s0 + $0x60] sm:$0xff]
  %v39 = vld [vmem:[%s0 + $0x68] sm:$0xff]
  %v40 = vld [vmem:[%s0 + $0x70] sm:$0xff]
  %v41 = vld [vmem:[%s0 + $0x78] sm:$0xff]
  %v42 = vpack.c.bf16 %v28, %v26
  %v43 = vpack.c.bf16 %v29, %v27
  %v44 = vpack.c.bf16 %v32, %v30
  %v45 = vpack.c.bf16 %v33, %v31
  %v46 = vpack.c.bf16 %v36, %v34
  %v47 = vpack.c.bf16 %v37, %v35
  %v48 = vpack.c.bf16 %v40, %v38
  %v49 = vpack.c.bf16 %v41, %v39
  %v50 = vld [vmem:[%s1] sm:$0xff]
  %v51 = vld [vmem:[%s1 + $0x8] sm:$0xff]
  %v52 = vld [vmem:[%s1 + $0x10] sm:$0xff]
  %v53 = vld [vmem:[%s1 + $0x18] sm:$0xff]
  %v54 = vld [vmem:[%s1 + $0x20] sm:$0xff]
  %v55 = vld [vmem:[%s1 + $0x28] sm:$0xff]
  %v56 = vld [vmem:[%s1 + $0x30] sm:$0xff]
  %v57 = vld [vmem:[%s1 + $0x38] sm:$0xff]
  %v58 = vld [vmem:[%s1 + $0x40] sm:$0xff]
  %v59 = vld [vmem:[%s1 + $0x48] sm:$0xff]
  %v60 = vld [vmem:[%s1 + $0x50] sm:$0xff]
  %v61 = vld [vmem:[%s1 + $0x58] sm:$0xff]
  %v62 = vld [vmem:[%s1 + $0x60] sm:$0xff]
  %v63 = vld [vmem:[%s1 + $0x68] sm:$0xff]
  %v64 = vld [vmem:[%s1 + $0x70] sm:$0xff]
  %v65 = vld [vmem:[%s1 + $0x78] sm:$0xff]
  %v66 = vld [vmem:[%s1 + $0x80] sm:$0xff]
  %v67 = vld [vmem:[%s1 + $0x88] sm:$0xff]
  %v68 = vld [vmem:[%s1 + $0x90] sm:$0xff]
  %v69 = vld [vmem:[%s1 + $0x98] sm:$0xff]
  %v70 = vld [vmem:[%s1 + $0xa0] sm:$0xff]
  %v71 = vld [vmem:[%s1 + $0xa8] sm:$0xff]
  %v72 = vld [vmem:[%s1 + $0xb0] sm:$0xff]
  %v73 = vld [vmem:[%s1 + $0xb8] sm:$0xff]
  %v74 = vld [vmem:[%s1 + $0xc0] sm:$0xff]
  %v75 = vld [vmem:[%s1 + $0xc8] sm:$0xff]
  %v76 = vld [vmem:[%s1 + $0xd0] sm:$0xff]
  %v77 = vld [vmem:[%s1 + $0xd8] sm:$0xff]
  %v78 = vld [vmem:[%s1 + $0xe0] sm:$0xff]
  %v79 = vld [vmem:[%s1 + $0xe8] sm:$0xff]
  %v80 = vld [vmem:[%s1 + $0xf0] sm:$0xff]
  %v81 = vld [vmem:[%s1 + $0xf8] sm:$0xff]
  %v82 = vld [vmem:[%s1 + $0x100] sm:$0xff]
  %v83 = vld [vmem:[%s1 + $0x108] sm:$0xff]
  %v84 = vld [vmem:[%s1 + $0x110] sm:$0xff]
  %v85 = vld [vmem:[%s1 + $0x118] sm:$0xff]
  %v86 = vld [vmem:[%s1 + $0x120] sm:$0xff]
  %v87 = vld [vmem:[%s1 + $0x128] sm:$0xff]
  %v88 = vld [vmem:[%s1 + $0x130] sm:$0xff]
  %v89 = vld [vmem:[%s1 + $0x138] sm:$0xff]
  %v90 = vld [vmem:[%s1 + $0x140] sm:$0xff]
  %v91 = vld [vmem:[%s1 + $0x148] sm:$0xff]
  %v92 = vld [vmem:[%s1 + $0x150] sm:$0xff]
  %v93 = vld [vmem:[%s1 + $0x158] sm:$0xff]
  %v94 = vld [vmem:[%s1 + $0x160] sm:$0xff]
  %v95 = vld [vmem:[%s1 + $0x168] sm:$0xff]
  %v96 = vld [vmem:[%s1 + $0x170] sm:$0xff]
  %v97 = vld [vmem:[%s1 + $0x178] sm:$0xff]
  %v98 = vld [vmem:[%s1 + $0x180] sm:$0xff]
  %v99 = vld [vmem:[%s1 + $0x188] sm:$0xff]
  %v100 = vld [vmem:[%s1 + $0x190] sm:$0xff]
  %v101 = vld [vmem:[%s1 + $0x198] sm:$0xff]
  %v102 = vld [vmem:[%s1 + $0x1a0] sm:$0xff]
  %v103 = vld [vmem:[%s1 + $0x1a8] sm:$0xff]
  %v104 = vld [vmem:[%s1 + $0x1b0] sm:$0xff]
  %v105 = vld [vmem:[%s1 + $0x1b8] sm:$0xff]
  %v106 = vld [vmem:[%s1 + $0x1c0] sm:$0xff]
  %v107 = vld [vmem:[%s1 + $0x1c8] sm:$0xff]
  %v108 = vld [vmem:[%s1 + $0x1d0] sm:$0xff]
  %v109 = vld [vmem:[%s1 + $0x1d8] sm:$0xff]
  %v110 = vld [vmem:[%s1 + $0x1e0] sm:$0xff]
  %v111 = vld [vmem:[%s1 + $0x1e8] sm:$0xff]
  %v112 = vld [vmem:[%s1 + $0x1f0] sm:$0xff]
  %v113 = vld [vmem:[%s1 + $0x1f8] sm:$0xff]
  %v114 = vld [vmem:[%s2] sm:$0xf]
  %v116 = vperm.slane %v114, 0
  %v117 = vperm.slane %v114, 1
  %v118 = vperm.slane %v114, 2
  %v119 = vperm.slane %v114, 3
  %v188 = vunpack.c.l.b16 %v50
  %v189 = vunpack.c.h.b16 %v50
  %v190 = vunpack.c.l.b16 %v51
  %v191 = vunpack.c.h.b16 %v51
  %v192 = vunpack.c.l.b16 %v52
  %v193 = vunpack.c.h.b16 %v52
  %v194 = vunpack.c.l.b16 %v53
  %v195 = vunpack.c.h.b16 %v53
  %v196 = vunpack.c.l.b16 %v54
  %v197 = vunpack.c.h.b16 %v54
  %v198 = vunpack.c.l.b16 %v55
  %v199 = vunpack.c.h.b16 %v55
  %v200 = vunpack.c.l.b16 %v56
  %v201 = vunpack.c.h.b16 %v56
  %v202 = vunpack.c.l.b16 %v57
  %v203 = vunpack.c.h.b16 %v57
  %v204 = vunpack.c.l.b16 %v58
  %v205 = vunpack.c.h.b16 %v58
  %v206 = vunpack.c.l.b16 %v59
  %v207 = vunpack.c.h.b16 %v59
  %v208 = vunpack.c.l.b16 %v60
  %v209 = vunpack.c.h.b16 %v60
  %v210 = vunpack.c.l.b16 %v61
  %v211 = vunpack.c.h.b16 %v61
  %v212 = vunpack.c.l.b16 %v62
  %v213 = vunpack.c.h.b16 %v62
  %v214 = vunpack.c.l.b16 %v63
  %v215 = vunpack.c.h.b16 %v63
  %v216 = vunpack.c.l.b16 %v64
  %v217 = vunpack.c.h.b16 %v64
  %v218 = vunpack.c.l.b16 %v65
  %v219 = vunpack.c.h.b16 %v65
  %v220 = vunpack.c.l.b16 %v66
  %v221 = vunpack.c.h.b16 %v66
  %v222 = vunpack.c.l.b16 %v67
  %v223 = vunpack.c.h.b16 %v67
  %v224 = vunpack.c.l.b16 %v68
  %v225 = vunpack.c.h.b16 %v68
  %v226 = vunpack.c.l.b16 %v69
  %v227 = vunpack.c.h.b16 %v69
  %v228 = vunpack.c.l.b16 %v70
  %v229 = vunpack.c.h.b16 %v70
  %v230 = vunpack.c.l.b16 %v71
  %v231 = vunpack.c.h.b16 %v71
  %v232 = vunpack.c.l.b16 %v72
  %v233 = vunpack.c.h.b16 %v72
  %v234 = vunpack.c.l.b16 %v73
  %v235 = vunpack.c.h.b16 %v73
  %v236 = vunpack.c.l.b16 %v74
  %v237 = vunpack.c.h.b16 %v74
  %v238 = vunpack.c.l.b16 %v75
  %v239 = vunpack.c.h.b16 %v75
  %v240 = vunpack.c.l.b16 %v76
  %v241 = vunpack.c.h.b16 %v76
  %v242 = vunpack.c.l.b16 %v77
  %v243 = vunpack.c.h.b16 %v77
  %v244 = vunpack.c.l.b16 %v78
  %v245 = vunpack.c.h.b16 %v78
  %v246 = vunpack.c.l.b16 %v79
  %v247 = vunpack.c.h.b16 %v79
  %v248 = vunpack.c.l.b16 %v80
  %v249 = vunpack.c.h.b16 %v80
  %v250 = vunpack.c.l.b16 %v81
  %v251 = vunpack.c.h.b16 %v81
  %v252 = vunpack.c.l.b16 %v82
  %v253 = vunpack.c.h.b16 %v82
  %v254 = vunpack.c.l.b16 %v83
  %v255 = vunpack.c.h.b16 %v83
  %v256 = vunpack.c.l.b16 %v84
  %v257 = vunpack.c.h.b16 %v84
  %v258 = vunpack.c.l.b16 %v85
  %v259 = vunpack.c.h.b16 %v85
  %v260 = vunpack.c.l.b16 %v86
  %v261 = vunpack.c.h.b16 %v86
  %v262 = vunpack.c.l.b16 %v87
  %v263 = vunpack.c.h.b16 %v87
  %v264 = vunpack.c.l.b16 %v88
  %v265 = vunpack.c.h.b16 %v88
  %v266 = vunpack.c.l.b16 %v89
  %v267 = vunpack.c.h.b16 %v89
  %v268 = vunpack.c.l.b16 %v90
  %v269 = vunpack.c.h.b16 %v90
  %v270 = vunpack.c.l.b16 %v91
  %v271 = vunpack.c.h.b16 %v91
  %v272 = vunpack.c.l.b16 %v92
  %v273 = vunpack.c.h.b16 %v92
  %v274 = vunpack.c.l.b16 %v93
  %v275 = vunpack.c.h.b16 %v93
  %v276 = vunpack.c.l.b16 %v94
  %v277 = vunpack.c.h.b16 %v94
  %v278 = vunpack.c.l.b16 %v95
  %v279 = vunpack.c.h.b16 %v95
  %v280 = vunpack.c.l.b16 %v96
  %v281 = vunpack.c.h.b16 %v96
  %v282 = vunpack.c.l.b16 %v97
  %v283 = vunpack.c.h.b16 %v97
  %v284 = vunpack.c.l.b16 %v98
  %v285 = vunpack.c.h.b16 %v98
  %v286 = vunpack.c.l.b16 %v99
  %v287 = vunpack.c.h.b16 %v99
  %v288 = vunpack.c.l.b16 %v100
  %v289 = vunpack.c.h.b16 %v100
  %v290 = vunpack.c.l.b16 %v101
  %v291 = vunpack.c.h.b16 %v101
  %v292 = vunpack.c.l.b16 %v102
  %v293 = vunpack.c.h.b16 %v102
  %v294 = vunpack.c.l.b16 %v103
  %v295 = vunpack.c.h.b16 %v103
  %v296 = vunpack.c.l.b16 %v104
  %v297 = vunpack.c.h.b16 %v104
  %v298 = vunpack.c.l.b16 %v105
  %v299 = vunpack.c.h.b16 %v105
  %v300 = vunpack.c.l.b16 %v106
  %v301 = vunpack.c.h.b16 %v106
  %v302 = vunpack.c.l.b16 %v107
  %v303 = vunpack.c.h.b16 %v107
  %v304 = vunpack.c.l.b16 %v108
  %v305 = vunpack.c.h.b16 %v108
  %v306 = vunpack.c.l.b16 %v109
  %v307 = vunpack.c.h.b16 %v109
  %v308 = vunpack.c.l.b16 %v110
  %v309 = vunpack.c.h.b16 %v110
  %v310 = vunpack.c.l.b16 %v111
  %v311 = vunpack.c.h.b16 %v111
  %v312 = vunpack.c.l.b16 %v112
  %v313 = vunpack.c.h.b16 %v112
  %v314 = vunpack.c.l.b16 %v113
  %v315 = vunpack.c.h.b16 %v113
  %v316 = vpack.c.b16 %v192, %v188
  %v317 = vpack.c.b16 %v193, %v189
  %v318 = vpack.c.b16 %v194, %v190
  %v319 = vpack.c.b16 %v195, %v191
  %v320 = vpack.c.b16 %v200, %v196
  %v321 = vpack.c.b16 %v201, %v197
  %v322 = vpack.c.b16 %v202, %v198
  %v323 = vpack.c.b16 %v203, %v199
  %v324 = vpack.c.b16 %v208, %v204
  %v325 = vpack.c.b16 %v209, %v205
  %v326 = vpack.c.b16 %v210, %v206
  %v327 = vpack.c.b16 %v211, %v207
  %v328 = vpack.c.b16 %v216, %v212
  %v329 = vpack.c.b16 %v217, %v213
  %v330 = vpack.c.b16 %v218, %v214
  %v331 = vpack.c.b16 %v219, %v215
  %v332 = vpack.c.b16 %v224, %v220
  %v333 = vpack.c.b16 %v225, %v221
  %v334 = vpack.c.b16 %v226, %v222
  %v335 = vpack.c.b16 %v227, %v223
  %v336 = vpack.c.b16 %v232, %v228
  %v337 = vpack.c.b16 %v233, %v229
  %v338 = vpack.c.b16 %v234, %v230
  %v339 = vpack.c.b16 %v235, %v231
  %v340 = vpack.c.b16 %v240, %v236
  %v341 = vpack.c.b16 %v241, %v237
  %v342 = vpack.c.b16 %v242, %v238
  %v343 = vpack.c.b16 %v243, %v239
  %v344 = vpack.c.b16 %v248, %v244
  %v345 = vpack.c.b16 %v249, %v245
  %v346 = vpack.c.b16 %v250, %v246
  %v347 = vpack.c.b16 %v251, %v247
  %v348 = vpack.c.b16 %v256, %v252
  %v349 = vpack.c.b16 %v257, %v253
  %v350 = vpack.c.b16 %v258, %v254
  %v351 = vpack.c.b16 %v259, %v255
  %v352 = vpack.c.b16 %v264, %v260
  %v353 = vpack.c.b16 %v265, %v261
  %v354 = vpack.c.b16 %v266, %v262
  %v355 = vpack.c.b16 %v267, %v263
  %v356 = vpack.c.b16 %v272, %v268
  %v357 = vpack.c.b16 %v273, %v269
  %v358 = vpack.c.b16 %v274, %v270
  %v359 = vpack.c.b16 %v275, %v271
  %v360 = vpack.c.b16 %v280, %v276
  %v361 = vpack.c.b16 %v281, %v277
  %v362 = vpack.c.b16 %v282, %v278
  %v363 = vpack.c.b16 %v283, %v279
  %v364 = vpack.c.b16 %v288, %v284
  %v365 = vpack.c.b16 %v289, %v285
  %v366 = vpack.c.b16 %v290, %v286
  %v367 = vpack.c.b16 %v291, %v287
  %v368 = vpack.c.b16 %v296, %v292
  %v369 = vpack.c.b16 %v297, %v293
  %v370 = vpack.c.b16 %v298, %v294
  %v371 = vpack.c.b16 %v299, %v295
  %v372 = vpack.c.b16 %v304, %v300
  %v373 = vpack.c.b16 %v305, %v301
  %v374 = vpack.c.b16 %v306, %v302
  %v375 = vpack.c.b16 %v307, %v303
  %v376 = vpack.c.b16 %v312, %v308
  %v377 = vpack.c.b16 %v313, %v309
  %v378 = vpack.c.b16 %v314, %v310
  %v379 = vpack.c.b16 %v315, %v311
  %444 = vmatpush.bf16.msra.mxu0 %v344
  %445 = vmatpush.bf16.msra.mxu0 %v340
  %446 = vmatpush.bf16.msra.mxu0 %v336
  %447 = vmatpush.bf16.msra.mxu0 %v332
  %448 = vmatpush.bf16.msra.mxu0 %v328
  %449 = vmatpush.bf16.msra.mxu0 %v324
  %450 = vmatpush.bf16.msra.mxu0 %v320
  %451 = vmatpush.bf16.msra.mxu0 %v316
  %452 = vmatmul.bf16.gmra.mxu0 %v42
  %v453 = vpop.f32.mrf.mxu0
  %v454 = vadd.f32 %v116, %v453
  %v455 = vpop.f32.mrf.mxu0
  %v456 = vadd.f32 %v116, %v455
  %457 = vmatmul.bf16.gmra.mxu0 %v44
  %v458 = vpop.f32.mrf.mxu0
  %v459 = vadd.f32 %v116, %v458
  %v460 = vpop.f32.mrf.mxu0
  %v461 = vadd.f32 %v116, %v460
  %462 = vmatmul.bf16.gmra.mxu0 %v46
  %v463 = vpop.f32.mrf.mxu0
  %v464 = vadd.f32 %v116, %v463
  %v465 = vpop.f32.mrf.mxu0
  %v466 = vadd.f32 %v116, %v465
  %467 = vmatmul.bf16.gmra.mxu0 %v48
  %v468 = vpop.f32.mrf.mxu0
  %v469 = vadd.f32 %v116, %v468
  %v470 = vpop.f32.mrf.mxu0
  %v471 = vadd.f32 %v116, %v470
  %472 = vdwg.mxu0
  %473 = vmatpush.bf16.msra.mxu0 %v376
  %474 = vmatpush.bf16.msra.mxu0 %v372
  %475 = vmatpush.bf16.msra.mxu0 %v368
  %476 = vmatpush.bf16.msra.mxu0 %v364
  %477 = vmatpush.bf16.msra.mxu0 %v360
  %478 = vmatpush.bf16.msra.mxu0 %v356
  %479 = vmatpush.bf16.msra.mxu0 %v352
  %480 = vmatpush.bf16.msra.mxu0 %v348
  %481 = vmatmul.bf16.gmra.mxu0 %v43
  %v482 = vpop.f32.mrf.mxu0
  %v483 = vadd.f32 %v454, %v482
  %v484 = vpop.f32.mrf.mxu0
  %v485 = vadd.f32 %v456, %v484
  %486 = vmatmul.bf16.gmra.mxu0 %v45
  %v487 = vpop.f32.mrf.mxu0
  %v488 = vadd.f32 %v459, %v487
  %v489 = vpop.f32.mrf.mxu0
  %v490 = vadd.f32 %v461, %v489
  %491 = vmatmul.bf16.gmra.mxu0 %v47
  %v492 = vpop.f32.mrf.mxu0
  %v493 = vadd.f32 %v464, %v492
  %v494 = vpop.f32.mrf.mxu0
  %v495 = vadd.f32 %v466, %v494
  %496 = vmatmul.bf16.gmra.mxu0 %v49
  %v497 = vpop.f32.mrf.mxu0
  %v498 = vadd.f32 %v469, %v497
  %v499 = vpop.f32.mrf.mxu0
  %v500 = vadd.f32 %v471, %v499
  %501 = vdwg.mxu0
  %502 = vmatpush.bf16.msra.mxu0 %v345
  %503 = vmatpush.bf16.msra.mxu0 %v341
  %504 = vmatpush.bf16.msra.mxu0 %v337
  %505 = vmatpush.bf16.msra.mxu0 %v333
  %506 = vmatpush.bf16.msra.mxu0 %v329
  %507 = vmatpush.bf16.msra.mxu0 %v325
  %508 = vmatpush.bf16.msra.mxu0 %v321
  %509 = vmatpush.bf16.msra.mxu0 %v317
  %510 = vmatmul.bf16.gmra.mxu0 %v42
  %v511 = vpop.f32.mrf.mxu0
  %v512 = vadd.f32 %v117, %v511
  %v513 = vpop.f32.mrf.mxu0
  %v514 = vadd.f32 %v117, %v513
  %515 = vmatmul.bf16.gmra.mxu0 %v44
  %v516 = vpop.f32.mrf.mxu0
  %v517 = vadd.f32 %v117, %v516
  %v518 = vpop.f32.mrf.mxu0
  %v519 = vadd.f32 %v117, %v518
  %520 = vmatmul.bf16.gmra.mxu0 %v46
  %v521 = vpop.f32.mrf.mxu0
  %v522 = vadd.f32 %v117, %v521
  %v523 = vpop.f32.mrf.mxu0
  %v524 = vadd.f32 %v117, %v523
  %525 = vmatmul.bf16.gmra.mxu0 %v48
  %v526 = vpop.f32.mrf.mxu0
  %v527 = vadd.f32 %v117, %v526
  %v528 = vpop.f32.mrf.mxu0
  %v529 = vadd.f32 %v117, %v528
  %530 = vdwg.mxu0
  %531 = vmatpush.bf16.msra.mxu0 %v377
  %532 = vmatpush.bf16.msra.mxu0 %v373
  %533 = vmatpush.bf16.msra.mxu0 %v369
  %534 = vmatpush.bf16.msra.mxu0 %v365
  %535 = vmatpush.bf16.msra.mxu0 %v361
  %536 = vmatpush.bf16.msra.mxu0 %v357
  %537 = vmatpush.bf16.msra.mxu0 %v353
  %538 = vmatpush.bf16.msra.mxu0 %v349
  %539 = vmatmul.bf16.gmra.mxu0 %v43
  %v540 = vpop.f32.mrf.mxu0
  %v541 = vadd.f32 %v512, %v540
  %v542 = vpop.f32.mrf.mxu0
  %v543 = vadd.f32 %v514, %v542
  %544 = vmatmul.bf16.gmra.mxu0 %v45
  %v545 = vpop.f32.mrf.mxu0
  %v546 = vadd.f32 %v517, %v545
  %v547 = vpop.f32.mrf.mxu0
  %v548 = vadd.f32 %v519, %v547
  %549 = vmatmul.bf16.gmra.mxu0 %v47
  %v550 = vpop.f32.mrf.mxu0
  %v551 = vadd.f32 %v522, %v550
  %v552 = vpop.f32.mrf.mxu0
  %v553 = vadd.f32 %v524, %v552
  %554 = vmatmul.bf16.gmra.mxu0 %v49
  %v555 = vpop.f32.mrf.mxu0
  %v556 = vadd.f32 %v527, %v555
  %v557 = vpop.f32.mrf.mxu0
  %v558 = vadd.f32 %v529, %v557
  %559 = vdwg.mxu0
  %560 = vmatpush.bf16.msra.mxu0 %v346
  %561 = vmatpush.bf16.msra.mxu0 %v342
  %562 = vmatpush.bf16.msra.mxu0 %v338
  %563 = vmatpush.bf16.msra.mxu0 %v334
  %564 = vmatpush.bf16.msra.mxu0 %v330
  %565 = vmatpush.bf16.msra.mxu0 %v326
  %566 = vmatpush.bf16.msra.mxu0 %v322
  %567 = vmatpush.bf16.msra.mxu0 %v318
  %568 = vmatmul.bf16.gmra.mxu0 %v42
  %v569 = vpop.f32.mrf.mxu0
  %v570 = vadd.f32 %v118, %v569
  %v571 = vpop.f32.mrf.mxu0
  %v572 = vadd.f32 %v118, %v571
  %573 = vmatmul.bf16.gmra.mxu0 %v44
  %v574 = vpop.f32.mrf.mxu0
  %v575 = vadd.f32 %v118, %v574
  %v576 = vpop.f32.mrf.mxu0
  %v577 = vadd.f32 %v118, %v576
  %578 = vmatmul.bf16.gmra.mxu0 %v46
  %v579 = vpop.f32.mrf.mxu0
  %v580 = vadd.f32 %v118, %v579
  %v581 = vpop.f32.mrf.mxu0
  %v582 = vadd.f32 %v118, %v581
  %583 = vmatmul.bf16.gmra.mxu0 %v48
  %v584 = vpop.f32.mrf.mxu0
  %v585 = vadd.f32 %v118, %v584
  %v586 = vpop.f32.mrf.mxu0
  %v587 = vadd.f32 %v118, %v586
  %588 = vdwg.mxu0
  %589 = vmatpush.bf16.msra.mxu0 %v378
  %590 = vmatpush.bf16.msra.mxu0 %v374
  %591 = vmatpush.bf16.msra.mxu0 %v370
  %592 = vmatpush.bf16.msra.mxu0 %v366
  %593 = vmatpush.bf16.msra.mxu0 %v362
  %594 = vmatpush.bf16.msra.mxu0 %v358
  %595 = vmatpush.bf16.msra.mxu0 %v354
  %596 = vmatpush.bf16.msra.mxu0 %v350
  %597 = vmatmul.bf16.gmra.mxu0 %v43
  %v598 = vpop.f32.mrf.mxu0
  %v599 = vadd.f32 %v570, %v598
  %v600 = vpop.f32.mrf.mxu0
  %v601 = vadd.f32 %v572, %v600
  %602 = vmatmul.bf16.gmra.mxu0 %v45
  %v603 = vpop.f32.mrf.mxu0
  %v604 = vadd.f32 %v575, %v603
  %v605 = vpop.f32.mrf.mxu0
  %v606 = vadd.f32 %v577, %v605
  %607 = vmatmul.bf16.gmra.mxu0 %v47
  %v608 = vpop.f32.mrf.mxu0
  %v609 = vadd.f32 %v580, %v608
  %v610 = vpop.f32.mrf.mxu0
  %v611 = vadd.f32 %v582, %v610
  %612 = vmatmul.bf16.gmra.mxu0 %v49
  %v613 = vpop.f32.mrf.mxu0
  %v614 = vadd.f32 %v585, %v613
  %v615 = vpop.f32.mrf.mxu0
  %v616 = vadd.f32 %v587, %v615
  %617 = vdwg.mxu0
  %618 = vmatpush.bf16.msra.mxu0 %v347
  %619 = vmatpush.bf16.msra.mxu0 %v343
  %620 = vmatpush.bf16.msra.mxu0 %v339
  %621 = vmatpush.bf16.msra.mxu0 %v335
  %622 = vmatpush.bf16.msra.mxu0 %v331
  %623 = vmatpush.bf16.msra.mxu0 %v327
  %624 = vmatpush.bf16.msra.mxu0 %v323
  %625 = vmatpush.bf16.msra.mxu0 %v319
  %626 = vmatmul.bf16.gmra.mxu0 %v42
  %v627 = vpop.f32.mrf.mxu0
  %v628 = vadd.f32 %v119, %v627
  %v629 = vpop.f32.mrf.mxu0
  %v630 = vadd.f32 %v119, %v629
  %631 = vmatmul.bf16.gmra.mxu0 %v44
  %v632 = vpop.f32.mrf.mxu0
  %v633 = vadd.f32 %v119, %v632
  %v634 = vpop.f32.mrf.mxu0
  %v635 = vadd.f32 %v119, %v634
  %636 = vmatmul.bf16.gmra.mxu0 %v46
  %v637 = vpop.f32.mrf.mxu0
  %v638 = vadd.f32 %v119, %v637
  %v639 = vpop.f32.mrf.mxu0
  %v640 = vadd.f32 %v119, %v639
  %641 = vmatmul.bf16.gmra.mxu0 %v48
  %v642 = vpop.f32.mrf.mxu0
  %v643 = vadd.f32 %v119, %v642
  %v644 = vpop.f32.mrf.mxu0
  %v645 = vadd.f32 %v119, %v644
  %646 = vdwg.mxu0
  %647 = vmatpush.bf16.msra.mxu0 %v379
  %648 = vmatpush.bf16.msra.mxu0 %v375
  %649 = vmatpush.bf16.msra.mxu0 %v371
  %650 = vmatpush.bf16.msra.mxu0 %v367
  %651 = vmatpush.bf16.msra.mxu0 %v363
  %652 = vmatpush.bf16.msra.mxu0 %v359
  %653 = vmatpush.bf16.msra.mxu0 %v355
  %654 = vmatpush.bf16.msra.mxu0 %v351
  %655 = vmatmul.bf16.gmra.mxu0 %v43
  %v656 = vpop.f32.mrf.mxu0
  %v657 = vadd.f32 %v628, %v656
  %v658 = vpop.f32.mrf.mxu0
  %v659 = vadd.f32 %v630, %v658
  %660 = vmatmul.bf16.gmra.mxu0 %v45
  %v661 = vpop.f32.mrf.mxu0
  %v662 = vadd.f32 %v633, %v661
  %v663 = vpop.f32.mrf.mxu0
  %v664 = vadd.f32 %v635, %v663
  %665 = vmatmul.bf16.gmra.mxu0 %v47
  %v666 = vpop.f32.mrf.mxu0
  %v667 = vadd.f32 %v638, %v666
  %v668 = vpop.f32.mrf.mxu0
  %v669 = vadd.f32 %v640, %v668
  %670 = vmatmul.bf16.gmra.mxu0 %v49
  %v671 = vpop.f32.mrf.mxu0
  %v672 = vadd.f32 %v643, %v671
  %v673 = vpop.f32.mrf.mxu0
  %v674 = vadd.f32 %v645, %v673
  %675 = vdwg.mxu0
  %v676 = vadd.f32 %v483, %v541
  %v677 = vadd.f32 %v676, %v599
  %v678 = vadd.f32 %v677, %v657
  %679 = vadd.xlane.f32.xlu0 %v678
  %v680 = vpop.xlane.xlu0 %679
  %v681 = vadd.f32 %v485, %v543
  %v682 = vadd.f32 %v681, %v601
  %v683 = vadd.f32 %v682, %v659
  %684 = vadd.xlane.f32.xlu0 %v683
  %v685 = vpop.xlane.xlu0 %684
  %v686 = vadd.f32 %v488, %v546
  %v687 = vadd.f32 %v686, %v604
  %v688 = vadd.f32 %v687, %v662
  %689 = vadd.xlane.f32.xlu0 %v688
  %v690 = vpop.xlane.xlu0 %689
  %v691 = vadd.f32 %v490, %v548
  %v692 = vadd.f32 %v691, %v606
  %v693 = vadd.f32 %v692, %v664
  %694 = vadd.xlane.f32.xlu0 %v693
  %v695 = vpop.xlane.xlu0 %694
  %v696 = vadd.f32 %v493, %v551
  %v697 = vadd.f32 %v696, %v609
  %v698 = vadd.f32 %v697, %v667
  %699 = vadd.xlane.f32.xlu0 %v698
  %v700 = vpop.xlane.xlu0 %699
  %v701 = vadd.f32 %v495, %v553
  %v702 = vadd.f32 %v701, %v611
  %v703 = vadd.f32 %v702, %v669
  %704 = vadd.xlane.f32.xlu0 %v703
  %v705 = vpop.xlane.xlu0 %704
  %v706 = vadd.f32 %v498, %v556
  %v707 = vadd.f32 %v706, %v614
  %v708 = vadd.f32 %v707, %v672
  %709 = vadd.xlane.f32.xlu0 %v708
  %v710 = vpop.xlane.xlu0 %709
  %v711 = vadd.f32 %v500, %v558
  %v712 = vadd.f32 %v711, %v616
  %v713 = vadd.f32 %v712, %v674
  %714 = vadd.xlane.f32.xlu0 %v713
  %v715 = vpop.xlane.xlu0 %714
  %v716 = vmul.f32 %v483, %v483
  %v717 = vmul.f32 %v541, %v541
  %v718 = vmul.f32 %v599, %v599
  %v719 = vmul.f32 %v657, %v657
  %v720 = vmul.f32 %v485, %v485
  %v721 = vmul.f32 %v543, %v543
  %v722 = vmul.f32 %v601, %v601
  %v723 = vmul.f32 %v659, %v659
  %v724 = vmul.f32 %v488, %v488
  %v725 = vmul.f32 %v546, %v546
  %v726 = vmul.f32 %v604, %v604
  %v727 = vmul.f32 %v662, %v662
  %v728 = vmul.f32 %v490, %v490
  %v729 = vmul.f32 %v548, %v548
  %v730 = vmul.f32 %v606, %v606
  %v731 = vmul.f32 %v664, %v664
  %v732 = vmul.f32 %v493, %v493
  %v733 = vmul.f32 %v551, %v551
  %v734 = vmul.f32 %v609, %v609
  %v735 = vmul.f32 %v667, %v667
  %v736 = vmul.f32 %v495, %v495
  %v737 = vmul.f32 %v553, %v553
  %v738 = vmul.f32 %v611, %v611
  %v739 = vmul.f32 %v669, %v669
  %v740 = vmul.f32 %v498, %v498
  %v741 = vmul.f32 %v556, %v556
  %v742 = vmul.f32 %v614, %v614
  %v743 = vmul.f32 %v672, %v672
  %v744 = vmul.f32 %v500, %v500
  %v745 = vmul.f32 %v558, %v558
  %v746 = vmul.f32 %v616, %v616
  %v747 = vmul.f32 %v674, %v674
  %v748 = vadd.f32 %v716, %v717
  %v749 = vadd.f32 %v748, %v718
  %v750 = vadd.f32 %v749, %v719
  %751 = vadd.xlane.f32.xlu0 %v750
  %v752 = vpop.xlane.xlu0 %751
  %v753 = vadd.f32 %v720, %v721
  %v754 = vadd.f32 %v753, %v722
  %v755 = vadd.f32 %v754, %v723
  %756 = vadd.xlane.f32.xlu0 %v755
  %v757 = vpop.xlane.xlu0 %756
  %v758 = vadd.f32 %v724, %v725
  %v759 = vadd.f32 %v758, %v726
  %v760 = vadd.f32 %v759, %v727
  %761 = vadd.xlane.f32.xlu0 %v760
  %v762 = vpop.xlane.xlu0 %761
  %v763 = vadd.f32 %v728, %v729
  %v764 = vadd.f32 %v763, %v730
  %v765 = vadd.f32 %v764, %v731
  %766 = vadd.xlane.f32.xlu0 %v765
  %v767 = vpop.xlane.xlu0 %766
  %v768 = vadd.f32 %v732, %v733
  %v769 = vadd.f32 %v768, %v734
  %v770 = vadd.f32 %v769, %v735
  %771 = vadd.xlane.f32.xlu0 %v770
  %v772 = vpop.xlane.xlu0 %771
  %v773 = vadd.f32 %v736, %v737
  %v774 = vadd.f32 %v773, %v738
  %v775 = vadd.f32 %v774, %v739
  %776 = vadd.xlane.f32.xlu0 %v775
  %v777 = vpop.xlane.xlu0 %776
  %v778 = vadd.f32 %v740, %v741
  %v779 = vadd.f32 %v778, %v742
  %v780 = vadd.f32 %v779, %v743
  %781 = vadd.xlane.f32.xlu0 %v780
  %v782 = vpop.xlane.xlu0 %781
  %v783 = vadd.f32 %v744, %v745
  %v784 = vadd.f32 %v783, %v746
  %v785 = vadd.f32 %v784, %v747
  %786 = vadd.xlane.f32.xlu0 %v785
  %v787 = vpop.xlane.xlu0 %786
  %v788 = vmul.f32 %v680, 0.0025
  %v789 = vmul.f32 %v685, 0.0025
  %v790 = vmul.f32 %v690, 0.0025
  %v791 = vmul.f32 %v695, 0.0025
  %v792 = vmul.f32 %v700, 0.0025
  %v793 = vmul.f32 %v705, 0.0025
  %v794 = vmul.f32 %v710, 0.0025
  %v795 = vmul.f32 %v715, 0.0025
  %v796 = vmul.f32 %v752, 0.0025
  %v797 = vmul.f32 %v757, 0.0025
  %v798 = vmul.f32 %v762, 0.0025
  %v799 = vmul.f32 %v767, 0.0025
  %v800 = vmul.f32 %v772, 0.0025
  %v801 = vmul.f32 %v777, 0.0025
  %v802 = vmul.f32 %v782, 0.0025
  %v803 = vmul.f32 %v787, 0.0025
  %v804 = vmul.f32 %v788, %v788
  %v805 = vmul.f32 %v789, %v789
  %v806 = vmul.f32 %v790, %v790
  %v807 = vmul.f32 %v791, %v791
  %v808 = vmul.f32 %v792, %v792
  %v809 = vmul.f32 %v793, %v793
  %v810 = vmul.f32 %v794, %v794
  %v811 = vmul.f32 %v795, %v795
  %v812 = vsub.f32 %v796, %v804
  %v813 = vsub.f32 %v797, %v805
  %v814 = vsub.f32 %v798, %v806
  %v815 = vsub.f32 %v799, %v807
  %v816 = vsub.f32 %v800, %v808
  %v817 = vsub.f32 %v801, %v809
  %v818 = vsub.f32 %v802, %v810
  %v819 = vsub.f32 %v803, %v811
  %v820 = vmax.f32 %v812, 0.0
  %v821 = vmax.f32 %v813, 0.0
  %v822 = vmax.f32 %v814, 0.0
  %v823 = vmax.f32 %v815, 0.0
  %v824 = vmax.f32 %v816, 0.0
  %v825 = vmax.f32 %v817, 0.0
  %v826 = vmax.f32 %v818, 0.0
  %v827 = vmax.f32 %v819, 0.0
  %v828 = vsub.f32 %v483, %v788
  %v829 = vsub.f32 %v541, %v788
  %v830 = vsub.f32 %v599, %v788
  %v831 = vsub.f32 %v657, %v788
  %v832 = vsub.f32 %v485, %v789
  %v833 = vsub.f32 %v543, %v789
  %v834 = vsub.f32 %v601, %v789
  %v835 = vsub.f32 %v659, %v789
  %v836 = vsub.f32 %v488, %v790
  %v837 = vsub.f32 %v546, %v790
  %v838 = vsub.f32 %v604, %v790
  %v839 = vsub.f32 %v662, %v790
  %v840 = vsub.f32 %v490, %v791
  %v841 = vsub.f32 %v548, %v791
  %v842 = vsub.f32 %v606, %v791
  %v843 = vsub.f32 %v664, %v791
  %v844 = vsub.f32 %v493, %v792
  %v845 = vsub.f32 %v551, %v792
  %v846 = vsub.f32 %v609, %v792
  %v847 = vsub.f32 %v667, %v792
  %v848 = vsub.f32 %v495, %v793
  %v849 = vsub.f32 %v553, %v793
  %v850 = vsub.f32 %v611, %v793
  %v851 = vsub.f32 %v669, %v793
  %v852 = vsub.f32 %v498, %v794
  %v853 = vsub.f32 %v556, %v794
  %v854 = vsub.f32 %v614, %v794
  %v855 = vsub.f32 %v672, %v794
  %v856 = vsub.f32 %v500, %v795
  %v857 = vsub.f32 %v558, %v795
  %v858 = vsub.f32 %v616, %v795
  %v859 = vsub.f32 %v674, %v795
  %v860 = vadd.f32 %v820, 1e-05
  %v861 = vadd.f32 %v821, 1e-05
  %v862 = vadd.f32 %v822, 1e-05
  %v863 = vadd.f32 %v823, 1e-05
  %v864 = vadd.f32 %v824, 1e-05
  %v865 = vadd.f32 %v825, 1e-05
  %v866 = vadd.f32 %v826, 1e-05
  %v867 = vadd.f32 %v827, 1e-05
  %v868 = vrsqrt.pop %v860
  %v869 = vmul.f32 %v868, %v860
  %v870 = vmul.f32 %v869, %v868
  %v871 = vmul.f32 0.5, %v870
  %v872 = vsub.f32 1.5, %v871
  %v873 = vmul.f32 %v868, %v872
  %vm874 = vweird.f32 %v860
  %vm875 = vweird.f32 %v868
  %vm876 = vmor %vm874, %vm875
  %v877 = vsel %vm876, %v868, %v873
  %v878 = vrsqrt.pop %v861
  %v879 = vmul.f32 %v878, %v861
  %v880 = vmul.f32 %v879, %v878
  %v881 = vmul.f32 0.5, %v880
  %v882 = vsub.f32 1.5, %v881
  %v883 = vmul.f32 %v878, %v882
  %vm884 = vweird.f32 %v861
  %vm885 = vweird.f32 %v878
  %vm886 = vmor %vm884, %vm885
  %v887 = vsel %vm886, %v878, %v883
  %v888 = vrsqrt.pop %v862
  %v889 = vmul.f32 %v888, %v862
  %v890 = vmul.f32 %v889, %v888
  %v891 = vmul.f32 0.5, %v890
  %v892 = vsub.f32 1.5, %v891
  %v893 = vmul.f32 %v888, %v892
  %vm894 = vweird.f32 %v862
  %vm895 = vweird.f32 %v888
  %vm896 = vmor %vm894, %vm895
  %v897 = vsel %vm896, %v888, %v893
  %v898 = vrsqrt.pop %v863
  %v899 = vmul.f32 %v898, %v863
  %v900 = vmul.f32 %v899, %v898
  %v901 = vmul.f32 0.5, %v900
  %v902 = vsub.f32 1.5, %v901
  %v903 = vmul.f32 %v898, %v902
  %vm904 = vweird.f32 %v863
  %vm905 = vweird.f32 %v898
  %vm906 = vmor %vm904, %vm905
  %v907 = vsel %vm906, %v898, %v903
  %v908 = vrsqrt.pop %v864
  %v909 = vmul.f32 %v908, %v864
  %v910 = vmul.f32 %v909, %v908
  %v911 = vmul.f32 0.5, %v910
  %v912 = vsub.f32 1.5, %v911
  %v913 = vmul.f32 %v908, %v912
  %vm914 = vweird.f32 %v864
  %vm915 = vweird.f32 %v908
  %vm916 = vmor %vm914, %vm915
  %v917 = vsel %vm916, %v908, %v913
  %v918 = vrsqrt.pop %v865
  %v919 = vmul.f32 %v918, %v865
  %v920 = vmul.f32 %v919, %v918
  %v921 = vmul.f32 0.5, %v920
  %v922 = vsub.f32 1.5, %v921
  %v923 = vmul.f32 %v918, %v922
  %vm924 = vweird.f32 %v865
  %vm925 = vweird.f32 %v918
  %vm926 = vmor %vm924, %vm925
  %v927 = vsel %vm926, %v918, %v923
  %v928 = vrsqrt.pop %v866
  %v929 = vmul.f32 %v928, %v866
  %v930 = vmul.f32 %v929, %v928
  %v931 = vmul.f32 0.5, %v930
  %v932 = vsub.f32 1.5, %v931
  %v933 = vmul.f32 %v928, %v932
  %vm934 = vweird.f32 %v866
  %vm935 = vweird.f32 %v928
  %vm936 = vmor %vm934, %vm935
  %v937 = vsel %vm936, %v928, %v933
  %v938 = vrsqrt.pop %v867
  %v939 = vmul.f32 %v938, %v867
  %v940 = vmul.f32 %v939, %v938
  %v941 = vmul.f32 0.5, %v940
  %v942 = vsub.f32 1.5, %v941
  %v943 = vmul.f32 %v938, %v942
  %vm944 = vweird.f32 %v867
  %vm945 = vweird.f32 %v938
  %vm946 = vmor %vm944, %vm945
  %v947 = vsel %vm946, %v938, %v943
  %v948 = vmul.f32 %v828, %v877
  %v949 = vmul.f32 %v829, %v877
  %v950 = vmul.f32 %v830, %v877
  %v951 = vmul.f32 %v831, %v877
  %v952 = vmul.f32 %v832, %v887
  %v953 = vmul.f32 %v833, %v887
  %v954 = vmul.f32 %v834, %v887
  %v955 = vmul.f32 %v835, %v887
  %v956 = vmul.f32 %v836, %v897
  %v957 = vmul.f32 %v837, %v897
  %v958 = vmul.f32 %v838, %v897
  %v959 = vmul.f32 %v839, %v897
  %v960 = vmul.f32 %v840, %v907
  %v961 = vmul.f32 %v841, %v907
  %v962 = vmul.f32 %v842, %v907
  %v963 = vmul.f32 %v843, %v907
  %v964 = vmul.f32 %v844, %v917
  %v965 = vmul.f32 %v845, %v917
  %v966 = vmul.f32 %v846, %v917
  %v967 = vmul.f32 %v847, %v917
  %v968 = vmul.f32 %v848, %v927
  %v969 = vmul.f32 %v849, %v927
  %v970 = vmul.f32 %v850, %v927
  %v971 = vmul.f32 %v851, %v927
  %v972 = vmul.f32 %v852, %v937
  %v973 = vmul.f32 %v853, %v937
  %v974 = vmul.f32 %v854, %v937
  %v975 = vmul.f32 %v855, %v937
  %v976 = vmul.f32 %v856, %v947
  %v977 = vmul.f32 %v857, %v947
  %v978 = vmul.f32 %v858, %v947
  %v979 = vmul.f32 %v859, %v947
  %v980 = vld [vmem:[%s3] sm:$0xf]
  %v982 = vperm.slane %v980, 0
  %v983 = vperm.slane %v980, 1
  %v984 = vperm.slane %v980, 2
  %v985 = vperm.slane %v980, 3
  %v990 = vmul.f32 %v948, %v982
  %v991 = vmul.f32 %v949, %v983
  %v992 = vmul.f32 %v950, %v984
  %v993 = vmul.f32 %v951, %v985
  %v994 = vmul.f32 %v952, %v982
  %v995 = vmul.f32 %v953, %v983
  %v996 = vmul.f32 %v954, %v984
  %v997 = vmul.f32 %v955, %v985
  %v998 = vmul.f32 %v956, %v982
  %v999 = vmul.f32 %v957, %v983
  %v1000 = vmul.f32 %v958, %v984
  %v1001 = vmul.f32 %v959, %v985
  %v1002 = vmul.f32 %v960, %v982
  %v1003 = vmul.f32 %v961, %v983
  %v1004 = vmul.f32 %v962, %v984
  %v1005 = vmul.f32 %v963, %v985
  %v1006 = vmul.f32 %v964, %v982
  %v1007 = vmul.f32 %v965, %v983
  %v1008 = vmul.f32 %v966, %v984
  %v1009 = vmul.f32 %v967, %v985
  %v1010 = vmul.f32 %v968, %v982
  %v1011 = vmul.f32 %v969, %v983
  %v1012 = vmul.f32 %v970, %v984
  %v1013 = vmul.f32 %v971, %v985
  %v1014 = vmul.f32 %v972, %v982
  %v1015 = vmul.f32 %v973, %v983
  %v1016 = vmul.f32 %v974, %v984
  %v1017 = vmul.f32 %v975, %v985
  %v1018 = vmul.f32 %v976, %v982
  %v1019 = vmul.f32 %v977, %v983
  %v1020 = vmul.f32 %v978, %v984
  %v1021 = vmul.f32 %v979, %v985
  %v1022 = vld [vmem:[%s4] sm:$0xf]
  %v1024 = vperm.slane %v1022, 0
  %v1025 = vperm.slane %v1022, 1
  %v1026 = vperm.slane %v1022, 2
  %v1027 = vperm.slane %v1022, 3
  %v1032 = vadd.f32 %v990, %v1024
  %v1033 = vadd.f32 %v991, %v1025
  %v1034 = vadd.f32 %v992, %v1026
  %v1035 = vadd.f32 %v993, %v1027
  %v1036 = vadd.f32 %v994, %v1024
  %v1037 = vadd.f32 %v995, %v1025
  %v1038 = vadd.f32 %v996, %v1026
  %v1039 = vadd.f32 %v997, %v1027
  %v1040 = vadd.f32 %v998, %v1024
  %v1041 = vadd.f32 %v999, %v1025
  %v1042 = vadd.f32 %v1000, %v1026
  %v1043 = vadd.f32 %v1001, %v1027
  %v1044 = vadd.f32 %v1002, %v1024
  %v1045 = vadd.f32 %v1003, %v1025
  %v1046 = vadd.f32 %v1004, %v1026
  %v1047 = vadd.f32 %v1005, %v1027
  %v1048 = vadd.f32 %v1006, %v1024
  %v1049 = vadd.f32 %v1007, %v1025
  %v1050 = vadd.f32 %v1008, %v1026
  %v1051 = vadd.f32 %v1009, %v1027
  %v1052 = vadd.f32 %v1010, %v1024
  %v1053 = vadd.f32 %v1011, %v1025
  %v1054 = vadd.f32 %v1012, %v1026
  %v1055 = vadd.f32 %v1013, %v1027
  %v1056 = vadd.f32 %v1014, %v1024
  %v1057 = vadd.f32 %v1015, %v1025
  %v1058 = vadd.f32 %v1016, %v1026
  %v1059 = vadd.f32 %v1017, %v1027
  %v1060 = vadd.f32 %v1018, %v1024
  %v1061 = vadd.f32 %v1019, %v1025
  %v1062 = vadd.f32 %v1020, %v1026
  %v1063 = vadd.f32 %v1021, %v1027
  %v1064 = vmax.f32 %v1032, 0.0
  %v1065 = vmax.f32 %v1033, 0.0
  %v1066 = vmax.f32 %v1034, 0.0
  %v1067 = vmax.f32 %v1035, 0.0
  %v1068 = vmax.f32 %v1036, 0.0
  %v1069 = vmax.f32 %v1037, 0.0
  %v1070 = vmax.f32 %v1038, 0.0
  %v1071 = vmax.f32 %v1039, 0.0
  %v1072 = vmax.f32 %v1040, 0.0
  %v1073 = vmax.f32 %v1041, 0.0
  %v1074 = vmax.f32 %v1042, 0.0
  %v1075 = vmax.f32 %v1043, 0.0
  %v1076 = vmax.f32 %v1044, 0.0
  %v1077 = vmax.f32 %v1045, 0.0
  %v1078 = vmax.f32 %v1046, 0.0
  %v1079 = vmax.f32 %v1047, 0.0
  %v1080 = vmax.f32 %v1048, 0.0
  %v1081 = vmax.f32 %v1049, 0.0
  %v1082 = vmax.f32 %v1050, 0.0
  %v1083 = vmax.f32 %v1051, 0.0
  %v1084 = vmax.f32 %v1052, 0.0
  %v1085 = vmax.f32 %v1053, 0.0
  %v1086 = vmax.f32 %v1054, 0.0
  %v1087 = vmax.f32 %v1055, 0.0
  %v1088 = vmax.f32 %v1056, 0.0
  %v1089 = vmax.f32 %v1057, 0.0
  %v1090 = vmax.f32 %v1058, 0.0
  %v1091 = vmax.f32 %v1059, 0.0
  %v1092 = vmax.f32 %v1060, 0.0
  %v1093 = vmax.f32 %v1061, 0.0
  %v1094 = vmax.f32 %v1062, 0.0
  %v1095 = vmax.f32 %v1063, 0.0
  %v1096 = vpack.c.bf16 %v1068, %v1064
  %v1097 = vpack.c.bf16 %v1069, %v1065
  %v1098 = vpack.c.bf16 %v1070, %v1066
  %v1099 = vpack.c.bf16 %v1071, %v1067
  %v1100 = vpack.c.bf16 %v1076, %v1072
  %v1101 = vpack.c.bf16 %v1077, %v1073
  %v1102 = vpack.c.bf16 %v1078, %v1074
  %v1103 = vpack.c.bf16 %v1079, %v1075
  %v1104 = vpack.c.bf16 %v1084, %v1080
  %v1105 = vpack.c.bf16 %v1085, %v1081
  %v1106 = vpack.c.bf16 %v1086, %v1082
  %v1107 = vpack.c.bf16 %v1087, %v1083
  %v1108 = vpack.c.bf16 %v1092, %v1088
  %v1109 = vpack.c.bf16 %v1093, %v1089
  %v1110 = vpack.c.bf16 %v1094, %v1090
  %v1111 = vpack.c.bf16 %v1095, %v1091
  %v1112 = vld [vmem:[%s5] sm:$0xff]
  %v1113 = vld [vmem:[%s5 + $0x8] sm:$0xf]
  %v1114 = vld [vmem:[%s5 + $0xc] sm:$0xff]
  %v1115 = vld [vmem:[%s5 + $0x14] sm:$0xf]
  %v1116 = vld [vmem:[%s5 + $0x18] sm:$0xff]
  %v1117 = vld [vmem:[%s5 + $0x20] sm:$0xf]
  %v1118 = vld [vmem:[%s5 + $0x24] sm:$0xff]
  %v1119 = vld [vmem:[%s5 + $0x2c] sm:$0xf]
  %v1120 = vld [vmem:[%s5 + $0x30] sm:$0xff]
  %v1121 = vld [vmem:[%s5 + $0x38] sm:$0xf]
  %v1122 = vld [vmem:[%s5 + $0x3c] sm:$0xff]
  %v1123 = vld [vmem:[%s5 + $0x44] sm:$0xf]
  %v1124 = vld [vmem:[%s5 + $0x48] sm:$0xff]
  %v1125 = vld [vmem:[%s5 + $0x50] sm:$0xf]
  %v1126 = vld [vmem:[%s5 + $0x54] sm:$0xff]
  %v1127 = vld [vmem:[%s5 + $0x5c] sm:$0xf]
  %v1128 = vld [vmem:[%s5 + $0x60] sm:$0xff]
  %v1129 = vld [vmem:[%s5 + $0x68] sm:$0xf]
  %v1130 = vld [vmem:[%s5 + $0x6c] sm:$0xff]
  %v1131 = vld [vmem:[%s5 + $0x74] sm:$0xf]
  %v1132 = vld [vmem:[%s5 + $0x78] sm:$0xff]
  %v1133 = vld [vmem:[%s5 + $0x80] sm:$0xf]
  %v1134 = vld [vmem:[%s5 + $0x84] sm:$0xff]
  %v1135 = vld [vmem:[%s5 + $0x8c] sm:$0xf]
  %v1136 = vld [vmem:[%s5 + $0x90] sm:$0xff]
  %v1137 = vld [vmem:[%s5 + $0x98] sm:$0xf]
  %v1138 = vld [vmem:[%s5 + $0x9c] sm:$0xff]
  %v1139 = vld [vmem:[%s5 + $0xa4] sm:$0xf]
  %v1140 = vld [vmem:[%s5 + $0xa8] sm:$0xff]
  %v1141 = vld [vmem:[%s5 + $0xb0] sm:$0xf]
  %v1142 = vld [vmem:[%s5 + $0xb4] sm:$0xff]
  %v1143 = vld [vmem:[%s5 + $0xbc] sm:$0xf]
  %v1144 = vld [vmem:[%s5 + $0xc0] sm:$0xff]
  %v1145 = vld [vmem:[%s5 + $0xc8] sm:$0xf]
  %v1146 = vld [vmem:[%s5 + $0xcc] sm:$0xff]
  %v1147 = vld [vmem:[%s5 + $0xd4] sm:$0xf]
  %v1148 = vld [vmem:[%s5 + $0xd8] sm:$0xff]
  %v1149 = vld [vmem:[%s5 + $0xe0] sm:$0xf]
  %v1150 = vld [vmem:[%s5 + $0xe4] sm:$0xff]
  %v1151 = vld [vmem:[%s5 + $0xec] sm:$0xf]
  %v1152 = vld [vmem:[%s5 + $0xf0] sm:$0xff]
  %v1153 = vld [vmem:[%s5 + $0xf8] sm:$0xf]
  %v1154 = vld [vmem:[%s5 + $0xfc] sm:$0xff]
  %v1155 = vld [vmem:[%s5 + $0x104] sm:$0xf]
  %v1156 = vld [vmem:[%s5 + $0x108] sm:$0xff]
  %v1157 = vld [vmem:[%s5 + $0x110] sm:$0xf]
  %v1158 = vld [vmem:[%s5 + $0x114] sm:$0xff]
  %v1159 = vld [vmem:[%s5 + $0x11c] sm:$0xf]
  %v1160 = vld [vmem:[%s5 + $0x120] sm:$0xff]
  %v1161 = vld [vmem:[%s5 + $0x128] sm:$0xf]
  %v1162 = vld [vmem:[%s5 + $0x12c] sm:$0xff]
  %v1163 = vld [vmem:[%s5 + $0x134] sm:$0xf]
  %v1164 = vld [vmem:[%s5 + $0x138] sm:$0xff]
  %v1165 = vld [vmem:[%s5 + $0x140] sm:$0xf]
  %v1166 = vld [vmem:[%s5 + $0x144] sm:$0xff]
  %v1167 = vld [vmem:[%s5 + $0x14c] sm:$0xf]
  %v1168 = vld [vmem:[%s5 + $0x150] sm:$0xff]
  %v1169 = vld [vmem:[%s5 + $0x158] sm:$0xf]
  %v1170 = vld [vmem:[%s5 + $0x15c] sm:$0xff]
  %v1171 = vld [vmem:[%s5 + $0x164] sm:$0xf]
  %v1172 = vld [vmem:[%s5 + $0x168] sm:$0xff]
  %v1173 = vld [vmem:[%s5 + $0x170] sm:$0xf]
  %v1174 = vld [vmem:[%s5 + $0x174] sm:$0xff]
  %v1175 = vld [vmem:[%s5 + $0x17c] sm:$0xf]
  %v1176 = vld [vmem:[%s5 + $0x180] sm:$0xff]
  %v1177 = vld [vmem:[%s5 + $0x188] sm:$0xf]
  %v1178 = vld [vmem:[%s5 + $0x18c] sm:$0xff]
  %v1179 = vld [vmem:[%s5 + $0x194] sm:$0xf]
  %v1180 = vld [vmem:[%s5 + $0x198] sm:$0xff]
  %v1181 = vld [vmem:[%s5 + $0x1a0] sm:$0xf]
  %v1182 = vld [vmem:[%s5 + $0x1a4] sm:$0xff]
  %v1183 = vld [vmem:[%s5 + $0x1ac] sm:$0xf]
  %v1184 = vld [vmem:[%s5 + $0x1b0] sm:$0xff]
  %v1185 = vld [vmem:[%s5 + $0x1b8] sm:$0xf]
  %v1186 = vld [vmem:[%s5 + $0x1bc] sm:$0xff]
  %v1187 = vld [vmem:[%s5 + $0x1c4] sm:$0xf]
  %v1188 = vld [vmem:[%s5 + $0x1c8] sm:$0xff]
  %v1189 = vld [vmem:[%s5 + $0x1d0] sm:$0xf]
  %v1190 = vld [vmem:[%s5 + $0x1d4] sm:$0xff]
  %v1191 = vld [vmem:[%s5 + $0x1dc] sm:$0xf]
  %v1192 = vld [vmem:[%s5 + $0x1e0] sm:$0xff]
  %v1193 = vld [vmem:[%s5 + $0x1e8] sm:$0xf]
  %v1194 = vld [vmem:[%s5 + $0x1ec] sm:$0xff]
  %v1195 = vld [vmem:[%s5 + $0x1f4] sm:$0xf]
  %v1196 = vld [vmem:[%s5 + $0x1f8] sm:$0xff]
  %v1197 = vld [vmem:[%s5 + $0x200] sm:$0xf]
  %v1198 = vld [vmem:[%s5 + $0x204] sm:$0xff]
  %v1199 = vld [vmem:[%s5 + $0x20c] sm:$0xf]
  %v1200 = vld [vmem:[%s5 + $0x210] sm:$0xff]
  %v1201 = vld [vmem:[%s5 + $0x218] sm:$0xf]
  %v1202 = vld [vmem:[%s5 + $0x21c] sm:$0xff]
  %v1203 = vld [vmem:[%s5 + $0x224] sm:$0xf]
  %v1204 = vld [vmem:[%s5 + $0x228] sm:$0xff]
  %v1205 = vld [vmem:[%s5 + $0x230] sm:$0xf]
  %v1206 = vld [vmem:[%s5 + $0x234] sm:$0xff]
  %v1207 = vld [vmem:[%s5 + $0x23c] sm:$0xf]
  %v1208 = vld [vmem:[%s5 + $0x240] sm:$0xff]
  %v1209 = vld [vmem:[%s5 + $0x248] sm:$0xf]
  %v1210 = vld [vmem:[%s5 + $0x24c] sm:$0xff]
  %v1211 = vld [vmem:[%s5 + $0x254] sm:$0xf]
  %v1212 = vld [vmem:[%s5 + $0x258] sm:$0xff]
  %v1213 = vld [vmem:[%s5 + $0x260] sm:$0xf]
  %v1214 = vld [vmem:[%s5 + $0x264] sm:$0xff]
  %v1215 = vld [vmem:[%s5 + $0x26c] sm:$0xf]
  %v1216 = vld [vmem:[%s5 + $0x270] sm:$0xff]
  %v1217 = vld [vmem:[%s5 + $0x278] sm:$0xf]
  %v1218 = vld [vmem:[%s5 + $0x27c] sm:$0xff]
  %v1219 = vld [vmem:[%s5 + $0x284] sm:$0xf]
  %v1220 = vld [vmem:[%s5 + $0x288] sm:$0xff]
  %v1221 = vld [vmem:[%s5 + $0x290] sm:$0xf]
  %v1222 = vld [vmem:[%s5 + $0x294] sm:$0xff]
  %v1223 = vld [vmem:[%s5 + $0x29c] sm:$0xf]
  %v1224 = vld [vmem:[%s5 + $0x2a0] sm:$0xff]
  %v1225 = vld [vmem:[%s5 + $0x2a8] sm:$0xf]
  %v1226 = vld [vmem:[%s5 + $0x2ac] sm:$0xff]
  %v1227 = vld [vmem:[%s5 + $0x2b4] sm:$0xf]
  %v1228 = vld [vmem:[%s5 + $0x2b8] sm:$0xff]
  %v1229 = vld [vmem:[%s5 + $0x2c0] sm:$0xf]
  %v1230 = vld [vmem:[%s5 + $0x2c4] sm:$0xff]
  %v1231 = vld [vmem:[%s5 + $0x2cc] sm:$0xf]
  %v1232 = vld [vmem:[%s5 + $0x2d0] sm:$0xff]
  %v1233 = vld [vmem:[%s5 + $0x2d8] sm:$0xf]
  %v1234 = vld [vmem:[%s5 + $0x2dc] sm:$0xff]
  %v1235 = vld [vmem:[%s5 + $0x2e4] sm:$0xf]
  %v1236 = vld [vmem:[%s5 + $0x2e8] sm:$0xff]
  %v1237 = vld [vmem:[%s5 + $0x2f0] sm:$0xf]
  %v1238 = vld [vmem:[%s5 + $0x2f4] sm:$0xff]
  %v1239 = vld [vmem:[%s5 + $0x2fc] sm:$0xf]
  %v1240 = vld [vmem:[%s6] sm:$0x7]
  %v1242 = vperm.slane %v1240, 0
  %v1243 = vperm.slane %v1240, 1
  %v1244 = vperm.slane %v1240, 2
  %v1376 = vunpack.c.l.b16 %v1112
  %v1377 = vunpack.c.h.b16 %v1112
  %v1378 = vunpack.c.l.b16 %v1113
  %v1379 = vunpack.c.l.b16 %v1114
  %v1380 = vunpack.c.h.b16 %v1114
  %v1381 = vunpack.c.l.b16 %v1115
  %v1382 = vunpack.c.l.b16 %v1116
  %v1383 = vunpack.c.h.b16 %v1116
  %v1384 = vunpack.c.l.b16 %v1117
  %v1385 = vunpack.c.l.b16 %v1118
  %v1386 = vunpack.c.h.b16 %v1118
  %v1387 = vunpack.c.l.b16 %v1119
  %v1388 = vunpack.c.l.b16 %v1120
  %v1389 = vunpack.c.h.b16 %v1120
  %v1390 = vunpack.c.l.b16 %v1121
  %v1391 = vunpack.c.l.b16 %v1122
  %v1392 = vunpack.c.h.b16 %v1122
  %v1393 = vunpack.c.l.b16 %v1123
  %v1394 = vunpack.c.l.b16 %v1124
  %v1395 = vunpack.c.h.b16 %v1124
  %v1396 = vunpack.c.l.b16 %v1125
  %v1397 = vunpack.c.l.b16 %v1126
  %v1398 = vunpack.c.h.b16 %v1126
  %v1399 = vunpack.c.l.b16 %v1127
  %v1400 = vunpack.c.l.b16 %v1128
  %v1401 = vunpack.c.h.b16 %v1128
  %v1402 = vunpack.c.l.b16 %v1129
  %v1403 = vunpack.c.l.b16 %v1130
  %v1404 = vunpack.c.h.b16 %v1130
  %v1405 = vunpack.c.l.b16 %v1131
  %v1406 = vunpack.c.l.b16 %v1132
  %v1407 = vunpack.c.h.b16 %v1132
  %v1408 = vunpack.c.l.b16 %v1133
  %v1409 = vunpack.c.l.b16 %v1134
  %v1410 = vunpack.c.h.b16 %v1134
  %v1411 = vunpack.c.l.b16 %v1135
  %v1412 = vunpack.c.l.b16 %v1136
  %v1413 = vunpack.c.h.b16 %v1136
  %v1414 = vunpack.c.l.b16 %v1137
  %v1415 = vunpack.c.l.b16 %v1138
  %v1416 = vunpack.c.h.b16 %v1138
  %v1417 = vunpack.c.l.b16 %v1139
  %v1418 = vunpack.c.l.b16 %v1140
  %v1419 = vunpack.c.h.b16 %v1140
  %v1420 = vunpack.c.l.b16 %v1141
  %v1421 = vunpack.c.l.b16 %v1142
  %v1422 = vunpack.c.h.b16 %v1142
  %v1423 = vunpack.c.l.b16 %v1143
  %v1424 = vunpack.c.l.b16 %v1144
  %v1425 = vunpack.c.h.b16 %v1144
  %v1426 = vunpack.c.l.b16 %v1145
  %v1427 = vunpack.c.l.b16 %v1146
  %v1428 = vunpack.c.h.b16 %v1146
  %v1429 = vunpack.c.l.b16 %v1147
  %v1430 = vunpack.c.l.b16 %v1148
  %v1431 = vunpack.c.h.b16 %v1148
  %v1432 = vunpack.c.l.b16 %v1149
  %v1433 = vunpack.c.l.b16 %v1150
  %v1434 = vunpack.c.h.b16 %v1150
  %v1435 = vunpack.c.l.b16 %v1151
  %v1436 = vunpack.c.l.b16 %v1152
  %v1437 = vunpack.c.h.b16 %v1152
  %v1438 = vunpack.c.l.b16 %v1153
  %v1439 = vunpack.c.l.b16 %v1154
  %v1440 = vunpack.c.h.b16 %v1154
  %v1441 = vunpack.c.l.b16 %v1155
  %v1442 = vunpack.c.l.b16 %v1156
  %v1443 = vunpack.c.h.b16 %v1156
  %v1444 = vunpack.c.l.b16 %v1157
  %v1445 = vunpack.c.l.b16 %v1158
  %v1446 = vunpack.c.h.b16 %v1158
  %v1447 = vunpack.c.l.b16 %v1159
  %v1448 = vunpack.c.l.b16 %v1160
  %v1449 = vunpack.c.h.b16 %v1160
  %v1450 = vunpack.c.l.b16 %v1161
  %v1451 = vunpack.c.l.b16 %v1162
  %v1452 = vunpack.c.h.b16 %v1162
  %v1453 = vunpack.c.l.b16 %v1163
  %v1454 = vunpack.c.l.b16 %v1164
  %v1455 = vunpack.c.h.b16 %v1164
  %v1456 = vunpack.c.l.b16 %v1165
  %v1457 = vunpack.c.l.b16 %v1166
  %v1458 = vunpack.c.h.b16 %v1166
  %v1459 = vunpack.c.l.b16 %v1167
  %v1460 = vunpack.c.l.b16 %v1168
  %v1461 = vunpack.c.h.b16 %v1168
  %v1462 = vunpack.c.l.b16 %v1169
  %v1463 = vunpack.c.l.b16 %v1170
  %v1464 = vunpack.c.h.b16 %v1170
  %v1465 = vunpack.c.l.b16 %v1171
  %v1466 = vunpack.c.l.b16 %v1172
  %v1467 = vunpack.c.h.b16 %v1172
  %v1468 = vunpack.c.l.b16 %v1173
  %v1469 = vunpack.c.l.b16 %v1174
  %v1470 = vunpack.c.h.b16 %v1174
  %v1471 = vunpack.c.l.b16 %v1175
  %v1472 = vunpack.c.l.b16 %v1176
  %v1473 = vunpack.c.h.b16 %v1176
  %v1474 = vunpack.c.l.b16 %v1177
  %v1475 = vunpack.c.l.b16 %v1178
  %v1476 = vunpack.c.h.b16 %v1178
  %v1477 = vunpack.c.l.b16 %v1179
  %v1478 = vunpack.c.l.b16 %v1180
  %v1479 = vunpack.c.h.b16 %v1180
  %v1480 = vunpack.c.l.b16 %v1181
  %v1481 = vunpack.c.l.b16 %v1182
  %v1482 = vunpack.c.h.b16 %v1182
  %v1483 = vunpack.c.l.b16 %v1183
  %v1484 = vunpack.c.l.b16 %v1184
  %v1485 = vunpack.c.h.b16 %v1184
  %v1486 = vunpack.c.l.b16 %v1185
  %v1487 = vunpack.c.l.b16 %v1186
  %v1488 = vunpack.c.h.b16 %v1186
  %v1489 = vunpack.c.l.b16 %v1187
  %v1490 = vunpack.c.l.b16 %v1188
  %v1491 = vunpack.c.h.b16 %v1188
  %v1492 = vunpack.c.l.b16 %v1189
  %v1493 = vunpack.c.l.b16 %v1190
  %v1494 = vunpack.c.h.b16 %v1190
  %v1495 = vunpack.c.l.b16 %v1191
  %v1496 = vunpack.c.l.b16 %v1192
  %v1497 = vunpack.c.h.b16 %v1192
  %v1498 = vunpack.c.l.b16 %v1193
  %v1499 = vunpack.c.l.b16 %v1194
  %v1500 = vunpack.c.h.b16 %v1194
  %v1501 = vunpack.c.l.b16 %v1195
  %v1502 = vunpack.c.l.b16 %v1196
  %v1503 = vunpack.c.h.b16 %v1196
  %v1504 = vunpack.c.l.b16 %v1197
  %v1505 = vunpack.c.l.b16 %v1198
  %v1506 = vunpack.c.h.b16 %v1198
  %v1507 = vunpack.c.l.b16 %v1199
  %v1508 = vunpack.c.l.b16 %v1200
  %v1509 = vunpack.c.h.b16 %v1200
  %v1510 = vunpack.c.l.b16 %v1201
  %v1511 = vunpack.c.l.b16 %v1202
  %v1512 = vunpack.c.h.b16 %v1202
  %v1513 = vunpack.c.l.b16 %v1203
  %v1514 = vunpack.c.l.b16 %v1204
  %v1515 = vunpack.c.h.b16 %v1204
  %v1516 = vunpack.c.l.b16 %v1205
  %v1517 = vunpack.c.l.b16 %v1206
  %v1518 = vunpack.c.h.b16 %v1206
  %v1519 = vunpack.c.l.b16 %v1207
  %v1520 = vunpack.c.l.b16 %v1208
  %v1521 = vunpack.c.h.b16 %v1208
  %v1522 = vunpack.c.l.b16 %v1209
  %v1523 = vunpack.c.l.b16 %v1210
  %v1524 = vunpack.c.h.b16 %v1210
  %v1525 = vunpack.c.l.b16 %v1211
  %v1526 = vunpack.c.l.b16 %v1212
  %v1527 = vunpack.c.h.b16 %v1212
  %v1528 = vunpack.c.l.b16 %v1213
  %v1529 = vunpack.c.l.b16 %v1214
  %v1530 = vunpack.c.h.b16 %v1214
  %v1531 = vunpack.c.l.b16 %v1215
  %v1532 = vunpack.c.l.b16 %v1216
  %v1533 = vunpack.c.h.b16 %v1216
  %v1534 = vunpack.c.l.b16 %v1217
  %v1535 = vunpack.c.l.b16 %v1218
  %v1536 = vunpack.c.h.b16 %v1218
  %v1537 = vunpack.c.l.b16 %v1219
  %v1538 = vunpack.c.l.b16 %v1220
  %v1539 = vunpack.c.h.b16 %v1220
  %v1540 = vunpack.c.l.b16 %v1221
  %v1541 = vunpack.c.l.b16 %v1222
  %v1542 = vunpack.c.h.b16 %v1222
  %v1543 = vunpack.c.l.b16 %v1223
  %v1544 = vunpack.c.l.b16 %v1224
  %v1545 = vunpack.c.h.b16 %v1224
  %v1546 = vunpack.c.l.b16 %v1225
  %v1547 = vunpack.c.l.b16 %v1226
  %v1548 = vunpack.c.h.b16 %v1226
  %v1549 = vunpack.c.l.b16 %v1227
  %v1550 = vunpack.c.l.b16 %v1228
  %v1551 = vunpack.c.h.b16 %v1228
  %v1552 = vunpack.c.l.b16 %v1229
  %v1553 = vunpack.c.l.b16 %v1230
  %v1554 = vunpack.c.h.b16 %v1230
  %v1555 = vunpack.c.l.b16 %v1231
  %v1556 = vunpack.c.l.b16 %v1232
  %v1557 = vunpack.c.h.b16 %v1232
  %v1558 = vunpack.c.l.b16 %v1233
  %v1559 = vunpack.c.l.b16 %v1234
  %v1560 = vunpack.c.h.b16 %v1234
  %v1561 = vunpack.c.l.b16 %v1235
  %v1562 = vunpack.c.l.b16 %v1236
  %v1563 = vunpack.c.h.b16 %v1236
  %v1564 = vunpack.c.l.b16 %v1237
  %v1565 = vunpack.c.l.b16 %v1238
  %v1566 = vunpack.c.h.b16 %v1238
  %v1567 = vunpack.c.l.b16 %v1239
  %v1568 = vpack.c.b16 %v1379, %v1376
  %v1569 = vpack.c.b16 %v1380, %v1377
  %v1570 = vpack.c.b16 %v1381, %v1378
  %v1571 = vpack.c.b16 %v1385, %v1382
  %v1572 = vpack.c.b16 %v1386, %v1383
  %v1573 = vpack.c.b16 %v1387, %v1384
  %v1574 = vpack.c.b16 %v1391, %v1388
  %v1575 = vpack.c.b16 %v1392, %v1389
  %v1576 = vpack.c.b16 %v1393, %v1390
  %v1577 = vpack.c.b16 %v1397, %v1394
  %v1578 = vpack.c.b16 %v1398, %v1395
  %v1579 = vpack.c.b16 %v1399, %v1396
  %v1580 = vpack.c.b16 %v1403, %v1400
  %v1581 = vpack.c.b16 %v1404, %v1401
  %v1582 = vpack.c.b16 %v1405, %v1402
  %v1583 = vpack.c.b16 %v1409, %v1406
  %v1584 = vpack.c.b16 %v1410, %v1407
  %v1585 = vpack.c.b16 %v1411, %v1408
  %v1586 = vpack.c.b16 %v1415, %v1412
  %v1587 = vpack.c.b16 %v1416, %v1413
  %v1588 = vpack.c.b16 %v1417, %v1414
  %v1589 = vpack.c.b16 %v1421, %v1418
  %v1590 = vpack.c.b16 %v1422, %v1419
  %v1591 = vpack.c.b16 %v1423, %v1420
  %v1592 = vpack.c.b16 %v1427, %v1424
  %v1593 = vpack.c.b16 %v1428, %v1425
  %v1594 = vpack.c.b16 %v1429, %v1426
  %v1595 = vpack.c.b16 %v1433, %v1430
  %v1596 = vpack.c.b16 %v1434, %v1431
  %v1597 = vpack.c.b16 %v1435, %v1432
  %v1598 = vpack.c.b16 %v1439, %v1436
  %v1599 = vpack.c.b16 %v1440, %v1437
  %v1600 = vpack.c.b16 %v1441, %v1438
  %v1601 = vpack.c.b16 %v1445, %v1442
  %v1602 = vpack.c.b16 %v1446, %v1443
  %v1603 = vpack.c.b16 %v1447, %v1444
  %v1604 = vpack.c.b16 %v1451, %v1448
  %v1605 = vpack.c.b16 %v1452, %v1449
  %v1606 = vpack.c.b16 %v1453, %v1450
  %v1607 = vpack.c.b16 %v1457, %v1454
  %v1608 = vpack.c.b16 %v1458, %v1455
  %v1609 = vpack.c.b16 %v1459, %v1456
  %v1610 = vpack.c.b16 %v1463, %v1460
  %v1611 = vpack.c.b16 %v1464, %v1461
  %v1612 = vpack.c.b16 %v1465, %v1462
  %v1613 = vpack.c.b16 %v1469, %v1466
  %v1614 = vpack.c.b16 %v1470, %v1467
  %v1615 = vpack.c.b16 %v1471, %v1468
  %v1616 = vpack.c.b16 %v1475, %v1472
  %v1617 = vpack.c.b16 %v1476, %v1473
  %v1618 = vpack.c.b16 %v1477, %v1474
  %v1619 = vpack.c.b16 %v1481, %v1478
  %v1620 = vpack.c.b16 %v1482, %v1479
  %v1621 = vpack.c.b16 %v1483, %v1480
  %v1622 = vpack.c.b16 %v1487, %v1484
  %v1623 = vpack.c.b16 %v1488, %v1485
  %v1624 = vpack.c.b16 %v1489, %v1486
  %v1625 = vpack.c.b16 %v1493, %v1490
  %v1626 = vpack.c.b16 %v1494, %v1491
  %v1627 = vpack.c.b16 %v1495, %v1492
  %v1628 = vpack.c.b16 %v1499, %v1496
  %v1629 = vpack.c.b16 %v1500, %v1497
  %v1630 = vpack.c.b16 %v1501, %v1498
  %v1631 = vpack.c.b16 %v1505, %v1502
  %v1632 = vpack.c.b16 %v1506, %v1503
  %v1633 = vpack.c.b16 %v1507, %v1504
  %v1634 = vpack.c.b16 %v1511, %v1508
  %v1635 = vpack.c.b16 %v1512, %v1509
  %v1636 = vpack.c.b16 %v1513, %v1510
  %v1637 = vpack.c.b16 %v1517, %v1514
  %v1638 = vpack.c.b16 %v1518, %v1515
  %v1639 = vpack.c.b16 %v1519, %v1516
  %v1640 = vpack.c.b16 %v1523, %v1520
  %v1641 = vpack.c.b16 %v1524, %v1521
  %v1642 = vpack.c.b16 %v1525, %v1522
  %v1643 = vpack.c.b16 %v1529, %v1526
  %v1644 = vpack.c.b16 %v1530, %v1527
  %v1645 = vpack.c.b16 %v1531, %v1528
  %v1646 = vpack.c.b16 %v1535, %v1532
  %v1647 = vpack.c.b16 %v1536, %v1533
  %v1648 = vpack.c.b16 %v1537, %v1534
  %v1649 = vpack.c.b16 %v1541, %v1538
  %v1650 = vpack.c.b16 %v1542, %v1539
  %v1651 = vpack.c.b16 %v1543, %v1540
  %v1652 = vpack.c.b16 %v1547, %v1544
  %v1653 = vpack.c.b16 %v1548, %v1545
  %v1654 = vpack.c.b16 %v1549, %v1546
  %v1655 = vpack.c.b16 %v1553, %v1550
  %v1656 = vpack.c.b16 %v1554, %v1551
  %v1657 = vpack.c.b16 %v1555, %v1552
  %v1658 = vpack.c.b16 %v1559, %v1556
  %v1659 = vpack.c.b16 %v1560, %v1557
  %v1660 = vpack.c.b16 %v1561, %v1558
  %v1661 = vpack.c.b16 %v1565, %v1562
  %v1662 = vpack.c.b16 %v1566, %v1563
  %v1663 = vpack.c.b16 %v1567, %v1564
  %1760 = vmatpush.bf16.msra.mxu0 %v1589
  %1761 = vmatpush.bf16.msra.mxu0 %v1586
  %1762 = vmatpush.bf16.msra.mxu0 %v1583
  %1763 = vmatpush.bf16.msra.mxu0 %v1580
  %1764 = vmatpush.bf16.msra.mxu0 %v1577
  %1765 = vmatpush.bf16.msra.mxu0 %v1574
  %1766 = vmatpush.bf16.msra.mxu0 %v1571
  %1767 = vmatpush.bf16.msra.mxu0 %v1568
  %1768 = vmatmul.bf16.gmra.mxu0 %v1096
  %v1769 = vpop.f32.mrf.mxu0
  %v1770 = vadd.f32 %v1242, %v1769
  %v1771 = vpop.f32.mrf.mxu0
  %v1772 = vadd.f32 %v1242, %v1771
  %1773 = vmatmul.bf16.gmra.mxu0 %v1100
  %v1774 = vpop.f32.mrf.mxu0
  %v1775 = vadd.f32 %v1242, %v1774
  %v1776 = vpop.f32.mrf.mxu0
  %v1777 = vadd.f32 %v1242, %v1776
  %1778 = vmatmul.bf16.gmra.mxu0 %v1104
  %v1779 = vpop.f32.mrf.mxu0
  %v1780 = vadd.f32 %v1242, %v1779
  %v1781 = vpop.f32.mrf.mxu0
  %v1782 = vadd.f32 %v1242, %v1781
  %1783 = vmatmul.bf16.gmra.mxu0 %v1108
  %v1784 = vpop.f32.mrf.mxu0
  %v1785 = vadd.f32 %v1242, %v1784
  %v1786 = vpop.f32.mrf.mxu0
  %v1787 = vadd.f32 %v1242, %v1786
  %1788 = vdwg.mxu0
  %1789 = vmatpush.bf16.msra.mxu0 %v1613
  %1790 = vmatpush.bf16.msra.mxu0 %v1610
  %1791 = vmatpush.bf16.msra.mxu0 %v1607
  %1792 = vmatpush.bf16.msra.mxu0 %v1604
  %1793 = vmatpush.bf16.msra.mxu0 %v1601
  %1794 = vmatpush.bf16.msra.mxu0 %v1598
  %1795 = vmatpush.bf16.msra.mxu0 %v1595
  %1796 = vmatpush.bf16.msra.mxu0 %v1592
  %1797 = vmatmul.bf16.gmra.mxu0 %v1097
  %v1798 = vpop.f32.mrf.mxu0
  %v1799 = vadd.f32 %v1770, %v1798
  %v1800 = vpop.f32.mrf.mxu0
  %v1801 = vadd.f32 %v1772, %v1800
  %1802 = vmatmul.bf16.gmra.mxu0 %v1101
  %v1803 = vpop.f32.mrf.mxu0
  %v1804 = vadd.f32 %v1775, %v1803
  %v1805 = vpop.f32.mrf.mxu0
  %v1806 = vadd.f32 %v1777, %v1805
  %1807 = vmatmul.bf16.gmra.mxu0 %v1105
  %v1808 = vpop.f32.mrf.mxu0
  %v1809 = vadd.f32 %v1780, %v1808
  %v1810 = vpop.f32.mrf.mxu0
  %v1811 = vadd.f32 %v1782, %v1810
  %1812 = vmatmul.bf16.gmra.mxu0 %v1109
  %v1813 = vpop.f32.mrf.mxu0
  %v1814 = vadd.f32 %v1785, %v1813
  %v1815 = vpop.f32.mrf.mxu0
  %v1816 = vadd.f32 %v1787, %v1815
  %1817 = vdwg.mxu0
  %1818 = vmatpush.bf16.msra.mxu0 %v1637
  %1819 = vmatpush.bf16.msra.mxu0 %v1634
  %1820 = vmatpush.bf16.msra.mxu0 %v1631
  %1821 = vmatpush.bf16.msra.mxu0 %v1628
  %1822 = vmatpush.bf16.msra.mxu0 %v1625
  %1823 = vmatpush.bf16.msra.mxu0 %v1622
  %1824 = vmatpush.bf16.msra.mxu0 %v1619
  %1825 = vmatpush.bf16.msra.mxu0 %v1616
  %1826 = vmatmul.bf16.gmra.mxu0 %v1098
  %v1827 = vpop.f32.mrf.mxu0
  %v1828 = vadd.f32 %v1799, %v1827
  %v1829 = vpop.f32.mrf.mxu0
  %v1830 = vadd.f32 %v1801, %v1829
  %1831 = vmatmul.bf16.gmra.mxu0 %v1102
  %v1832 = vpop.f32.mrf.mxu0
  %v1833 = vadd.f32 %v1804, %v1832
  %v1834 = vpop.f32.mrf.mxu0
  %v1835 = vadd.f32 %v1806, %v1834
  %1836 = vmatmul.bf16.gmra.mxu0 %v1106
  %v1837 = vpop.f32.mrf.mxu0
  %v1838 = vadd.f32 %v1809, %v1837
  %v1839 = vpop.f32.mrf.mxu0
  %v1840 = vadd.f32 %v1811, %v1839
  %1841 = vmatmul.bf16.gmra.mxu0 %v1110
  %v1842 = vpop.f32.mrf.mxu0
  %v1843 = vadd.f32 %v1814, %v1842
  %v1844 = vpop.f32.mrf.mxu0
  %v1845 = vadd.f32 %v1816, %v1844
  %1846 = vdwg.mxu0
  %1847 = vmatpush.bf16.msra.mxu0 %v1661
  %1848 = vmatpush.bf16.msra.mxu0 %v1658
  %1849 = vmatpush.bf16.msra.mxu0 %v1655
  %1850 = vmatpush.bf16.msra.mxu0 %v1652
  %1851 = vmatpush.bf16.msra.mxu0 %v1649
  %1852 = vmatpush.bf16.msra.mxu0 %v1646
  %1853 = vmatpush.bf16.msra.mxu0 %v1643
  %1854 = vmatpush.bf16.msra.mxu0 %v1640
  %1855 = vmatmul.bf16.gmra.mxu0 %v1099
  %v1856 = vpop.f32.mrf.mxu0
  %v1857 = vadd.f32 %v1828, %v1856
  %v1858 = vpop.f32.mrf.mxu0
  %v1859 = vadd.f32 %v1830, %v1858
  %1860 = vmatmul.bf16.gmra.mxu0 %v1103
  %v1861 = vpop.f32.mrf.mxu0
  %v1862 = vadd.f32 %v1833, %v1861
  %v1863 = vpop.f32.mrf.mxu0
  %v1864 = vadd.f32 %v1835, %v1863
  %1865 = vmatmul.bf16.gmra.mxu0 %v1107
  %v1866 = vpop.f32.mrf.mxu0
  %v1867 = vadd.f32 %v1838, %v1866
  %v1868 = vpop.f32.mrf.mxu0
  %v1869 = vadd.f32 %v1840, %v1868
  %1870 = vmatmul.bf16.gmra.mxu0 %v1111
  %v1871 = vpop.f32.mrf.mxu0
  %v1872 = vadd.f32 %v1843, %v1871
  %v1873 = vpop.f32.mrf.mxu0
  %v1874 = vadd.f32 %v1845, %v1873
  %1875 = vdwg.mxu0
  %1876 = vmatpush.bf16.msra.mxu0 %v1590
  %1877 = vmatpush.bf16.msra.mxu0 %v1587
  %1878 = vmatpush.bf16.msra.mxu0 %v1584
  %1879 = vmatpush.bf16.msra.mxu0 %v1581
  %1880 = vmatpush.bf16.msra.mxu0 %v1578
  %1881 = vmatpush.bf16.msra.mxu0 %v1575
  %1882 = vmatpush.bf16.msra.mxu0 %v1572
  %1883 = vmatpush.bf16.msra.mxu0 %v1569
  %1884 = vmatmul.bf16.gmra.mxu0 %v1096
  %v1885 = vpop.f32.mrf.mxu0
  %v1886 = vadd.f32 %v1243, %v1885
  %v1887 = vpop.f32.mrf.mxu0
  %v1888 = vadd.f32 %v1243, %v1887
  %1889 = vmatmul.bf16.gmra.mxu0 %v1100
  %v1890 = vpop.f32.mrf.mxu0
  %v1891 = vadd.f32 %v1243, %v1890
  %v1892 = vpop.f32.mrf.mxu0
  %v1893 = vadd.f32 %v1243, %v1892
  %1894 = vmatmul.bf16.gmra.mxu0 %v1104
  %v1895 = vpop.f32.mrf.mxu0
  %v1896 = vadd.f32 %v1243, %v1895
  %v1897 = vpop.f32.mrf.mxu0
  %v1898 = vadd.f32 %v1243, %v1897
  %1899 = vmatmul.bf16.gmra.mxu0 %v1108
  %v1900 = vpop.f32.mrf.mxu0
  %v1901 = vadd.f32 %v1243, %v1900
  %v1902 = vpop.f32.mrf.mxu0
  %v1903 = vadd.f32 %v1243, %v1902
  %1904 = vdwg.mxu0
  %1905 = vmatpush.bf16.msra.mxu0 %v1614
  %1906 = vmatpush.bf16.msra.mxu0 %v1611
  %1907 = vmatpush.bf16.msra.mxu0 %v1608
  %1908 = vmatpush.bf16.msra.mxu0 %v1605
  %1909 = vmatpush.bf16.msra.mxu0 %v1602
  %1910 = vmatpush.bf16.msra.mxu0 %v1599
  %1911 = vmatpush.bf16.msra.mxu0 %v1596
  %1912 = vmatpush.bf16.msra.mxu0 %v1593
  %1913 = vmatmul.bf16.gmra.mxu0 %v1097
  %v1914 = vpop.f32.mrf.mxu0
  %v1915 = vadd.f32 %v1886, %v1914
  %v1916 = vpop.f32.mrf.mxu0
  %v1917 = vadd.f32 %v1888, %v1916
  %1918 = vmatmul.bf16.gmra.mxu0 %v1101
  %v1919 = vpop.f32.mrf.mxu0
  %v1920 = vadd.f32 %v1891, %v1919
  %v1921 = vpop.f32.mrf.mxu0
  %v1922 = vadd.f32 %v1893, %v1921
  %1923 = vmatmul.bf16.gmra.mxu0 %v1105
  %v1924 = vpop.f32.mrf.mxu0
  %v1925 = vadd.f32 %v1896, %v1924
  %v1926 = vpop.f32.mrf.mxu0
  %v1927 = vadd.f32 %v1898, %v1926
  %1928 = vmatmul.bf16.gmra.mxu0 %v1109
  %v1929 = vpop.f32.mrf.mxu0
  %v1930 = vadd.f32 %v1901, %v1929
  %v1931 = vpop.f32.mrf.mxu0
  %v1932 = vadd.f32 %v1903, %v1931
  %1933 = vdwg.mxu0
  %1934 = vmatpush.bf16.msra.mxu0 %v1638
  %1935 = vmatpush.bf16.msra.mxu0 %v1635
  %1936 = vmatpush.bf16.msra.mxu0 %v1632
  %1937 = vmatpush.bf16.msra.mxu0 %v1629
  %1938 = vmatpush.bf16.msra.mxu0 %v1626
  %1939 = vmatpush.bf16.msra.mxu0 %v1623
  %1940 = vmatpush.bf16.msra.mxu0 %v1620
  %1941 = vmatpush.bf16.msra.mxu0 %v1617
  %1942 = vmatmul.bf16.gmra.mxu0 %v1098
  %v1943 = vpop.f32.mrf.mxu0
  %v1944 = vadd.f32 %v1915, %v1943
  %v1945 = vpop.f32.mrf.mxu0
  %v1946 = vadd.f32 %v1917, %v1945
  %1947 = vmatmul.bf16.gmra.mxu0 %v1102
  %v1948 = vpop.f32.mrf.mxu0
  %v1949 = vadd.f32 %v1920, %v1948
  %v1950 = vpop.f32.mrf.mxu0
  %v1951 = vadd.f32 %v1922, %v1950
  %1952 = vmatmul.bf16.gmra.mxu0 %v1106
  %v1953 = vpop.f32.mrf.mxu0
  %v1954 = vadd.f32 %v1925, %v1953
  %v1955 = vpop.f32.mrf.mxu0
  %v1956 = vadd.f32 %v1927, %v1955
  %1957 = vmatmul.bf16.gmra.mxu0 %v1110
  %v1958 = vpop.f32.mrf.mxu0
  %v1959 = vadd.f32 %v1930, %v1958
  %v1960 = vpop.f32.mrf.mxu0
  %v1961 = vadd.f32 %v1932, %v1960
  %1962 = vdwg.mxu0
  %1963 = vmatpush.bf16.msra.mxu0 %v1662
  %1964 = vmatpush.bf16.msra.mxu0 %v1659
  %1965 = vmatpush.bf16.msra.mxu0 %v1656
  %1966 = vmatpush.bf16.msra.mxu0 %v1653
  %1967 = vmatpush.bf16.msra.mxu0 %v1650
  %1968 = vmatpush.bf16.msra.mxu0 %v1647
  %1969 = vmatpush.bf16.msra.mxu0 %v1644
  %1970 = vmatpush.bf16.msra.mxu0 %v1641
  %1971 = vmatmul.bf16.gmra.mxu0 %v1099
  %v1972 = vpop.f32.mrf.mxu0
  %v1973 = vadd.f32 %v1944, %v1972
  %v1974 = vpop.f32.mrf.mxu0
  %v1975 = vadd.f32 %v1946, %v1974
  %1976 = vmatmul.bf16.gmra.mxu0 %v1103
  %v1977 = vpop.f32.mrf.mxu0
  %v1978 = vadd.f32 %v1949, %v1977
  %v1979 = vpop.f32.mrf.mxu0
  %v1980 = vadd.f32 %v1951, %v1979
  %1981 = vmatmul.bf16.gmra.mxu0 %v1107
  %v1982 = vpop.f32.mrf.mxu0
  %v1983 = vadd.f32 %v1954, %v1982
  %v1984 = vpop.f32.mrf.mxu0
  %v1985 = vadd.f32 %v1956, %v1984
  %1986 = vmatmul.bf16.gmra.mxu0 %v1111
  %v1987 = vpop.f32.mrf.mxu0
  %v1988 = vadd.f32 %v1959, %v1987
  %v1989 = vpop.f32.mrf.mxu0
  %v1990 = vadd.f32 %v1961, %v1989
  %1991 = vdwg.mxu0
  %1992 = vmatpush.bf16.msra.mxu0 %v1591
  %1993 = vmatpush.bf16.msra.mxu0 %v1588
  %1994 = vmatpush.bf16.msra.mxu0 %v1585
  %1995 = vmatpush.bf16.msra.mxu0 %v1582
  %1996 = vmatpush.bf16.msra.mxu0 %v1579
  %1997 = vmatpush.bf16.msra.mxu0 %v1576
  %1998 = vmatpush.bf16.msra.mxu0 %v1573
  %1999 = vmatpush.bf16.msra.mxu0 %v1570
  %2000 = vmatmul.bf16.gmra.mxu0 %v1096
  %v2001 = vpop.f32.mrf.mxu0
  %v2002 = vadd.f32 %v1244, %v2001
  %v2003 = vpop.f32.mrf.mxu0
  %v2004 = vadd.f32 %v1244, %v2003
  %2005 = vmatmul.bf16.gmra.mxu0 %v1100
  %v2006 = vpop.f32.mrf.mxu0
  %v2007 = vadd.f32 %v1244, %v2006
  %v2008 = vpop.f32.mrf.mxu0
  %v2009 = vadd.f32 %v1244, %v2008
  %2010 = vmatmul.bf16.gmra.mxu0 %v1104
  %v2011 = vpop.f32.mrf.mxu0
  %v2012 = vadd.f32 %v1244, %v2011
  %v2013 = vpop.f32.mrf.mxu0
  %v2014 = vadd.f32 %v1244, %v2013
  %2015 = vmatmul.bf16.gmra.mxu0 %v1108
  %v2016 = vpop.f32.mrf.mxu0
  %v2017 = vadd.f32 %v1244, %v2016
  %v2018 = vpop.f32.mrf.mxu0
  %v2019 = vadd.f32 %v1244, %v2018
  %2020 = vdwg.mxu0
  %2021 = vmatpush.bf16.msra.mxu0 %v1615
  %2022 = vmatpush.bf16.msra.mxu0 %v1612
  %2023 = vmatpush.bf16.msra.mxu0 %v1609
  %2024 = vmatpush.bf16.msra.mxu0 %v1606
  %2025 = vmatpush.bf16.msra.mxu0 %v1603
  %2026 = vmatpush.bf16.msra.mxu0 %v1600
  %2027 = vmatpush.bf16.msra.mxu0 %v1597
  %2028 = vmatpush.bf16.msra.mxu0 %v1594
  %2029 = vmatmul.bf16.gmra.mxu0 %v1097
  %v2030 = vpop.f32.mrf.mxu0
  %v2031 = vadd.f32 %v2002, %v2030
  %v2032 = vpop.f32.mrf.mxu0
  %v2033 = vadd.f32 %v2004, %v2032
  %2034 = vmatmul.bf16.gmra.mxu0 %v1101
  %v2035 = vpop.f32.mrf.mxu0
  %v2036 = vadd.f32 %v2007, %v2035
  %v2037 = vpop.f32.mrf.mxu0
  %v2038 = vadd.f32 %v2009, %v2037
  %2039 = vmatmul.bf16.gmra.mxu0 %v1105
  %v2040 = vpop.f32.mrf.mxu0
  %v2041 = vadd.f32 %v2012, %v2040
  %v2042 = vpop.f32.mrf.mxu0
  %v2043 = vadd.f32 %v2014, %v2042
  %2044 = vmatmul.bf16.gmra.mxu0 %v1109
  %v2045 = vpop.f32.mrf.mxu0
  %v2046 = vadd.f32 %v2017, %v2045
  %v2047 = vpop.f32.mrf.mxu0
  %v2048 = vadd.f32 %v2019, %v2047
  %2049 = vdwg.mxu0
  %2050 = vmatpush.bf16.msra.mxu0 %v1639
  %2051 = vmatpush.bf16.msra.mxu0 %v1636
  %2052 = vmatpush.bf16.msra.mxu0 %v1633
  %2053 = vmatpush.bf16.msra.mxu0 %v1630
  %2054 = vmatpush.bf16.msra.mxu0 %v1627
  %2055 = vmatpush.bf16.msra.mxu0 %v1624
  %2056 = vmatpush.bf16.msra.mxu0 %v1621
  %2057 = vmatpush.bf16.msra.mxu0 %v1618
  %2058 = vmatmul.bf16.gmra.mxu0 %v1098
  %v2059 = vpop.f32.mrf.mxu0
  %v2060 = vadd.f32 %v2031, %v2059
  %v2061 = vpop.f32.mrf.mxu0
  %v2062 = vadd.f32 %v2033, %v2061
  %2063 = vmatmul.bf16.gmra.mxu0 %v1102
  %v2064 = vpop.f32.mrf.mxu0
  %v2065 = vadd.f32 %v2036, %v2064
  %v2066 = vpop.f32.mrf.mxu0
  %v2067 = vadd.f32 %v2038, %v2066
  %2068 = vmatmul.bf16.gmra.mxu0 %v1106
  %v2069 = vpop.f32.mrf.mxu0
  %v2070 = vadd.f32 %v2041, %v2069
  %v2071 = vpop.f32.mrf.mxu0
  %v2072 = vadd.f32 %v2043, %v2071
  %2073 = vmatmul.bf16.gmra.mxu0 %v1110
  %v2074 = vpop.f32.mrf.mxu0
  %v2075 = vadd.f32 %v2046, %v2074
  %v2076 = vpop.f32.mrf.mxu0
  %v2077 = vadd.f32 %v2048, %v2076
  %2078 = vdwg.mxu0
  %2079 = vmatpush.bf16.msra.mxu0 %v1663
  %2080 = vmatpush.bf16.msra.mxu0 %v1660
  %2081 = vmatpush.bf16.msra.mxu0 %v1657
  %2082 = vmatpush.bf16.msra.mxu0 %v1654
  %2083 = vmatpush.bf16.msra.mxu0 %v1651
  %2084 = vmatpush.bf16.msra.mxu0 %v1648
  %2085 = vmatpush.bf16.msra.mxu0 %v1645
  %2086 = vmatpush.bf16.msra.mxu0 %v1642
  %2087 = vmatmul.bf16.gmra.mxu0 %v1099
  %v2088 = vpop.f32.mrf.mxu0
  %v2089 = vadd.f32 %v2060, %v2088
  %v2090 = vpop.f32.mrf.mxu0
  %v2091 = vadd.f32 %v2062, %v2090
  %2092 = vmatmul.bf16.gmra.mxu0 %v1103
  %v2093 = vpop.f32.mrf.mxu0
  %v2094 = vadd.f32 %v2065, %v2093
  %v2095 = vpop.f32.mrf.mxu0
  %v2096 = vadd.f32 %v2067, %v2095
  %2097 = vmatmul.bf16.gmra.mxu0 %v1107
  %v2098 = vpop.f32.mrf.mxu0
  %v2099 = vadd.f32 %v2070, %v2098
  %v2100 = vpop.f32.mrf.mxu0
  %v2101 = vadd.f32 %v2072, %v2100
  %2102 = vmatmul.bf16.gmra.mxu0 %v1111
  %v2103 = vpop.f32.mrf.mxu0
  %v2104 = vadd.f32 %v2075, %v2103
  %v2105 = vpop.f32.mrf.mxu0
  %v2106 = vadd.f32 %v2077, %v2105
  %2107 = vdwg.mxu0
  %2108 = vst [vmem:[%s7] sm:$0xff] %v1857
  %2109 = vst [vmem:[%s7 + $0x8] sm:$0xff] %v1973
  %2110 = vst [vmem:[%s7 + $0x10] sm:$0xff] %v2089
  %2111 = vst [vmem:[%s7 + $0x18] sm:$0xff] %v1859
  %2112 = vst [vmem:[%s7 + $0x20] sm:$0xff] %v1975
  %2113 = vst [vmem:[%s7 + $0x28] sm:$0xff] %v2091
  %2114 = vst [vmem:[%s7 + $0x30] sm:$0xff] %v1862
  %2115 = vst [vmem:[%s7 + $0x38] sm:$0xff] %v1978
  %2116 = vst [vmem:[%s7 + $0x40] sm:$0xff] %v2094
  %2117 = vst [vmem:[%s7 + $0x48] sm:$0xff] %v1864
  %2118 = vst [vmem:[%s7 + $0x50] sm:$0xff] %v1980
  %2119 = vst [vmem:[%s7 + $0x58] sm:$0xff] %v2096
  %2120 = vst [vmem:[%s7 + $0x60] sm:$0xff] %v1867
  %2121 = vst [vmem:[%s7 + $0x68] sm:$0xff] %v1983
  %2122 = vst [vmem:[%s7 + $0x70] sm:$0xff] %v2099
  %2123 = vst [vmem:[%s7 + $0x78] sm:$0xff] %v1869
  %2124 = vst [vmem:[%s7 + $0x80] sm:$0xff] %v1985
  %2125 = vst [vmem:[%s7 + $0x88] sm:$0xff] %v2101
  %2126 = vst [vmem:[%s7 + $0x90] sm:$0xff] %v1872
  %2127 = vst [vmem:[%s7 + $0x98] sm:$0xff] %v1988
  %2128 = vst [vmem:[%s7 + $0xa0] sm:$0xff] %v2104
  %2129 = vst [vmem:[%s7 + $0xa8] sm:$0xff] %v1874
  %2130 = vst [vmem:[%s7 + $0xb0] sm:$0xff] %v1990
  %2131 = vst [vmem:[%s7 + $0xb8] sm:$0xff] %v2106
  // Predicated region
  $region30: #{rnn_forward.3} parent=0 // pred_check
    _
  $region31: #{rnn_forward.3} parent=0 // pred_check_branch
    %2133 = sbr.rel (0) target = $region33
  $region32: #{rnn_forward.3} parent=0 // pred_region
    _
  $region33: #{rnn_forward.3} parent=0 // pred_fallthru
    _
  // Predicated region
  $region34: #{rnn_forward.3} parent=0 // pred_check
    _
  $region35: #{rnn_forward.3} parent=0 // pred_check_branch
    %2135 = sbr.rel (0) target = $region37
  $region36: #{rnn_forward.3} parent=0 // pred_region
    _
  $region37: #{rnn_forward.3} parent=0 // pred_fallthru
    _

// kernel: rnn_forward.5
$region0: #{rnn_forward.5}
  #allocation0 [shape = 'u32[]', space=smem, size = 0x4, offset = 0x4, fixed_abs, tag = 'smem constant byte address 0x4 - core index']
  #allocation1 [shape = 'u32[72,128]{1,0:T(1,128)}', space=vmem, size = 0x9000, scoped, tag = 'internal scratch']
  %s0 = inlined_call_operand.vmem [shape: f32[8,8,256], index: 0, kind: input, shape index: {}]
  %s1 = inlined_call_operand.vmem [shape: bf16[8,8,128], index: 1, kind: input, shape index: {}]
  %s2 = inlined_call_operand.vmem [shape: s32[8,1], index: 2, kind: input, shape index: {}]
  %s3 = inlined_call_operand.vmem [shape: bf16[128,256], index: 3, kind: input, shape index: {}]
  %s4 = inlined_call_operand.vmem [shape: f32[1,256], index: 4, kind: input, shape index: {}]
  %s5 = inlined_call_operand.vmem [shape: f32[1,256], index: 5, kind: input, shape index: {}]
  %s6 = inlined_call_operand.vmem [shape: f32[1,256], index: 6, kind: input, shape index: {}]
  %s7 = inlined_call_operand.vmem [shape: bf16[256,512], index: 7, kind: input, shape index: {}]
  %s8 = inlined_call_operand.vmem [shape: f32[1,512], index: 8, kind: input, shape index: {}]
  %s9 = inlined_call_operand.vmem [shape: f32[8,1], index: 9, kind: output, shape index: {}]
  %s10 = sld [smem:[#allocation0]]
  $region54: #{rnn_forward.5} parent=0
    _
  %s12 = ssub.s32 1, %s10
  %s13 = scalar_select 0, %s12, %s10
  // Predicated region
  $region2: #{rnn_forward.5} parent=0 // pred_check
    _
  $region3: #{rnn_forward.5} parent=0 // pred_check_branch
    %15 = sbr.rel (0) target = $region5
  $region4: #{rnn_forward.5} parent=0 // pred_region
    _
  $region5: #{rnn_forward.5} parent=0 // pred_fallthru
    _
  // Predicated region
  $region6: #{rnn_forward.5} parent=0 // pred_check
    _
  $region7: #{rnn_forward.5} parent=0 // pred_check_branch
    %17 = sbr.rel (0) target = $region9
  $region8: #{rnn_forward.5} parent=0 // pred_region
    _
  $region9: #{rnn_forward.5} parent=0 // pred_fallthru
    _
  // Predicated region
  $region10: #{rnn_forward.5} parent=0 // pred_check
    _
  $region11: #{rnn_forward.5} parent=0 // pred_check_branch
    %19 = sbr.rel (0) target = $region13
  $region12: #{rnn_forward.5} parent=0 // pred_region
    _
  $region13: #{rnn_forward.5} parent=0 // pred_fallthru
    _
  // Predicated region
  $region14: #{rnn_forward.5} parent=0 // pred_check
    _
  $region15: #{rnn_forward.5} parent=0 // pred_check_branch
    %21 = sbr.rel (0) target = $region17
  $region16: #{rnn_forward.5} parent=0 // pred_region
    _
  $region17: #{rnn_forward.5} parent=0 // pred_fallthru
    _
  // Predicated region
  $region18: #{rnn_forward.5} parent=0 // pred_check
    _
  $region19: #{rnn_forward.5} parent=0 // pred_check_branch
    %23 = sbr.rel (0) target = $region21
  $region20: #{rnn_forward.5} parent=0 // pred_region
    _
  $region21: #{rnn_forward.5} parent=0 // pred_fallthru
    _
  // Predicated region
  $region22: #{rnn_forward.5} parent=0 // pred_check
    _
  $region23: #{rnn_forward.5} parent=0 // pred_check_branch
    %25 = sbr.rel (0) target = $region25
  $region24: #{rnn_forward.5} parent=0 // pred_region
    _
  $region25: #{rnn_forward.5} parent=0 // pred_fallthru
    _
  // Predicated region
  $region26: #{rnn_forward.5} parent=0 // pred_check
    _
  $region27: #{rnn_forward.5} parent=0 // pred_check_branch
    %27 = sbr.rel (0) target = $region29
  $region28: #{rnn_forward.5} parent=0 // pred_region
    _
  $region29: #{rnn_forward.5} parent=0 // pred_fallthru
    _
  // Predicated region
  $region30: #{rnn_forward.5} parent=0 // pred_check
    _
  $region31: #{rnn_forward.5} parent=0 // pred_check_branch
    %29 = sbr.rel (0) target = $region33
  $region32: #{rnn_forward.5} parent=0 // pred_region
    _
  $region33: #{rnn_forward.5} parent=0 // pred_fallthru
    _
  // Predicated region
  $region34: #{rnn_forward.5} parent=0 // pred_check
    _
  $region35: #{rnn_forward.5} parent=0 // pred_check_branch
    %31 = sbr.rel (0) target = $region37
  $region36: #{rnn_forward.5} parent=0 // pred_region
    _
  $region37: #{rnn_forward.5} parent=0 // pred_fallthru
    _
  %v32 = vld [vmem:[%s0] sm:$0xff]
  %v33 = vld [vmem:[%s0 + $0x8] sm:$0xff]
  %v34 = vld [vmem:[%s0 + $0x10] sm:$0xff]
  %v35 = vld [vmem:[%s0 + $0x18] sm:$0xff]
  %v36 = vld [vmem:[%s0 + $0x20] sm:$0xff]
  %v37 = vld [vmem:[%s0 + $0x28] sm:$0xff]
  %v38 = vld [vmem:[%s0 + $0x30] sm:$0xff]
  %v39 = vld [vmem:[%s0 + $0x38] sm:$0xff]
  %v40 = vld [vmem:[%s0 + $0x40] sm:$0xff]
  %v41 = vld [vmem:[%s0 + $0x48] sm:$0xff]
  %v42 = vld [vmem:[%s0 + $0x50] sm:$0xff]
  %v43 = vld [vmem:[%s0 + $0x58] sm:$0xff]
  %v44 = vld [vmem:[%s0 + $0x60] sm:$0xff]
  %v45 = vld [vmem:[%s0 + $0x68] sm:$0xff]
  %v46 = vld [vmem:[%s0 + $0x70] sm:$0xff]
  %v47 = vld [vmem:[%s0 + $0x78] sm:$0xff]
  %v48 = vld [vmem:[%s1] sm:$0xf]
  %v49 = vld [vmem:[%s1 + $0x4] sm:$0xf]
  %v50 = vld [vmem:[%s1 + $0x8] sm:$0xf]
  %v51 = vld [vmem:[%s1 + $0xc] sm:$0xf]
  %v52 = vld [vmem:[%s1 + $0x10] sm:$0xf]
  %v53 = vld [vmem:[%s1 + $0x14] sm:$0xf]
  %v54 = vld [vmem:[%s1 + $0x18] sm:$0xf]
  %v55 = vld [vmem:[%s1 + $0x1c] sm:$0xf]
  %v56 = vld [vmem:[%s3] sm:$0xff]
  %v57 = vld [vmem:[%s3 + $0x8] sm:$0xff]
  %v58 = vld [vmem:[%s3 + $0x10] sm:$0xff]
  %v59 = vld [vmem:[%s3 + $0x18] sm:$0xff]
  %v60 = vld [vmem:[%s3 + $0x20] sm:$0xff]
  %v61 = vld [vmem:[%s3 + $0x28] sm:$0xff]
  %v62 = vld [vmem:[%s3 + $0x30] sm:$0xff]
  %v63 = vld [vmem:[%s3 + $0x38] sm:$0xff]
  %v64 = vld [vmem:[%s3 + $0x40] sm:$0xff]
  %v65 = vld [vmem:[%s3 + $0x48] sm:$0xff]
  %v66 = vld [vmem:[%s3 + $0x50] sm:$0xff]
  %v67 = vld [vmem:[%s3 + $0x58] sm:$0xff]
  %v68 = vld [vmem:[%s3 + $0x60] sm:$0xff]
  %v69 = vld [vmem:[%s3 + $0x68] sm:$0xff]
  %v70 = vld [vmem:[%s3 + $0x70] sm:$0xff]
  %v71 = vld [vmem:[%s3 + $0x78] sm:$0xff]
  %v72 = vld [vmem:[%s4] sm:$0x3]
  %v74 = vperm.slane %v72, 0
  %v75 = vperm.slane %v72, 1
  %v86 = vunpack.c.l.b16 %v48
  %v87 = vunpack.c.l.b16 %v49
  %v88 = vunpack.c.l.b16 %v50
  %v89 = vunpack.c.l.b16 %v51
  %v90 = vunpack.c.l.b16 %v52
  %v91 = vunpack.c.l.b16 %v53
  %v92 = vunpack.c.l.b16 %v54
  %v93 = vunpack.c.l.b16 %v55
  %v94 = vpack.c.b16 %v87, %v86
  %v95 = vpack.c.b16 %v89, %v88
  %v96 = vpack.c.b16 %v91, %v90
  %v97 = vpack.c.b16 %v93, %v92
  %v118 = vunpack.c.l.b16 %v56
  %v119 = vunpack.c.h.b16 %v56
  %v120 = vunpack.c.l.b16 %v57
  %v121 = vunpack.c.h.b16 %v57
  %v122 = vunpack.c.l.b16 %v58
  %v123 = vunpack.c.h.b16 %v58
  %v124 = vunpack.c.l.b16 %v59
  %v125 = vunpack.c.h.b16 %v59
  %v126 = vunpack.c.l.b16 %v60
  %v127 = vunpack.c.h.b16 %v60
  %v128 = vunpack.c.l.b16 %v61
  %v129 = vunpack.c.h.b16 %v61
  %v130 = vunpack.c.l.b16 %v62
  %v131 = vunpack.c.h.b16 %v62
  %v132 = vunpack.c.l.b16 %v63
  %v133 = vunpack.c.h.b16 %v63
  %v134 = vunpack.c.l.b16 %v64
  %v135 = vunpack.c.h.b16 %v64
  %v136 = vunpack.c.l.b16 %v65
  %v137 = vunpack.c.h.b16 %v65
  %v138 = vunpack.c.l.b16 %v66
  %v139 = vunpack.c.h.b16 %v66
  %v140 = vunpack.c.l.b16 %v67
  %v141 = vunpack.c.h.b16 %v67
  %v142 = vunpack.c.l.b16 %v68
  %v143 = vunpack.c.h.b16 %v68
  %v144 = vunpack.c.l.b16 %v69
  %v145 = vunpack.c.h.b16 %v69
  %v146 = vunpack.c.l.b16 %v70
  %v147 = vunpack.c.h.b16 %v70
  %v148 = vunpack.c.l.b16 %v71
  %v149 = vunpack.c.h.b16 %v71
  %v150 = vpack.c.b16 %v120, %v118
  %v151 = vpack.c.b16 %v121, %v119
  %v152 = vpack.c.b16 %v124, %v122
  %v153 = vpack.c.b16 %v125, %v123
  %v154 = vpack.c.b16 %v128, %v126
  %v155 = vpack.c.b16 %v129, %v127
  %v156 = vpack.c.b16 %v132, %v130
  %v157 = vpack.c.b16 %v133, %v131
  %v158 = vpack.c.b16 %v136, %v134
  %v159 = vpack.c.b16 %v137, %v135
  %v160 = vpack.c.b16 %v140, %v138
  %v161 = vpack.c.b16 %v141, %v139
  %v162 = vpack.c.b16 %v144, %v142
  %v163 = vpack.c.b16 %v145, %v143
  %v164 = vpack.c.b16 %v148, %v146
  %v165 = vpack.c.b16 %v149, %v147
  %182 = vmatpush.bf16.msra.mxu0 %v164
  %183 = vmatpush.bf16.msra.mxu0 %v162
  %184 = vmatpush.bf16.msra.mxu0 %v160
  %185 = vmatpush.bf16.msra.mxu0 %v158
  %186 = vmatpush.bf16.msra.mxu0 %v156
  %187 = vmatpush.bf16.msra.mxu0 %v154
  %188 = vmatpush.bf16.msra.mxu0 %v152
  %189 = vmatpush.bf16.msra.mxu0 %v150
  %190 = vmatmul.bf16.gmra.mxu0 %v94
  %v191 = vpop.f32.mrf.mxu0
  %v192 = vadd.f32 %v74, %v191
  %v193 = vpop.f32.mrf.mxu0
  %v194 = vadd.f32 %v74, %v193
  %195 = vmatmul.bf16.gmra.mxu0 %v95
  %v196 = vpop.f32.mrf.mxu0
  %v197 = vadd.f32 %v74, %v196
  %v198 = vpop.f32.mrf.mxu0
  %v199 = vadd.f32 %v74, %v198
  %200 = vmatmul.bf16.gmra.mxu0 %v96
  %v201 = vpop.f32.mrf.mxu0
  %v202 = vadd.f32 %v74, %v201
  %v203 = vpop.f32.mrf.mxu0
  %v204 = vadd.f32 %v74, %v203
  %205 = vmatmul.bf16.gmra.mxu0 %v97
  %v206 = vpop.f32.mrf.mxu0
  %v207 = vadd.f32 %v74, %v206
  %v208 = vpop.f32.mrf.mxu0
  %v209 = vadd.f32 %v74, %v208
  %210 = vdwg.mxu0
  %211 = vmatpush.bf16.msra.mxu0 %v165
  %212 = vmatpush.bf16.msra.mxu0 %v163
  %213 = vmatpush.bf16.msra.mxu0 %v161
  %214 = vmatpush.bf16.msra.mxu0 %v159
  %215 = vmatpush.bf16.msra.mxu0 %v157
  %216 = vmatpush.bf16.msra.mxu0 %v155
  %217 = vmatpush.bf16.msra.mxu0 %v153
  %218 = vmatpush.bf16.msra.mxu0 %v151
  %219 = vmatmul.bf16.gmra.mxu0 %v94
  %v220 = vpop.f32.mrf.mxu0
  %v221 = vadd.f32 %v75, %v220
  %v222 = vpop.f32.mrf.mxu0
  %v223 = vadd.f32 %v75, %v222
  %224 = vmatmul.bf16.gmra.mxu0 %v95
  %v225 = vpop.f32.mrf.mxu0
  %v226 = vadd.f32 %v75, %v225
  %v227 = vpop.f32.mrf.mxu0
  %v228 = vadd.f32 %v75, %v227
  %229 = vmatmul.bf16.gmra.mxu0 %v96
  %v230 = vpop.f32.mrf.mxu0
  %v231 = vadd.f32 %v75, %v230
  %v232 = vpop.f32.mrf.mxu0
  %v233 = vadd.f32 %v75, %v232
  %234 = vmatmul.bf16.gmra.mxu0 %v97
  %v235 = vpop.f32.mrf.mxu0
  %v236 = vadd.f32 %v75, %v235
  %v237 = vpop.f32.mrf.mxu0
  %v238 = vadd.f32 %v75, %v237
  %239 = vdwg.mxu0
  %v240 = vadd.f32 %v192, %v221
  %241 = vadd.xlane.f32.xlu0 %v240
  %v242 = vpop.xlane.xlu0 %241
  %v243 = vadd.f32 %v194, %v223
  %244 = vadd.xlane.f32.xlu0 %v243
  %v245 = vpop.xlane.xlu0 %244
  %v246 = vadd.f32 %v197, %v226
  %247 = vadd.xlane.f32.xlu0 %v246
  %v248 = vpop.xlane.xlu0 %247
  %v249 = vadd.f32 %v199, %v228
  %250 = vadd.xlane.f32.xlu0 %v249
  %v251 = vpop.xlane.xlu0 %250
  %v252 = vadd.f32 %v202, %v231
  %253 = vadd.xlane.f32.xlu0 %v252
  %v254 = vpop.xlane.xlu0 %253
  %v255 = vadd.f32 %v204, %v233
  %256 = vadd.xlane.f32.xlu0 %v255
  %v257 = vpop.xlane.xlu0 %256
  %v258 = vadd.f32 %v207, %v236
  %259 = vadd.xlane.f32.xlu0 %v258
  %v260 = vpop.xlane.xlu0 %259
  %v261 = vadd.f32 %v209, %v238
  %262 = vadd.xlane.f32.xlu0 %v261
  %v263 = vpop.xlane.xlu0 %262
  %v264 = vmul.f32 %v192, %v192
  %v265 = vmul.f32 %v221, %v221
  %v266 = vmul.f32 %v194, %v194
  %v267 = vmul.f32 %v223, %v223
  %v268 = vmul.f32 %v197, %v197
  %v269 = vmul.f32 %v226, %v226
  %v270 = vmul.f32 %v199, %v199
  %v271 = vmul.f32 %v228, %v228
  %v272 = vmul.f32 %v202, %v202
  %v273 = vmul.f32 %v231, %v231
  %v274 = vmul.f32 %v204, %v204
  %v275 = vmul.f32 %v233, %v233
  %v276 = vmul.f32 %v207, %v207
  %v277 = vmul.f32 %v236, %v236
  %v278 = vmul.f32 %v209, %v209
  %v279 = vmul.f32 %v238, %v238
  %v280 = vadd.f32 %v264, %v265
  %281 = vadd.xlane.f32.xlu0 %v280
  %v282 = vpop.xlane.xlu0 %281
  %v283 = vadd.f32 %v266, %v267
  %284 = vadd.xlane.f32.xlu0 %v283
  %v285 = vpop.xlane.xlu0 %284
  %v286 = vadd.f32 %v268, %v269
  %287 = vadd.xlane.f32.xlu0 %v286
  %v288 = vpop.xlane.xlu0 %287
  %v289 = vadd.f32 %v270, %v271
  %290 = vadd.xlane.f32.xlu0 %v289
  %v291 = vpop.xlane.xlu0 %290
  %v292 = vadd.f32 %v272, %v273
  %293 = vadd.xlane.f32.xlu0 %v292
  %v294 = vpop.xlane.xlu0 %293
  %v295 = vadd.f32 %v274, %v275
  %296 = vadd.xlane.f32.xlu0 %v295
  %v297 = vpop.xlane.xlu0 %296
  %v298 = vadd.f32 %v276, %v277
  %299 = vadd.xlane.f32.xlu0 %v298
  %v300 = vpop.xlane.xlu0 %299
  %v301 = vadd.f32 %v278, %v279
  %302 = vadd.xlane.f32.xlu0 %v301
  %v303 = vpop.xlane.xlu0 %302
  %v304 = vmul.f32 %v242, 0.00390625
  %v305 = vmul.f32 %v245, 0.00390625
  %v306 = vmul.f32 %v248, 0.00390625
  %v307 = vmul.f32 %v251, 0.00390625
  %v308 = vmul.f32 %v254, 0.00390625
  %v309 = vmul.f32 %v257, 0.00390625
  %v310 = vmul.f32 %v260, 0.00390625
  %v311 = vmul.f32 %v263, 0.00390625
  %v312 = vmul.f32 %v282, 0.00390625
  %v313 = vmul.f32 %v285, 0.00390625
  %v314 = vmul.f32 %v288, 0.00390625
  %v315 = vmul.f32 %v291, 0.00390625
  %v316 = vmul.f32 %v294, 0.00390625
  %v317 = vmul.f32 %v297, 0.00390625
  %v318 = vmul.f32 %v300, 0.00390625
  %v319 = vmul.f32 %v303, 0.00390625
  %v320 = vmul.f32 %v304, %v304
  %v321 = vmul.f32 %v305, %v305
  %v322 = vmul.f32 %v306, %v306
  %v323 = vmul.f32 %v307, %v307
  %v324 = vmul.f32 %v308, %v308
  %v325 = vmul.f32 %v309, %v309
  %v326 = vmul.f32 %v310, %v310
  %v327 = vmul.f32 %v311, %v311
  %v328 = vsub.f32 %v312, %v320
  %v329 = vsub.f32 %v313, %v321
  %v330 = vsub.f32 %v314, %v322
  %v331 = vsub.f32 %v315, %v323
  %v332 = vsub.f32 %v316, %v324
  %v333 = vsub.f32 %v317, %v325
  %v334 = vsub.f32 %v318, %v326
  %v335 = vsub.f32 %v319, %v327
  %v336 = vmax.f32 %v328, 0.0
  %v337 = vmax.f32 %v329, 0.0
  %v338 = vmax.f32 %v330, 0.0
  %v339 = vmax.f32 %v331, 0.0
  %v340 = vmax.f32 %v332, 0.0
  %v341 = vmax.f32 %v333, 0.0
  %v342 = vmax.f32 %v334, 0.0
  %v343 = vmax.f32 %v335, 0.0
  %v344 = vsub.f32 %v192, %v304
  %v345 = vsub.f32 %v221, %v304
  %v346 = vsub.f32 %v194, %v305
  %v347 = vsub.f32 %v223, %v305
  %v348 = vsub.f32 %v197, %v306
  %v349 = vsub.f32 %v226, %v306
  %v350 = vsub.f32 %v199, %v307
  %v351 = vsub.f32 %v228, %v307
  %v352 = vsub.f32 %v202, %v308
  %v353 = vsub.f32 %v231, %v308
  %v354 = vsub.f32 %v204, %v309
  %v355 = vsub.f32 %v233, %v309
  %v356 = vsub.f32 %v207, %v310
  %v357 = vsub.f32 %v236, %v310
  %v358 = vsub.f32 %v209, %v311
  %v359 = vsub.f32 %v238, %v311
  %v360 = vadd.f32 %v336, 1e-05
  %v361 = vadd.f32 %v337, 1e-05
  %v362 = vadd.f32 %v338, 1e-05
  %v363 = vadd.f32 %v339, 1e-05
  %v364 = vadd.f32 %v340, 1e-05
  %v365 = vadd.f32 %v341, 1e-05
  %v366 = vadd.f32 %v342, 1e-05
  %v367 = vadd.f32 %v343, 1e-05
  %v368 = vrsqrt.pop %v360
  %v369 = vmul.f32 %v368, %v360
  %v370 = vmul.f32 %v369, %v368
  %v371 = vmul.f32 0.5, %v370
  %v372 = vsub.f32 1.5, %v371
  %v373 = vmul.f32 %v368, %v372
  %vm374 = vweird.f32 %v360
  %vm375 = vweird.f32 %v368
  %vm376 = vmor %vm374, %vm375
  %v377 = vsel %vm376, %v368, %v373
  %v378 = vrsqrt.pop %v361
  %v379 = vmul.f32 %v378, %v361
  %v380 = vmul.f32 %v379, %v378
  %v381 = vmul.f32 0.5, %v380
  %v382 = vsub.f32 1.5, %v381
  %v383 = vmul.f32 %v378, %v382
  %vm384 = vweird.f32 %v361
  %vm385 = vweird.f32 %v378
  %vm386 = vmor %vm384, %vm385
  %v387 = vsel %vm386, %v378, %v383
  %v388 = vrsqrt.pop %v362
  %v389 = vmul.f32 %v388, %v362
  %v390 = vmul.f32 %v389, %v388
  %v391 = vmul.f32 0.5, %v390
  %v392 = vsub.f32 1.5, %v391
  %v393 = vmul.f32 %v388, %v392
  %vm394 = vweird.f32 %v362
  %vm395 = vweird.f32 %v388
  %vm396 = vmor %vm394, %vm395
  %v397 = vsel %vm396, %v388, %v393
  %v398 = vrsqrt.pop %v363
  %v399 = vmul.f32 %v398, %v363
  %v400 = vmul.f32 %v399, %v398
  %v401 = vmul.f32 0.5, %v400
  %v402 = vsub.f32 1.5, %v401
  %v403 = vmul.f32 %v398, %v402
  %vm404 = vweird.f32 %v363
  %vm405 = vweird.f32 %v398
  %vm406 = vmor %vm404, %vm405
  %v407 = vsel %vm406, %v398, %v403
  %v408 = vrsqrt.pop %v364
  %v409 = vmul.f32 %v408, %v364
  %v410 = vmul.f32 %v409, %v408
  %v411 = vmul.f32 0.5, %v410
  %v412 = vsub.f32 1.5, %v411
  %v413 = vmul.f32 %v408, %v412
  %vm414 = vweird.f32 %v364
  %vm415 = vweird.f32 %v408
  %vm416 = vmor %vm414, %vm415
  %v417 = vsel %vm416, %v408, %v413
  %v418 = vrsqrt.pop %v365
  %v419 = vmul.f32 %v418, %v365
  %v420 = vmul.f32 %v419, %v418
  %v421 = vmul.f32 0.5, %v420
  %v422 = vsub.f32 1.5, %v421
  %v423 = vmul.f32 %v418, %v422
  %vm424 = vweird.f32 %v365
  %vm425 = vweird.f32 %v418
  %vm426 = vmor %vm424, %vm425
  %v427 = vsel %vm426, %v418, %v423
  %v428 = vrsqrt.pop %v366
  %v429 = vmul.f32 %v428, %v366
  %v430 = vmul.f32 %v429, %v428
  %v431 = vmul.f32 0.5, %v430
  %v432 = vsub.f32 1.5, %v431
  %v433 = vmul.f32 %v428, %v432
  %vm434 = vweird.f32 %v366
  %vm435 = vweird.f32 %v428
  %vm436 = vmor %vm434, %vm435
  %v437 = vsel %vm436, %v428, %v433
  %v438 = vrsqrt.pop %v367
  %v439 = vmul.f32 %v438, %v367
  %v440 = vmul.f32 %v439, %v438
  %v441 = vmul.f32 0.5, %v440
  %v442 = vsub.f32 1.5, %v441
  %v443 = vmul.f32 %v438, %v442
  %vm444 = vweird.f32 %v367
  %vm445 = vweird.f32 %v438
  %vm446 = vmor %vm444, %vm445
  %v447 = vsel %vm446, %v438, %v443
  %v448 = vmul.f32 %v344, %v377
  %v449 = vmul.f32 %v345, %v377
  %v450 = vmul.f32 %v346, %v387
  %v451 = vmul.f32 %v347, %v387
  %v452 = vmul.f32 %v348, %v397
  %v453 = vmul.f32 %v349, %v397
  %v454 = vmul.f32 %v350, %v407
  %v455 = vmul.f32 %v351, %v407
  %v456 = vmul.f32 %v352, %v417
  %v457 = vmul.f32 %v353, %v417
  %v458 = vmul.f32 %v354, %v427
  %v459 = vmul.f32 %v355, %v427
  %v460 = vmul.f32 %v356, %v437
  %v461 = vmul.f32 %v357, %v437
  %v462 = vmul.f32 %v358, %v447
  %v463 = vmul.f32 %v359, %v447
  %v464 = vld [vmem:[%s5] sm:$0x3]
  %v466 = vperm.slane %v464, 0
  %v467 = vperm.slane %v464, 1
  %v470 = vmul.f32 %v448, %v466
  %v471 = vmul.f32 %v449, %v467
  %v472 = vmul.f32 %v450, %v466
  %v473 = vmul.f32 %v451, %v467
  %v474 = vmul.f32 %v452, %v466
  %v475 = vmul.f32 %v453, %v467
  %v476 = vmul.f32 %v454, %v466
  %v477 = vmul.f32 %v455, %v467
  %v478 = vmul.f32 %v456, %v466
  %v479 = vmul.f32 %v457, %v467
  %v480 = vmul.f32 %v458, %v466
  %v481 = vmul.f32 %v459, %v467
  %v482 = vmul.f32 %v460, %v466
  %v483 = vmul.f32 %v461, %v467
  %v484 = vmul.f32 %v462, %v466
  %v485 = vmul.f32 %v463, %v467
  %v486 = vld [vmem:[%s6] sm:$0x3]
  %v488 = vperm.slane %v486, 0
  %v489 = vperm.slane %v486, 1
  %v492 = vadd.f32 %v470, %v488
  %v493 = vadd.f32 %v471, %v489
  %v494 = vadd.f32 %v472, %v488
  %v495 = vadd.f32 %v473, %v489
  %v496 = vadd.f32 %v474, %v488
  %v497 = vadd.f32 %v475, %v489
  %v498 = vadd.f32 %v476, %v488
  %v499 = vadd.f32 %v477, %v489
  %v500 = vadd.f32 %v478, %v488
  %v501 = vadd.f32 %v479, %v489
  %v502 = vadd.f32 %v480, %v488
  %v503 = vadd.f32 %v481, %v489
  %v504 = vadd.f32 %v482, %v488
  %v505 = vadd.f32 %v483, %v489
  %v506 = vadd.f32 %v484, %v488
  %v507 = vadd.f32 %v485, %v489
  %v508 = vmax.f32 %v492, 0.0
  %v509 = vmax.f32 %v493, 0.0
  %v510 = vmax.f32 %v494, 0.0
  %v511 = vmax.f32 %v495, 0.0
  %v512 = vmax.f32 %v496, 0.0
  %v513 = vmax.f32 %v497, 0.0
  %v514 = vmax.f32 %v498, 0.0
  %v515 = vmax.f32 %v499, 0.0
  %v516 = vmax.f32 %v500, 0.0
  %v517 = vmax.f32 %v501, 0.0
  %v518 = vmax.f32 %v502, 0.0
  %v519 = vmax.f32 %v503, 0.0
  %v520 = vmax.f32 %v504, 0.0
  %v521 = vmax.f32 %v505, 0.0
  %v522 = vmax.f32 %v506, 0.0
  %v523 = vmax.f32 %v507, 0.0
  %v524 = vpack.c.bf16 %v510, %v508
  %v525 = vpack.c.bf16 %v511, %v509
  %v526 = vpack.c.bf16 %v514, %v512
  %v527 = vpack.c.bf16 %v515, %v513
  %v528 = vpack.c.bf16 %v518, %v516
  %v529 = vpack.c.bf16 %v519, %v517
  %v530 = vpack.c.bf16 %v522, %v520
  %v531 = vpack.c.bf16 %v523, %v521
  %v532 = vld [vmem:[%s7] sm:$0xff]
  %v533 = vld [vmem:[%s7 + $0x8] sm:$0xff]
  %v534 = vld [vmem:[%s7 + $0x10] sm:$0xff]
  %v535 = vld [vmem:[%s7 + $0x18] sm:$0xff]
  %v536 = vld [vmem:[%s7 + $0x20] sm:$0xff]
  %v537 = vld [vmem:[%s7 + $0x28] sm:$0xff]
  %v538 = vld [vmem:[%s7 + $0x30] sm:$0xff]
  %v539 = vld [vmem:[%s7 + $0x38] sm:$0xff]
  %v540 = vld [vmem:[%s7 + $0x40] sm:$0xff]
  %v541 = vld [vmem:[%s7 + $0x48] sm:$0xff]
  %v542 = vld [vmem:[%s7 + $0x50] sm:$0xff]
  %v543 = vld [vmem:[%s7 + $0x58] sm:$0xff]
  %v544 = vld [vmem:[%s7 + $0x60] sm:$0xff]
  %v545 = vld [vmem:[%s7 + $0x68] sm:$0xff]
  %v546 = vld [vmem:[%s7 + $0x70] sm:$0xff]
  %v547 = vld [vmem:[%s7 + $0x78] sm:$0xff]
  %v548 = vld [vmem:[%s7 + $0x80] sm:$0xff]
  %v549 = vld [vmem:[%s7 + $0x88] sm:$0xff]
  %v550 = vld [vmem:[%s7 + $0x90] sm:$0xff]
  %v551 = vld [vmem:[%s7 + $0x98] sm:$0xff]
  %v552 = vld [vmem:[%s7 + $0xa0] sm:$0xff]
  %v553 = vld [vmem:[%s7 + $0xa8] sm:$0xff]
  %v554 = vld [vmem:[%s7 + $0xb0] sm:$0xff]
  %v555 = vld [vmem:[%s7 + $0xb8] sm:$0xff]
  %v556 = vld [vmem:[%s7 + $0xc0] sm:$0xff]
  %v557 = vld [vmem:[%s7 + $0xc8] sm:$0xff]
  %v558 = vld [vmem:[%s7 + $0xd0] sm:$0xff]
  %v559 = vld [vmem:[%s7 + $0xd8] sm:$0xff]
  %v560 = vld [vmem:[%s7 + $0xe0] sm:$0xff]
  %v561 = vld [vmem:[%s7 + $0xe8] sm:$0xff]
  %v562 = vld [vmem:[%s7 + $0xf0] sm:$0xff]
  %v563 = vld [vmem:[%s7 + $0xf8] sm:$0xff]
  %v564 = vld [vmem:[%s7 + $0x100] sm:$0xff]
  %v565 = vld [vmem:[%s7 + $0x108] sm:$0xff]
  %v566 = vld [vmem:[%s7 + $0x110] sm:$0xff]
  %v567 = vld [vmem:[%s7 + $0x118] sm:$0xff]
  %v568 = vld [vmem:[%s7 + $0x120] sm:$0xff]
  %v569 = vld [vmem:[%s7 + $0x128] sm:$0xff]
  %v570 = vld [vmem:[%s7 + $0x130] sm:$0xff]
  %v571 = vld [vmem:[%s7 + $0x138] sm:$0xff]
  %v572 = vld [vmem:[%s7 + $0x140] sm:$0xff]
  %v573 = vld [vmem:[%s7 + $0x148] sm:$0xff]
  %v574 = vld [vmem:[%s7 + $0x150] sm:$0xff]
  %v575 = vld [vmem:[%s7 + $0x158] sm:$0xff]
  %v576 = vld [vmem:[%s7 + $0x160] sm:$0xff]
  %v577 = vld [vmem:[%s7 + $0x168] sm:$0xff]
  %v578 = vld [vmem:[%s7 + $0x170] sm:$0xff]
  %v579 = vld [vmem:[%s7 + $0x178] sm:$0xff]
  %v580 = vld [vmem:[%s7 + $0x180] sm:$0xff]
  %v581 = vld [vmem:[%s7 + $0x188] sm:$0xff]
  %v582 = vld [vmem:[%s7 + $0x190] sm:$0xff]
  %v583 = vld [vmem:[%s7 + $0x198] sm:$0xff]
  %v584 = vld [vmem:[%s7 + $0x1a0] sm:$0xff]
  %v585 = vld [vmem:[%s7 + $0x1a8] sm:$0xff]
  %v586 = vld [vmem:[%s7 + $0x1b0] sm:$0xff]
  %v587 = vld [vmem:[%s7 + $0x1b8] sm:$0xff]
  %v588 = vld [vmem:[%s7 + $0x1c0] sm:$0xff]
  %v589 = vld [vmem:[%s7 + $0x1c8] sm:$0xff]
  %v590 = vld [vmem:[%s7 + $0x1d0] sm:$0xff]
  %v591 = vld [vmem:[%s7 + $0x1d8] sm:$0xff]
  %v592 = vld [vmem:[%s7 + $0x1e0] sm:$0xff]
  %v593 = vld [vmem:[%s7 + $0x1e8] sm:$0xff]
  %v594 = vld [vmem:[%s7 + $0x1f0] sm:$0xff]
  %v595 = vld [vmem:[%s7 + $0x1f8] sm:$0xff]
  %v596 = vld [vmem:[%s8] sm:$0xf]
  %v598 = vperm.slane %v596, 0
  %v599 = vperm.slane %v596, 1
  %v600 = vperm.slane %v596, 2
  %v601 = vperm.slane %v596, 3
  %v670 = vunpack.c.l.b16 %v532
  %v671 = vunpack.c.h.b16 %v532
  %v672 = vunpack.c.l.b16 %v533
  %v673 = vunpack.c.h.b16 %v533
  %v674 = vunpack.c.l.b16 %v534
  %v675 = vunpack.c.h.b16 %v534
  %v676 = vunpack.c.l.b16 %v535
  %v677 = vunpack.c.h.b16 %v535
  %v678 = vunpack.c.l.b16 %v536
  %v679 = vunpack.c.h.b16 %v536
  %v680 = vunpack.c.l.b16 %v537
  %v681 = vunpack.c.h.b16 %v537
  %v682 = vunpack.c.l.b16 %v538
  %v683 = vunpack.c.h.b16 %v538
  %v684 = vunpack.c.l.b16 %v539
  %v685 = vunpack.c.h.b16 %v539
  %v686 = vunpack.c.l.b16 %v540
  %v687 = vunpack.c.h.b16 %v540
  %v688 = vunpack.c.l.b16 %v541
  %v689 = vunpack.c.h.b16 %v541
  %v690 = vunpack.c.l.b16 %v542
  %v691 = vunpack.c.h.b16 %v542
  %v692 = vunpack.c.l.b16 %v543
  %v693 = vunpack.c.h.b16 %v543
  %v694 = vunpack.c.l.b16 %v544
  %v695 = vunpack.c.h.b16 %v544
  %v696 = vunpack.c.l.b16 %v545
  %v697 = vunpack.c.h.b16 %v545
  %v698 = vunpack.c.l.b16 %v546
  %v699 = vunpack.c.h.b16 %v546
  %v700 = vunpack.c.l.b16 %v547
  %v701 = vunpack.c.h.b16 %v547
  %v702 = vunpack.c.l.b16 %v548
  %v703 = vunpack.c.h.b16 %v548
  %v704 = vunpack.c.l.b16 %v549
  %v705 = vunpack.c.h.b16 %v549
  %v706 = vunpack.c.l.b16 %v550
  %v707 = vunpack.c.h.b16 %v550
  %v708 = vunpack.c.l.b16 %v551
  %v709 = vunpack.c.h.b16 %v551
  %v710 = vunpack.c.l.b16 %v552
  %v711 = vunpack.c.h.b16 %v552
  %v712 = vunpack.c.l.b16 %v553
  %v713 = vunpack.c.h.b16 %v553
  %v714 = vunpack.c.l.b16 %v554
  %v715 = vunpack.c.h.b16 %v554
  %v716 = vunpack.c.l.b16 %v555
  %v717 = vunpack.c.h.b16 %v555
  %v718 = vunpack.c.l.b16 %v556
  %v719 = vunpack.c.h.b16 %v556
  %v720 = vunpack.c.l.b16 %v557
  %v721 = vunpack.c.h.b16 %v557
  %v722 = vunpack.c.l.b16 %v558
  %v723 = vunpack.c.h.b16 %v558
  %v724 = vunpack.c.l.b16 %v559
  %v725 = vunpack.c.h.b16 %v559
  %v726 = vunpack.c.l.b16 %v560
  %v727 = vunpack.c.h.b16 %v560
  %v728 = vunpack.c.l.b16 %v561
  %v729 = vunpack.c.h.b16 %v561
  %v730 = vunpack.c.l.b16 %v562
  %v731 = vunpack.c.h.b16 %v562
  %v732 = vunpack.c.l.b16 %v563
  %v733 = vunpack.c.h.b16 %v563
  %v734 = vunpack.c.l.b16 %v564
  %v735 = vunpack.c.h.b16 %v564
  %v736 = vunpack.c.l.b16 %v565
  %v737 = vunpack.c.h.b16 %v565
  %v738 = vunpack.c.l.b16 %v566
  %v739 = vunpack.c.h.b16 %v566
  %v740 = vunpack.c.l.b16 %v567
  %v741 = vunpack.c.h.b16 %v567
  %v742 = vunpack.c.l.b16 %v568
  %v743 = vunpack.c.h.b16 %v568
  %v744 = vunpack.c.l.b16 %v569
  %v745 = vunpack.c.h.b16 %v569
  %v746 = vunpack.c.l.b16 %v570
  %v747 = vunpack.c.h.b16 %v570
  %v748 = vunpack.c.l.b16 %v571
  %v749 = vunpack.c.h.b16 %v571
  %v750 = vunpack.c.l.b16 %v572
  %v751 = vunpack.c.h.b16 %v572
  %v752 = vunpack.c.l.b16 %v573
  %v753 = vunpack.c.h.b16 %v573
  %v754 = vunpack.c.l.b16 %v574
  %v755 = vunpack.c.h.b16 %v574
  %v756 = vunpack.c.l.b16 %v575
  %v757 = vunpack.c.h.b16 %v575
  %v758 = vunpack.c.l.b16 %v576
  %v759 = vunpack.c.h.b16 %v576
  %v760 = vunpack.c.l.b16 %v577
  %v761 = vunpack.c.h.b16 %v577
  %v762 = vunpack.c.l.b16 %v578
  %v763 = vunpack.c.h.b16 %v578
  %v764 = vunpack.c.l.b16 %v579
  %v765 = vunpack.c.h.b16 %v579
  %v766 = vunpack.c.l.b16 %v580
  %v767 = vunpack.c.h.b16 %v580
  %v768 = vunpack.c.l.b16 %v581
  %v769 = vunpack.c.h.b16 %v581
  %v770 = vunpack.c.l.b16 %v582
  %v771 = vunpack.c.h.b16 %v582
  %v772 = vunpack.c.l.b16 %v583
  %v773 = vunpack.c.h.b16 %v583
  %v774 = vunpack.c.l.b16 %v584
  %v775 = vunpack.c.h.b16 %v584
  %v776 = vunpack.c.l.b16 %v585
  %v777 = vunpack.c.h.b16 %v585
  %v778 = vunpack.c.l.b16 %v586
  %v779 = vunpack.c.h.b16 %v586
  %v780 = vunpack.c.l.b16 %v587
  %v781 = vunpack.c.h.b16 %v587
  %v782 = vunpack.c.l.b16 %v588
  %v783 = vunpack.c.h.b16 %v588
  %v784 = vunpack.c.l.b16 %v589
  %v785 = vunpack.c.h.b16 %v589
  %v786 = vunpack.c.l.b16 %v590
  %v787 = vunpack.c.h.b16 %v590
  %v788 = vunpack.c.l.b16 %v591
  %v789 = vunpack.c.h.b16 %v591
  %v790 = vunpack.c.l.b16 %v592
  %v791 = vunpack.c.h.b16 %v592
  %v792 = vunpack.c.l.b16 %v593
  %v793 = vunpack.c.h.b16 %v593
  %v794 = vunpack.c.l.b16 %v594
  %v795 = vunpack.c.h.b16 %v594
  %v796 = vunpack.c.l.b16 %v595
  %v797 = vunpack.c.h.b16 %v595
  %v798 = vpack.c.b16 %v674, %v670
  %v799 = vpack.c.b16 %v675, %v671
  %v800 = vpack.c.b16 %v676, %v672
  %v801 = vpack.c.b16 %v677, %v673
  %v802 = vpack.c.b16 %v682, %v678
  %v803 = vpack.c.b16 %v683, %v679
  %v804 = vpack.c.b16 %v684, %v680
  %v805 = vpack.c.b16 %v685, %v681
  %v806 = vpack.c.b16 %v690, %v686
  %v807 = vpack.c.b16 %v691, %v687
  %v808 = vpack.c.b16 %v692, %v688
  %v809 = vpack.c.b16 %v693, %v689
  %v810 = vpack.c.b16 %v698, %v694
  %v811 = vpack.c.b16 %v699, %v695
  %v812 = vpack.c.b16 %v700, %v696
  %v813 = vpack.c.b16 %v701, %v697
  %v814 = vpack.c.b16 %v706, %v702
  %v815 = vpack.c.b16 %v707, %v703
  %v816 = vpack.c.b16 %v708, %v704
  %v817 = vpack.c.b16 %v709, %v705
  %v818 = vpack.c.b16 %v714, %v710
  %v819 = vpack.c.b16 %v715, %v711
  %v820 = vpack.c.b16 %v716, %v712
  %v821 = vpack.c.b16 %v717, %v713
  %v822 = vpack.c.b16 %v722, %v718
  %v823 = vpack.c.b16 %v723, %v719
  %v824 = vpack.c.b16 %v724, %v720
  %v825 = vpack.c.b16 %v725, %v721
  %v826 = vpack.c.b16 %v730, %v726
  %v827 = vpack.c.b16 %v731, %v727
  %v828 = vpack.c.b16 %v732, %v728
  %v829 = vpack.c.b16 %v733, %v729
  %v830 = vpack.c.b16 %v738, %v734
  %v831 = vpack.c.b16 %v739, %v735
  %v832 = vpack.c.b16 %v740, %v736
  %v833 = vpack.c.b16 %v741, %v737
  %v834 = vpack.c.b16 %v746, %v742
  %v835 = vpack.c.b16 %v747, %v743
  %v836 = vpack.c.b16 %v748, %v744
  %v837 = vpack.c.b16 %v749, %v745
  %v838 = vpack.c.b16 %v754, %v750
  %v839 = vpack.c.b16 %v755, %v751
  %v840 = vpack.c.b16 %v756, %v752
  %v841 = vpack.c.b16 %v757, %v753
  %v842 = vpack.c.b16 %v762, %v758
  %v843 = vpack.c.b16 %v763, %v759
  %v844 = vpack.c.b16 %v764, %v760
  %v845 = vpack.c.b16 %v765, %v761
  %v846 = vpack.c.b16 %v770, %v766
  %v847 = vpack.c.b16 %v771, %v767
  %v848 = vpack.c.b16 %v772, %v768
  %v849 = vpack.c.b16 %v773, %v769
  %v850 = vpack.c.b16 %v778, %v774
  %v851 = vpack.c.b16 %v779, %v775
  %v852 = vpack.c.b16 %v780, %v776
  %v853 = vpack.c.b16 %v781, %v777
  %v854 = vpack.c.b16 %v786, %v782
  %v855 = vpack.c.b16 %v787, %v783
  %v856 = vpack.c.b16 %v788, %v784
  %v857 = vpack.c.b16 %v789, %v785
  %v858 = vpack.c.b16 %v794, %v790
  %v859 = vpack.c.b16 %v795, %v791
  %v860 = vpack.c.b16 %v796, %v792
  %v861 = vpack.c.b16 %v797, %v793
  %926 = vmatpush.bf16.msra.mxu0 %v826
  %927 = vmatpush.bf16.msra.mxu0 %v822
  %928 = vmatpush.bf16.msra.mxu0 %v818
  %929 = vmatpush.bf16.msra.mxu0 %v814
  %930 = vmatpush.bf16.msra.mxu0 %v810
  %931 = vmatpush.bf16.msra.mxu0 %v806
  %932 = vmatpush.bf16.msra.mxu0 %v802
  %933 = vmatpush.bf16.msra.mxu0 %v798
  %934 = vmatmul.bf16.gmra.mxu0 %v524
  %v935 = vpop.f32.mrf.mxu0
  %v936 = vadd.f32 %v598, %v935
  %v937 = vpop.f32.mrf.mxu0
  %v938 = vadd.f32 %v598, %v937
  %939 = vmatmul.bf16.gmra.mxu0 %v526
  %v940 = vpop.f32.mrf.mxu0
  %v941 = vadd.f32 %v598, %v940
  %v942 = vpop.f32.mrf.mxu0
  %v943 = vadd.f32 %v598, %v942
  %944 = vmatmul.bf16.gmra.mxu0 %v528
  %v945 = vpop.f32.mrf.mxu0
  %v946 = vadd.f32 %v598, %v945
  %v947 = vpop.f32.mrf.mxu0
  %v948 = vadd.f32 %v598, %v947
  %949 = vmatmul.bf16.gmra.mxu0 %v530
  %v950 = vpop.f32.mrf.mxu0
  %v951 = vadd.f32 %v598, %v950
  %v952 = vpop.f32.mrf.mxu0
  %v953 = vadd.f32 %v598, %v952
  %954 = vdwg.mxu0
  %955 = vmatpush.bf16.msra.mxu0 %v858
  %956 = vmatpush.bf16.msra.mxu0 %v854
  %957 = vmatpush.bf16.msra.mxu0 %v850
  %958 = vmatpush.bf16.msra.mxu0 %v846
  %959 = vmatpush.bf16.msra.mxu0 %v842
  %960 = vmatpush.bf16.msra.mxu0 %v838
  %961 = vmatpush.bf16.msra.mxu0 %v834
  %962 = vmatpush.bf16.msra.mxu0 %v830
  %963 = vmatmul.bf16.gmra.mxu0 %v525
  %v964 = vpop.f32.mrf.mxu0
  %v965 = vadd.f32 %v936, %v964
  %v966 = vpop.f32.mrf.mxu0
  %v967 = vadd.f32 %v938, %v966
  %968 = vmatmul.bf16.gmra.mxu0 %v527
  %v969 = vpop.f32.mrf.mxu0
  %v970 = vadd.f32 %v941, %v969
  %v971 = vpop.f32.mrf.mxu0
  %v972 = vadd.f32 %v943, %v971
  %973 = vmatmul.bf16.gmra.mxu0 %v529
  %v974 = vpop.f32.mrf.mxu0
  %v975 = vadd.f32 %v946, %v974
  %v976 = vpop.f32.mrf.mxu0
  %v977 = vadd.f32 %v948, %v976
  %978 = vmatmul.bf16.gmra.mxu0 %v531
  %v979 = vpop.f32.mrf.mxu0
  %v980 = vadd.f32 %v951, %v979
  %v981 = vpop.f32.mrf.mxu0
  %v982 = vadd.f32 %v953, %v981
  %983 = vdwg.mxu0
  %984 = vmatpush.bf16.msra.mxu0 %v827
  %985 = vmatpush.bf16.msra.mxu0 %v823
  %986 = vmatpush.bf16.msra.mxu0 %v819
  %987 = vmatpush.bf16.msra.mxu0 %v815
  %988 = vmatpush.bf16.msra.mxu0 %v811
  %989 = vmatpush.bf16.msra.mxu0 %v807
  %990 = vmatpush.bf16.msra.mxu0 %v803
  %991 = vmatpush.bf16.msra.mxu0 %v799
  %992 = vmatmul.bf16.gmra.mxu0 %v524
  %v993 = vpop.f32.mrf.mxu0
  %v994 = vadd.f32 %v599, %v993
  %v995 = vpop.f32.mrf.mxu0
  %v996 = vadd.f32 %v599, %v995
  %997 = vmatmul.bf16.gmra.mxu0 %v526
  %v998 = vpop.f32.mrf.mxu0
  %v999 = vadd.f32 %v599, %v998
  %v1000 = vpop.f32.mrf.mxu0
  %v1001 = vadd.f32 %v599, %v1000
  %1002 = vmatmul.bf16.gmra.mxu0 %v528
  %v1003 = vpop.f32.mrf.mxu0
  %v1004 = vadd.f32 %v599, %v1003
  %v1005 = vpop.f32.mrf.mxu0
  %v1006 = vadd.f32 %v599, %v1005
  %1007 = vmatmul.bf16.gmra.mxu0 %v530
  %v1008 = vpop.f32.mrf.mxu0
  %v1009 = vadd.f32 %v599, %v1008
  %v1010 = vpop.f32.mrf.mxu0
  %v1011 = vadd.f32 %v599, %v1010
  %1012 = vdwg.mxu0
  %1013 = vmatpush.bf16.msra.mxu0 %v859
  %1014 = vmatpush.bf16.msra.mxu0 %v855
  %1015 = vmatpush.bf16.msra.mxu0 %v851
  %1016 = vmatpush.bf16.msra.mxu0 %v847
  %1017 = vmatpush.bf16.msra.mxu0 %v843
  %1018 = vmatpush.bf16.msra.mxu0 %v839
  %1019 = vmatpush.bf16.msra.mxu0 %v835
  %1020 = vmatpush.bf16.msra.mxu0 %v831
  %1021 = vmatmul.bf16.gmra.mxu0 %v525
  %v1022 = vpop.f32.mrf.mxu0
  %v1023 = vadd.f32 %v994, %v1022
  %v1024 = vpop.f32.mrf.mxu0
  %v1025 = vadd.f32 %v996, %v1024
  %1026 = vmatmul.bf16.gmra.mxu0 %v527
  %v1027 = vpop.f32.mrf.mxu0
  %v1028 = vadd.f32 %v999, %v1027
  %v1029 = vpop.f32.mrf.mxu0
  %v1030 = vadd.f32 %v1001, %v1029
  %1031 = vmatmul.bf16.gmra.mxu0 %v529
  %v1032 = vpop.f32.mrf.mxu0
  %v1033 = vadd.f32 %v1004, %v1032
  %v1034 = vpop.f32.mrf.mxu0
  %v1035 = vadd.f32 %v1006, %v1034
  %1036 = vmatmul.bf16.gmra.mxu0 %v531
  %v1037 = vpop.f32.mrf.mxu0
  %v1038 = vadd.f32 %v1009, %v1037
  %v1039 = vpop.f32.mrf.mxu0
  %v1040 = vadd.f32 %v1011, %v1039
  %1041 = vdwg.mxu0
  %1042 = vmatpush.bf16.msra.mxu0 %v828
  %1043 = vmatpush.bf16.msra.mxu0 %v824
  %1044 = vmatpush.bf16.msra.mxu0 %v820
  %1045 = vmatpush.bf16.msra.mxu0 %v816
  %1046 = vmatpush.bf16.msra.mxu0 %v812
  %1047 = vmatpush.bf16.msra.mxu0 %v808
  %1048 = vmatpush.bf16.msra.mxu0 %v804
  %1049 = vmatpush.bf16.msra.mxu0 %v800
  %1050 = vmatmul.bf16.gmra.mxu0 %v524
  %v1051 = vpop.f32.mrf.mxu0
  %v1052 = vadd.f32 %v600, %v1051
  %v1053 = vpop.f32.mrf.mxu0
  %v1054 = vadd.f32 %v600, %v1053
  %1055 = vmatmul.bf16.gmra.mxu0 %v526
  %v1056 = vpop.f32.mrf.mxu0
  %v1057 = vadd.f32 %v600, %v1056
  %v1058 = vpop.f32.mrf.mxu0
  %v1059 = vadd.f32 %v600, %v1058
  %1060 = vmatmul.bf16.gmra.mxu0 %v528
  %v1061 = vpop.f32.mrf.mxu0
  %v1062 = vadd.f32 %v600, %v1061
  %v1063 = vpop.f32.mrf.mxu0
  %v1064 = vadd.f32 %v600, %v1063
  %1065 = vmatmul.bf16.gmra.mxu0 %v530
  %v1066 = vpop.f32.mrf.mxu0
  %v1067 = vadd.f32 %v600, %v1066
  %v1068 = vpop.f32.mrf.mxu0
  %v1069 = vadd.f32 %v600, %v1068
  %1070 = vdwg.mxu0
  %1071 = vmatpush.bf16.msra.mxu0 %v860
  %1072 = vmatpush.bf16.msra.mxu0 %v856
  %1073 = vmatpush.bf16.msra.mxu0 %v852
  %1074 = vmatpush.bf16.msra.mxu0 %v848
  %1075 = vmatpush.bf16.msra.mxu0 %v844
  %1076 = vmatpush.bf16.msra.mxu0 %v840
  %1077 = vmatpush.bf16.msra.mxu0 %v836
  %1078 = vmatpush.bf16.msra.mxu0 %v832
  %1079 = vmatmul.bf16.gmra.mxu0 %v525
  %v1080 = vpop.f32.mrf.mxu0
  %v1081 = vadd.f32 %v1052, %v1080
  %v1082 = vpop.f32.mrf.mxu0
  %v1083 = vadd.f32 %v1054, %v1082
  %1084 = vmatmul.bf16.gmra.mxu0 %v527
  %v1085 = vpop.f32.mrf.mxu0
  %v1086 = vadd.f32 %v1057, %v1085
  %v1087 = vpop.f32.mrf.mxu0
  %v1088 = vadd.f32 %v1059, %v1087
  %1089 = vmatmul.bf16.gmra.mxu0 %v529
  %v1090 = vpop.f32.mrf.mxu0
  %v1091 = vadd.f32 %v1062, %v1090
  %v1092 = vpop.f32.mrf.mxu0
  %v1093 = vadd.f32 %v1064, %v1092
  %1094 = vmatmul.bf16.gmra.mxu0 %v531
  %v1095 = vpop.f32.mrf.mxu0
  %v1096 = vadd.f32 %v1067, %v1095
  %v1097 = vpop.f32.mrf.mxu0
  %v1098 = vadd.f32 %v1069, %v1097
  %1099 = vdwg.mxu0
  %1100 = vmatpush.bf16.msra.mxu0 %v829
  %1101 = vmatpush.bf16.msra.mxu0 %v825
  %1102 = vmatpush.bf16.msra.mxu0 %v821
  %1103 = vmatpush.bf16.msra.mxu0 %v817
  %1104 = vmatpush.bf16.msra.mxu0 %v813
  %1105 = vmatpush.bf16.msra.mxu0 %v809
  %1106 = vmatpush.bf16.msra.mxu0 %v805
  %1107 = vmatpush.bf16.msra.mxu0 %v801
  %1108 = vmatmul.bf16.gmra.mxu0 %v524
  %v1109 = vpop.f32.mrf.mxu0
  %v1110 = vadd.f32 %v601, %v1109
  %v1111 = vpop.f32.mrf.mxu0
  %v1112 = vadd.f32 %v601, %v1111
  %1113 = vmatmul.bf16.gmra.mxu0 %v526
  %v1114 = vpop.f32.mrf.mxu0
  %v1115 = vadd.f32 %v601, %v1114
  %v1116 = vpop.f32.mrf.mxu0
  %v1117 = vadd.f32 %v601, %v1116
  %1118 = vmatmul.bf16.gmra.mxu0 %v528
  %v1119 = vpop.f32.mrf.mxu0
  %v1120 = vadd.f32 %v601, %v1119
  %v1121 = vpop.f32.mrf.mxu0
  %v1122 = vadd.f32 %v601, %v1121
  %1123 = vmatmul.bf16.gmra.mxu0 %v530
  %v1124 = vpop.f32.mrf.mxu0
  %v1125 = vadd.f32 %v601, %v1124
  %v1126 = vpop.f32.mrf.mxu0
  %v1127 = vadd.f32 %v601, %v1126
  %1128 = vdwg.mxu0
  %1129 = vmatpush.bf16.msra.mxu0 %v861
  %1130 = vmatpush.bf16.msra.mxu0 %v857
  %1131 = vmatpush.bf16.msra.mxu0 %v853
  %1132 = vmatpush.bf16.msra.mxu0 %v849
  %1133 = vmatpush.bf16.msra.mxu0 %v845
  %1134 = vmatpush.bf16.msra.mxu0 %v841
  %1135 = vmatpush.bf16.msra.mxu0 %v837
  %1136 = vmatpush.bf16.msra.mxu0 %v833
  %1137 = vmatmul.bf16.gmra.mxu0 %v525
  %v1138 = vpop.f32.mrf.mxu0
  %v1139 = vadd.f32 %v1110, %v1138
  %v1140 = vpop.f32.mrf.mxu0
  %v1141 = vadd.f32 %v1112, %v1140
  %1142 = vmatmul.bf16.gmra.mxu0 %v527
  %v1143 = vpop.f32.mrf.mxu0
  %v1144 = vadd.f32 %v1115, %v1143
  %v1145 = vpop.f32.mrf.mxu0
  %v1146 = vadd.f32 %v1117, %v1145
  %1147 = vmatmul.bf16.gmra.mxu0 %v529
  %v1148 = vpop.f32.mrf.mxu0
  %v1149 = vadd.f32 %v1120, %v1148
  %v1150 = vpop.f32.mrf.mxu0
  %v1151 = vadd.f32 %v1122, %v1150
  %1152 = vmatmul.bf16.gmra.mxu0 %v531
  %v1153 = vpop.f32.mrf.mxu0
  %v1154 = vadd.f32 %v1125, %v1153
  %v1155 = vpop.f32.mrf.mxu0
  %v1156 = vadd.f32 %v1127, %v1155
  %1157 = vdwg.mxu0
  %v1158 = vsub.f32 %v32, %v965
  %v1159 = vsub.f32 %v33, %v1023
  %v1160 = vsub.f32 %v34, %v967
  %v1161 = vsub.f32 %v35, %v1025
  %v1162 = vsub.f32 %v36, %v970
  %v1163 = vsub.f32 %v37, %v1028
  %v1164 = vsub.f32 %v38, %v972
  %v1165 = vsub.f32 %v39, %v1030
  %v1166 = vsub.f32 %v40, %v975
  %v1167 = vsub.f32 %v41, %v1033
  %v1168 = vsub.f32 %v42, %v977
  %v1169 = vsub.f32 %v43, %v1035
  %v1170 = vsub.f32 %v44, %v980
  %v1171 = vsub.f32 %v45, %v1038
  %v1172 = vsub.f32 %v46, %v982
  %v1173 = vsub.f32 %v47, %v1040
  %v1174 = vmul.f32 %v1158, %v1158
  %v1175 = vmul.f32 %v1159, %v1159
  %v1176 = vmul.f32 %v1160, %v1160
  %v1177 = vmul.f32 %v1161, %v1161
  %v1178 = vmul.f32 %v1162, %v1162
  %v1179 = vmul.f32 %v1163, %v1163
  %v1180 = vmul.f32 %v1164, %v1164
  %v1181 = vmul.f32 %v1165, %v1165
  %v1182 = vmul.f32 %v1166, %v1166
  %v1183 = vmul.f32 %v1167, %v1167
  %v1184 = vmul.f32 %v1168, %v1168
  %v1185 = vmul.f32 %v1169, %v1169
  %v1186 = vmul.f32 %v1170, %v1170
  %v1187 = vmul.f32 %v1171, %v1171
  %v1188 = vmul.f32 %v1172, %v1172
  %v1189 = vmul.f32 %v1173, %v1173
  %v1190 = vsub.f32 0.0, %v1081
  %v1191 = vsub.f32 0.0, %v1139
  %v1192 = vsub.f32 0.0, %v1083
  %v1193 = vsub.f32 0.0, %v1141
  %v1194 = vsub.f32 0.0, %v1086
  %v1195 = vsub.f32 0.0, %v1144
  %v1196 = vsub.f32 0.0, %v1088
  %v1197 = vsub.f32 0.0, %v1146
  %v1198 = vsub.f32 0.0, %v1091
  %v1199 = vsub.f32 0.0, %v1149
  %v1200 = vsub.f32 0.0, %v1093
  %v1201 = vsub.f32 0.0, %v1151
  %v1202 = vsub.f32 0.0, %v1096
  %v1203 = vsub.f32 0.0, %v1154
  %v1204 = vsub.f32 0.0, %v1098
  %v1205 = vsub.f32 0.0, %v1156
  %v1206 = vmul.f32 %v1190, 1.442695
  %v1207 = vpow.pop %v1206
  %v1208 = vmul.f32 %v1191, 1.442695
  %v1209 = vpow.pop %v1208
  %v1210 = vmul.f32 %v1192, 1.442695
  %v1211 = vpow.pop %v1210
  %v1212 = vmul.f32 %v1193, 1.442695
  %v1213 = vpow.pop %v1212
  %v1214 = vmul.f32 %v1194, 1.442695
  %v1215 = vpow.pop %v1214
  %v1216 = vmul.f32 %v1195, 1.442695
  %v1217 = vpow.pop %v1216
  %v1218 = vmul.f32 %v1196, 1.442695
  %v1219 = vpow.pop %v1218
  %v1220 = vmul.f32 %v1197, 1.442695
  %v1221 = vpow.pop %v1220
  %v1222 = vmul.f32 %v1198, 1.442695
  %v1223 = vpow.pop %v1222
  %v1224 = vmul.f32 %v1199, 1.442695
  %v1225 = vpow.pop %v1224
  %v1226 = vmul.f32 %v1200, 1.442695
  %v1227 = vpow.pop %v1226
  %v1228 = vmul.f32 %v1201, 1.442695
  %v1229 = vpow.pop %v1228
  %v1230 = vmul.f32 %v1202, 1.442695
  %v1231 = vpow.pop %v1230
  %v1232 = vmul.f32 %v1203, 1.442695
  %v1233 = vpow.pop %v1232
  %v1234 = vmul.f32 %v1204, 1.442695
  %v1235 = vpow.pop %v1234
  %v1236 = vmul.f32 %v1205, 1.442695
  %v1237 = vpow.pop %v1236
  %v1238 = vmul.f32 %v1174, %v1207
  %v1239 = vmul.f32 %v1175, %v1209
  %v1240 = vmul.f32 %v1176, %v1211
  %v1241 = vmul.f32 %v1177, %v1213
  %v1242 = vmul.f32 %v1178, %v1215
  %v1243 = vmul.f32 %v1179, %v1217
  %v1244 = vmul.f32 %v1180, %v1219
  %v1245 = vmul.f32 %v1181, %v1221
  %v1246 = vmul.f32 %v1182, %v1223
  %v1247 = vmul.f32 %v1183, %v1225
  %v1248 = vmul.f32 %v1184, %v1227
  %v1249 = vmul.f32 %v1185, %v1229
  %v1250 = vmul.f32 %v1186, %v1231
  %v1251 = vmul.f32 %v1187, %v1233
  %v1252 = vmul.f32 %v1188, %v1235
  %v1253 = vmul.f32 %v1189, %v1237
  %v1254 = vadd.f32 %v1238, %v1239
  %1255 = vadd.xlane.f32.xlu0 %v1254
  %v1256 = vpop.xlane.xlu0 %1255
  %v1257 = vadd.f32 %v1240, %v1241
  %1258 = vadd.xlane.f32.xlu0 %v1257
  %v1259 = vpop.xlane.xlu0 %1258
  %v1260 = vadd.f32 %v1242, %v1243
  %1261 = vadd.xlane.f32.xlu0 %v1260
  %v1262 = vpop.xlane.xlu0 %1261
  %v1263 = vadd.f32 %v1244, %v1245
  %1264 = vadd.xlane.f32.xlu0 %v1263
  %v1265 = vpop.xlane.xlu0 %1264
  %v1266 = vadd.f32 %v1246, %v1247
  %1267 = vadd.xlane.f32.xlu0 %v1266
  %v1268 = vpop.xlane.xlu0 %1267
  %v1269 = vadd.f32 %v1248, %v1249
  %1270 = vadd.xlane.f32.xlu0 %v1269
  %v1271 = vpop.xlane.xlu0 %1270
  %v1272 = vadd.f32 %v1250, %v1251
  %1273 = vadd.xlane.f32.xlu0 %v1272
  %v1274 = vpop.xlane.xlu0 %1273
  %v1275 = vadd.f32 %v1252, %v1253
  %1276 = vadd.xlane.f32.xlu0 %v1275
  %v1277 = vpop.xlane.xlu0 %1276
  %v1278 = vadd.f32 %v1081, %v1139
  %1279 = vadd.xlane.f32.xlu0 %v1278
  %v1280 = vpop.xlane.xlu0 %1279
  %v1281 = vadd.f32 %v1083, %v1141
  %1282 = vadd.xlane.f32.xlu0 %v1281
  %v1283 = vpop.xlane.xlu0 %1282
  %v1284 = vadd.f32 %v1086, %v1144
  %1285 = vadd.xlane.f32.xlu0 %v1284
  %v1286 = vpop.xlane.xlu0 %1285
  %v1287 = vadd.f32 %v1088, %v1146
  %1288 = vadd.xlane.f32.xlu0 %v1287
  %v1289 = vpop.xlane.xlu0 %1288
  %v1290 = vadd.f32 %v1091, %v1149
  %1291 = vadd.xlane.f32.xlu0 %v1290
  %v1292 = vpop.xlane.xlu0 %1291
  %v1293 = vadd.f32 %v1093, %v1151
  %1294 = vadd.xlane.f32.xlu0 %v1293
  %v1295 = vpop.xlane.xlu0 %1294
  %v1296 = vadd.f32 %v1096, %v1154
  %1297 = vadd.xlane.f32.xlu0 %v1296
  %v1298 = vpop.xlane.xlu0 %1297
  %v1299 = vadd.f32 %v1098, %v1156
  %1300 = vadd.xlane.f32.xlu0 %v1299
  %v1301 = vpop.xlane.xlu0 %1300
  %v1302 = vadd.f32 %v1256, %v1280
  %v1303 = vadd.f32 %v1259, %v1283
  %v1304 = vadd.f32 %v1262, %v1286
  %v1305 = vadd.f32 %v1265, %v1289
  %v1306 = vadd.f32 %v1268, %v1292
  %v1307 = vadd.f32 %v1271, %v1295
  %v1308 = vadd.f32 %v1274, %v1298
  %v1309 = vadd.f32 %v1277, %v1301
  %v1310 = vadd.f32 %v1302, 470.49652
  %v1311 = vadd.f32 %v1303, 470.49652
  %v1312 = vadd.f32 %v1304, 470.49652
  %v1313 = vadd.f32 %v1305, 470.49652
  %v1314 = vadd.f32 %v1306, 470.49652
  %v1315 = vadd.f32 %v1307, 470.49652
  %v1316 = vadd.f32 %v1308, 470.49652
  %v1317 = vadd.f32 %v1309, 470.49652
  %v1318 = vmul.f32 %v1310, -0.5
  %v1319 = vmul.f32 %v1311, -0.5
  %v1320 = vmul.f32 %v1312, -0.5
  %v1321 = vmul.f32 %v1313, -0.5
  %v1322 = vmul.f32 %v1314, -0.5
  %v1323 = vmul.f32 %v1315, -0.5
  %v1324 = vmul.f32 %v1316, -0.5
  %v1325 = vmul.f32 %v1317, -0.5
  %s1326 = smul.u32 0, 8
  %v1327 = vstv %s1326
  %v1328 = vadd.s32 %v1327, 1
  %v1329 = vadd.s32 %v1327, 2
  %v1330 = vadd.s32 %v1327, 3
  %v1331 = vadd.s32 %v1327, 4
  %v1332 = vadd.s32 %v1327, 5
  %v1333 = vadd.s32 %v1327, 6
  %v1334 = vadd.s32 %v1327, 7
  %v1335 = vld [vmem:[%s2] sm:$0xff]
  %vm1336 = vcmp.ge.s32.totalorder %v1327, 1
  %vm1337 = vcmp.ge.s32.totalorder %v1328, 1
  %vm1338 = vcmp.ge.s32.totalorder %v1329, 1
  %vm1339 = vcmp.ge.s32.totalorder %v1330, 1
  %vm1340 = vcmp.ge.s32.totalorder %v1331, 1
  %vm1341 = vcmp.ge.s32.totalorder %v1332, 1
  %vm1342 = vcmp.ge.s32.totalorder %v1333, 1
  %vm1343 = vcmp.ge.s32.totalorder %v1334, 1
  %vm1344 = vcmp.lt.s32.totalorder %v1327, %v1335
  %vm1345 = vcmp.lt.s32.totalorder %v1328, %v1335
  %vm1346 = vcmp.lt.s32.totalorder %v1329, %v1335
  %vm1347 = vcmp.lt.s32.totalorder %v1330, %v1335
  %vm1348 = vcmp.lt.s32.totalorder %v1331, %v1335
  %vm1349 = vcmp.lt.s32.totalorder %v1332, %v1335
  %vm1350 = vcmp.lt.s32.totalorder %v1333, %v1335
  %vm1351 = vcmp.lt.s32.totalorder %v1334, %v1335
  %vm1352 = vmand %vm1336, %vm1344
  %vm1353 = vmand %vm1337, %vm1345
  %vm1354 = vmand %vm1338, %vm1346
  %vm1355 = vmand %vm1339, %vm1347
  %vm1356 = vmand %vm1340, %vm1348
  %vm1357 = vmand %vm1341, %vm1349
  %vm1358 = vmand %vm1342, %vm1350
  %vm1359 = vmand %vm1343, %vm1351
  %v1360 = vsel %vm1352, %v1318, 0.0
  %v1361 = vsel %vm1353, %v1319, 0.0
  %v1362 = vsel %vm1354, %v1320, 0.0
  %v1363 = vsel %vm1355, %v1321, 0.0
  %v1364 = vsel %vm1356, %v1322, 0.0
  %v1365 = vsel %vm1357, %v1323, 0.0
  %v1366 = vsel %vm1358, %v1324, 0.0
  %v1367 = vsel %vm1359, %v1325, 0.0
  %vm1368 = vcmask 7168
  %v1369 = vsel %vm1368, %v1360, 0.0
  %v1370 = vsel %vm1368, %v1361, 0.0
  %v1371 = vadd.f32 %v1369, %v1370
  %v1372 = vsel %vm1368, %v1362, 0.0
  %v1373 = vadd.f32 %v1371, %v1372
  %v1374 = vsel %vm1368, %v1363, 0.0
  %v1375 = vadd.f32 %v1373, %v1374
  %v1376 = vsel %vm1368, %v1364, 0.0
  %v1377 = vadd.f32 %v1375, %v1376
  %v1378 = vsel %vm1368, %v1365, 0.0
  %v1379 = vadd.f32 %v1377, %v1378
  %v1380 = vsel %vm1368, %v1366, 0.0
  %v1381 = vadd.f32 %v1379, %v1380
  %v1382 = vsel %vm1368, %v1367, 0.0
  %v1383 = vadd.f32 %v1381, %v1382
  %p1384 = scmp.eq.s32.totalorder 0, 0
  // Predicated region
  $region38: #{rnn_forward.5} parent=0 // pred_check
    %p1385 = pneg %p1384
  $region39: #{rnn_forward.5} parent=0 // pred_check_branch
    %1387 = sbr.rel (%p1385) target = $region41
  $region40: #{rnn_forward.5} parent=0 // pred_region
    %1388 = vst.msk [vmem:[%s9] sm:$0xff] %vm1368, 0.0
  $region41: #{rnn_forward.5} parent=0 // pred_fallthru
    _
  %v1389 = vld [vmem:[%s9] sm:$0xff]
  %v1390 = vadd.f32 %v1389, %v1383
  %1391 = vst.msk [vmem:[%s9] sm:$0xff] %vm1368, %v1390
  // Predicated region
  $region42: #{rnn_forward.5} parent=0 // pred_check
    %p1392 = pneg %p1384
  $region43: #{rnn_forward.5} parent=0 // pred_check_branch
    %1394 = sbr.rel (%p1392) target = $region45
  $region44: #{rnn_forward.5} parent=0 // pred_region
    %v1395 = vld [vmem:[%s2] sm:$0xff]
    %v1396 = vcvt.s32.f32 %v1395
    %v1397 = vmax.f32 %v1396, 1.0
    %v1398 = vld [vmem:[%s9] sm:$0xff]
    %v1399 = vrcp.pop %v1397
    %v1400 = vmul.f32 %v1397, %v1399
    %v1401 = vsub.f32 1.0, %v1400
    %v1402 = vmul.f32 %v1399, %v1401
    %v1403 = vadd.f32 %v1399, %v1402
    %vm1404 = vweird.f32 %v1397
    %vm1405 = vweird.f32 %v1399
    %vm1406 = vmor %vm1404, %vm1405
    %v1407 = vsel %vm1406, %v1399, %v1403
    %v1408 = vand.u32 2147483647, %v1397
    %vm1409 = vcmp.eq.f32.partialorder %v1408, 8.507059e+37
    %v1410 = vand.u32 %v1397, 2147483648
    %v1411 = vor.u32 1.1754944e-38, %v1410
    %v1412 = vsel %vm1409, %v1411, %v1407
    %v1413 = vmul.f32 %v1398, %v1412
    %1414 = vst.msk [vmem:[%s9] sm:$0xff] %vm1368, %v1413
  $region45: #{rnn_forward.5} parent=0 // pred_fallthru
    _
  // Predicated region
  $region46: #{rnn_forward.5} parent=0 // pred_check
    _
  $region47: #{rnn_forward.5} parent=0 // pred_check_branch
    %1416 = sbr.rel (0) target = $region49
  $region48: #{rnn_forward.5} parent=0 // pred_region
    _
  $region49: #{rnn_forward.5} parent=0 // pred_fallthru
    _
  // Predicated region
  $region50: #{rnn_forward.5} parent=0 // pred_check
    _
  $region51: #{rnn_forward.5} parent=0 // pred_check_branch
    %1418 = sbr.rel (0) target = $region53
  $region52: #{rnn_forward.5} parent=0 // pred_region
    _
  $region53: #{rnn_forward.5} parent=0 // pred_fallthru
    _

</llo_original>
